<compile_context>
chip_gen: v7x
topology: tpu7x:2x2x1
jax: 0.10.0
libtpu: 0.0.40
codegen_flags: <defaults>
</compile_context>

<pallas_src>
import functools
import math

import jax
import jax.numpy as jnp
from jax import lax
from jax.experimental import pallas as pl
from jax.experimental.pallas import tpu as pltpu

# ----------------------------- model config ---------------------------------
D_MODEL = 32          # small d_model consistent with module structure
N_HEADS = 4
HEAD_DIM = D_MODEL // N_HEADS
LN_EPS = 1e-5
ATTN_SCALE = 1.0 / math.sqrt(HEAD_DIM)


# --------------------------- in-kernel helpers -------------------------------
def _layer_norm(x, g, b):
    mean = jnp.mean(x, axis=-1, keepdims=True)
    var = jnp.mean((x - mean) ** 2, axis=-1, keepdims=True)
    return (x - mean) * lax.rsqrt(var + LN_EPS) * g + b


def _attn_core(qp, kp, vp, wo, bo):
    """MHA core on already-projected q/k/v with fused output projection.

    qp: (Lq, D), kp/vp: (Lk, D), wo: (D, D), bo: (1, D).
    Heads via static lane slices; per-head out-proj contributions are summed,
    which equals concat(heads) @ wo without any lane concat / transpose.
    """
    out = None
    for h in range(N_HEADS):
        sl = slice(h * HEAD_DIM, (h + 1) * HEAD_DIM)
        qh = qp[:, sl] * ATTN_SCALE
        kh = kp[:, sl]
        vh = vp[:, sl]
        # scores: contract last dims of both operands (no explicit k transpose)
        s = lax.dot_general(qh, kh, (((1,), (1,)), ((), ())),
                            preferred_element_type=jnp.float32)  # (Lq, Lk)
        m = jnp.max(s, axis=-1, keepdims=True)
        p = jnp.exp(s - m)
        denom = jnp.sum(p, axis=-1, keepdims=True)
        p = p * pl.reciprocal(denom, approx=True)
        oh = jnp.dot(p, vh, preferred_element_type=jnp.float32)       # (Lq, Dh)
        contrib = jnp.dot(oh, wo[sl, :], preferred_element_type=jnp.float32)
        out = contrib if out is None else out + contrib
    return out + bo


# ------------------------------ fused kernel ---------------------------------
def _cond_decoder_layer_kernel(
    dec_ref, objq_ref, enc_ref, pe_ref,
    disp_w1_ref, disp_b1_ref, disp_w2_ref, disp_b2_ref,
    sa_wqk_ref, sa_bqk_ref, sa_wv_ref, sa_bv_ref, sa_wo_ref, sa_bo_ref,
    ln1_g_ref, ln1_b_ref,
    lambda_q_ref,
    ca_wq_ref, ca_bq_ref, ca_wkv_ref, ca_bkv_ref, ca_wo_ref, ca_bo_ref,
    ln2_g_ref, ln2_b_ref,
    ffn_w1_ref, ffn_b1_ref, ffn_w2_ref, ffn_b2_ref,
    ln3_g_ref, ln3_b_ref,
    out_ref,
):
    dec = dec_ref[...]        # (NQ, D)
    objq = objq_ref[...]      # (NQ, D)
    enc = enc_ref[...]        # (S, D)
    pe = pe_ref[...]          # (NQ, D)

    # --- displacement FFN -----------------------------------------------------
    h = jnp.dot(dec, disp_w1_ref[...], preferred_element_type=jnp.float32) + disp_b1_ref[...]
    h = jnp.maximum(h, 0.0)
    disp = jnp.dot(h, disp_w2_ref[...], preferred_element_type=jnp.float32) + disp_b2_ref[...]

    # --- self-attention (q = k = dec + obj_q, v = dec) --------------------------
    qk = dec + objq
    qkp = jnp.dot(qk, sa_wqk_ref[...], preferred_element_type=jnp.float32) + sa_bqk_ref[...]
    qp = qkp[:, :D_MODEL]
    kp = qkp[:, D_MODEL:]
    vp = jnp.dot(dec, sa_wv_ref[...], preferred_element_type=jnp.float32) + sa_bv_ref[...]
    sa_out = _attn_core(qp, kp, vp, sa_wo_ref[...], sa_bo_ref[...])
    dec1 = _layer_norm(dec + sa_out, ln1_g_ref[...], ln1_b_ref[...])

    # --- conditional spatial cross query ---------------------------------------
    cq = dec1 + disp * (lambda_q_ref[...] * pe)

    # --- cross-attention (q = cq, k = v = enc) ----------------------------------
    qp2 = jnp.dot(cq, ca_wq_ref[...], preferred_element_type=jnp.float32) + ca_bq_ref[...]
    kvp = jnp.dot(enc, ca_wkv_ref[...], preferred_element_type=jnp.float32) + ca_bkv_ref[...]
    kp2 = kvp[:, :D_MODEL]
    vp2 = kvp[:, D_MODEL:]
    ca_out = _attn_core(qp2, kp2, vp2, ca_wo_ref[...], ca_bo_ref[...])
    dec2 = _layer_norm(dec1 + ca_out, ln2_g_ref[...], ln2_b_ref[...])

    # --- FFN --------------------------------------------------------------------
    f = jnp.dot(dec2, ffn_w1_ref[...], preferred_element_type=jnp.float32) + ffn_b1_ref[...]
    f = jnp.maximum(f, 0.0)
    f = jnp.dot(f, ffn_w2_ref[...], preferred_element_type=jnp.float32) + ffn_b2_ref[...]
    dec3 = _layer_norm(dec2 + f, ln3_g_ref[...], ln3_b_ref[...])

    out_ref[...] = dec3.astype(out_ref.dtype)


# --------------------------- plain-JAX glue ----------------------------------
def positional_encoding(ref_points, d_model):
    """Sinusoidal encoding of (B, Q, 2) ref points -> (B, Q, d_model)."""
    rp = jax.nn.sigmoid(ref_points)
    half = d_model // 2
    dim_t = jnp.arange(half, dtype=jnp.float32)
    dim_t = 10000.0 ** (2.0 * (dim_t // 2) / half)
    pos_x = rp[..., 0, None] / dim_t
    pos_y = rp[..., 1, None] / dim_t
    pos_x = jnp.concatenate([jnp.sin(pos_x[:, :, ::2]), jnp.cos(pos_x[:, :, 1::2])], axis=-1)
    pos_y = jnp.concatenate([jnp.sin(pos_y[:, :, ::2]), jnp.cos(pos_y[:, :, 1::2])], axis=-1)
    return jnp.concatenate([pos_x, pos_y], axis=-1)


@jax.jit
def conditional_decoder_layer(params, decoder_embeddings, object_queries,
                              encoder_output_feats):
    """Forward pass matching ConditionalDecoderLayer.forward (dropout = eval)."""
    B, NQ, D = decoder_embeddings.shape
    S = encoder_output_feats.shape[1]
    p = params

    # Lane-sparse pieces stay in plain JAX: width-2 coord projection, sinusoidal
    # positional encoding (transcendentals on a (B,NQ,2) tensor), width-4 concat.
    ref2d = object_queries @ p["coord_w"] + p["coord_b"]           # (B, NQ, 2)
    pe = positional_encoding(ref2d, D).astype(decoder_embeddings.dtype)

    def seq_spec(L):
        return pl.BlockSpec((None, L, D), lambda b: (b, 0, 0))

    def full_spec(r, c):
        return pl.BlockSpec((r, c), lambda b: (0, 0))

    kernel_inputs = (
        decoder_embeddings, object_queries, encoder_output_feats, pe,
        p["disp_w1"], p["disp_b1"], p["disp_w2"], p["disp_b2"],
        p["sa_wqk"], p["sa_bqk"], p["sa_wv"], p["sa_bv"], p["sa_wo"], p["sa_bo"],
        p["ln1_g"], p["ln1_b"],
        p["lambda_q"],
        p["ca_wq"], p["ca_bq"], p["ca_wkv"], p["ca_bkv"], p["ca_wo"], p["ca_bo"],
        p["ln2_g"], p["ln2_b"],
        p["ffn_w1"], p["ffn_b1"], p["ffn_w2"], p["ffn_b2"],
        p["ln3_g"], p["ln3_b"],
    )
    in_specs = ([seq_spec(NQ), seq_spec(NQ), seq_spec(S), seq_spec(NQ)]
                + [full_spec(*a.shape) for a in kernel_inputs[4:]])

    out = pl.pallas_call(
        _cond_decoder_layer_kernel,
        grid=(B,),
        out_shape=jax.ShapeDtypeStruct((B, NQ, D), decoder_embeddings.dtype),
        in_specs=in_specs,
        out_specs=pl.BlockSpec((None, NQ, D), lambda b: (b, 0, 0)),
        compiler_params=pltpu.CompilerParams(dimension_semantics=("parallel",)),
    )(*kernel_inputs)

    reference_point = jnp.concatenate([ref2d, jnp.zeros_like(ref2d)], axis=-1)
    return out, reference_point


# ------------------------------ parameters -----------------------------------
def init_params(key, d_model=D_MODEL):
    ks = jax.random.split(key, 8)

    def w(k, shape, scale=0.1):
        return jax.random.normal(k, shape, jnp.float32) * scale

    def b(n):
        return jnp.zeros((1, n), jnp.float32)   # pre-reshaped (1, N) biases

    sa = jax.random.split(ks[0], 4)
    ca = jax.random.split(ks[1], 4)
    return dict(
        # self-attention: q & k project the same input -> fused (D, 2D) weight
        sa_wqk=jnp.concatenate([w(sa[0], (d_model, d_model)),
                                w(sa[1], (d_model, d_model))], axis=1),
        sa_bqk=b(2 * d_model),
        sa_wv=w(sa[2], (d_model, d_model)), sa_bv=b(d_model),
        sa_wo=w(sa[3], (d_model, d_model)), sa_bo=b(d_model),
        # cross-attention: k & v project the same input -> fused (D, 2D) weight
        ca_wq=w(ca[0], (d_model, d_model)), ca_bq=b(d_model),
        ca_wkv=jnp.concatenate([w(ca[1], (d_model, d_model)),
                                w(ca[2], (d_model, d_model))], axis=1),
        ca_bkv=b(2 * d_model),
        ca_wo=w(ca[3], (d_model, d_model)), ca_bo=b(d_model),
        ffn_w1=w(ks[2], (d_model, 4 * d_model)), ffn_b1=b(4 * d_model),
        ffn_w2=w(ks[3], (4 * d_model, d_model)), ffn_b2=b(d_model),
        ln1_g=jnp.ones((1, d_model), jnp.float32), ln1_b=b(d_model),
        ln2_g=jnp.ones((1, d_model), jnp.float32), ln2_b=b(d_model),
        ln3_g=jnp.ones((1, d_model), jnp.float32), ln3_b=b(d_model),
        coord_w=w(ks[4], (d_model, 2)), coord_b=jnp.zeros((2,), jnp.float32),
        disp_w1=w(ks[5], (d_model, d_model)), disp_b1=b(d_model),
        disp_w2=w(ks[6], (d_model, d_model)), disp_b2=b(d_model),
        lambda_q=jnp.ones((1, d_model), jnp.float32),
    )


# ------------------------- pure-JAX reference (check) -------------------------
def _ref_ln(x, g, b):
    m = jnp.mean(x, axis=-1, keepdims=True)
    v = jnp.mean((x - m) ** 2, axis=-1, keepdims=True)
    return (x - m) * lax.rsqrt(v + LN_EPS) * g + b


def _ref_mha(q, k, v, wq, bq, wk, bk, wv, bv, wo, bo):
    B, Lq, D = q.shape
    Lk = k.shape[1]

    def heads(x, w_, b_, L):
        return (x @ w_ + b_).reshape(B, L, N_HEADS, HEAD_DIM).transpose(0, 2, 1, 3)

    qp = heads(q, wq, bq, Lq)
    kp = heads(k, wk, bk, Lk)
    vp = heads(v, wv, bv, Lk)
    s = jnp.einsum("bhqd,bhkd->bhqk", qp, kp) / math.sqrt(HEAD_DIM)
    a = jax.nn.softmax(s, axis=-1)
    o = jnp.einsum("bhqk,bhkd->bhqd", a, vp).transpose(0, 2, 1, 3).reshape(B, Lq, D)
    return o @ wo + bo


def reference_forward(p, dec, obj_q, enc):
    D = D_MODEL
    disp = jnp.maximum(dec @ p["disp_w1"] + p["disp_b1"], 0.0)
    disp = disp @ p["disp_w2"] + p["disp_b2"]
    qk = dec + obj_q
    sa = _ref_mha(qk, qk, dec,
                  p["sa_wqk"][:, :D], p["sa_bqk"][:, :D],
                  p["sa_wqk"][:, D:], p["sa_bqk"][:, D:],
                  p["sa_wv"], p["sa_bv"], p["sa_wo"], p["sa_bo"])
    d = _ref_ln(dec + sa, p["ln1_g"], p["ln1_b"])
    ref2d = obj_q @ p["coord_w"] + p["coord_b"]
    pe = positional_encoding(ref2d, D)
    cq = d + disp * (p["lambda_q"] * pe)
    ca = _ref_mha(cq, enc, enc,
                  p["ca_wq"], p["ca_bq"],
                  p["ca_wkv"][:, :D], p["ca_bkv"][:, :D],
                  p["ca_wkv"][:, D:], p["ca_bkv"][:, D:],
                  p["ca_wo"], p["ca_bo"])
    d = _ref_ln(d + ca, p["ln2_g"], p["ln2_b"])
    f = jnp.maximum(d @ p["ffn_w1"] + p["ffn_b1"], 0.0)
    f = f @ p["ffn_w2"] + p["ffn_b2"]
    d = _ref_ln(d + f, p["ln3_g"], p["ln3_b"])
    return d, jnp.concatenate([ref2d, jnp.zeros_like(ref2d)], axis=-1)


# --------------------------------- main ---------------------------------------
if __name__ == "__main__":
    B, NQ, S = 2, 8, 16     # batch, num object queries, encoder sequence length

    key = jax.random.PRNGKey(0)
    k_par, k_dec, k_obj, k_enc = jax.random.split(key, 4)
    params = init_params(k_par)

    decoder_embeddings = jax.random.normal(k_dec, (B, NQ, D_MODEL), jnp.float32)
    object_queries = jax.random.normal(k_obj, (B, NQ, D_MODEL), jnp.float32)
    encoder_output_feats = jax.random.normal(k_enc, (B, S, D_MODEL), jnp.float32)

    out_emb, ref_pt = conditional_decoder_layer(
        params, decoder_embeddings, object_queries, encoder_output_feats)
    out_emb = jax.block_until_ready(out_emb)
    ref_pt = jax.block_until_ready(ref_pt)

    assert out_emb.shape == (B, NQ, D_MODEL)
    assert ref_pt.shape == (B, NQ, 4)
    assert bool(jnp.all(jnp.isfinite(out_emb)))

    # sanity check vs plain-JAX reference
    ref_emb, ref_rp = reference_forward(
        params, decoder_embeddings, object_queries, encoder_output_feats)
    assert bool(jnp.allclose(out_emb, ref_emb, atol=2e-2, rtol=2e-2))
    assert bool(jnp.allclose(ref_pt, ref_rp, atol=2e-2, rtol=2e-2))

    print("KERNEL_OK")
</pallas_src>

<mosaic_0001>
module attributes {stable_mosaic.version = 11 : i64} {
  func.func @_cond_decoder_layer_kernel(%arg0: i32, %arg1: memref<1x8x32xf32, #tpu.memory_space<vmem>>, %arg2: memref<1x8x32xf32, #tpu.memory_space<vmem>>, %arg3: memref<1x16x32xf32, #tpu.memory_space<vmem>>, %arg4: memref<1x8x32xf32, #tpu.memory_space<vmem>>, %arg5: memref<32x32xf32, #tpu.memory_space<vmem>>, %arg6: memref<1x32xf32, #tpu.memory_space<vmem>>, %arg7: memref<32x32xf32, #tpu.memory_space<vmem>>, %arg8: memref<1x32xf32, #tpu.memory_space<vmem>>, %arg9: memref<32x64xf32, #tpu.memory_space<vmem>>, %arg10: memref<1x64xf32, #tpu.memory_space<vmem>>, %arg11: memref<32x32xf32, #tpu.memory_space<vmem>>, %arg12: memref<1x32xf32, #tpu.memory_space<vmem>>, %arg13: memref<32x32xf32, #tpu.memory_space<vmem>>, %arg14: memref<1x32xf32, #tpu.memory_space<vmem>>, %arg15: memref<1x32xf32, #tpu.memory_space<vmem>>, %arg16: memref<1x32xf32, #tpu.memory_space<vmem>>, %arg17: memref<1x32xf32, #tpu.memory_space<vmem>>, %arg18: memref<32x32xf32, #tpu.memory_space<vmem>>, %arg19: memref<1x32xf32, #tpu.memory_space<vmem>>, %arg20: memref<32x64xf32, #tpu.memory_space<vmem>>, %arg21: memref<1x64xf32, #tpu.memory_space<vmem>>, %arg22: memref<32x32xf32, #tpu.memory_space<vmem>>, %arg23: memref<1x32xf32, #tpu.memory_space<vmem>>, %arg24: memref<1x32xf32, #tpu.memory_space<vmem>>, %arg25: memref<1x32xf32, #tpu.memory_space<vmem>>, %arg26: memref<32x128xf32, #tpu.memory_space<vmem>>, %arg27: memref<1x128xf32, #tpu.memory_space<vmem>>, %arg28: memref<128x32xf32, #tpu.memory_space<vmem>>, %arg29: memref<1x32xf32, #tpu.memory_space<vmem>>, %arg30: memref<1x32xf32, #tpu.memory_space<vmem>>, %arg31: memref<1x32xf32, #tpu.memory_space<vmem>>, %arg32: memref<1x8x32xf32, #tpu.memory_space<vmem>>) attributes {dimension_semantics = [#tpu.dimension_semantics<parallel>], iteration_bounds = array<i64: 2>, scalar_prefetch = 0 : i64, scratch_operands = 0 : i64, tpu.core_type = #tpu.core_type<tc>, window_params = [{transform_indices = @transform_0, window_bounds = array<i64: 1, 8, 32>}, {transform_indices = @transform_1, window_bounds = array<i64: 1, 8, 32>}, {transform_indices = @transform_2, window_bounds = array<i64: 1, 16, 32>}, {transform_indices = @transform_3, window_bounds = array<i64: 1, 8, 32>}, {pipeline_mode = #tpu.pipeline_mode<synchronous>, transform_indices = @transform_4, window_bounds = array<i64: 32, 32>}, {pipeline_mode = #tpu.pipeline_mode<synchronous>, transform_indices = @transform_5, window_bounds = array<i64: 1, 32>}, {pipeline_mode = #tpu.pipeline_mode<synchronous>, transform_indices = @transform_6, window_bounds = array<i64: 32, 32>}, {pipeline_mode = #tpu.pipeline_mode<synchronous>, transform_indices = @transform_7, window_bounds = array<i64: 1, 32>}, {pipeline_mode = #tpu.pipeline_mode<synchronous>, transform_indices = @transform_8, window_bounds = array<i64: 32, 64>}, {pipeline_mode = #tpu.pipeline_mode<synchronous>, transform_indices = @transform_9, window_bounds = array<i64: 1, 64>}, {pipeline_mode = #tpu.pipeline_mode<synchronous>, transform_indices = @transform_10, window_bounds = array<i64: 32, 32>}, {pipeline_mode = #tpu.pipeline_mode<synchronous>, transform_indices = @transform_11, window_bounds = array<i64: 1, 32>}, {pipeline_mode = #tpu.pipeline_mode<synchronous>, transform_indices = @transform_12, window_bounds = array<i64: 32, 32>}, {pipeline_mode = #tpu.pipeline_mode<synchronous>, transform_indices = @transform_13, window_bounds = array<i64: 1, 32>}, {pipeline_mode = #tpu.pipeline_mode<synchronous>, transform_indices = @transform_14, window_bounds = array<i64: 1, 32>}, {pipeline_mode = #tpu.pipeline_mode<synchronous>, transform_indices = @transform_15, window_bounds = array<i64: 1, 32>}, {pipeline_mode = #tpu.pipeline_mode<synchronous>, transform_indices = @transform_16, window_bounds = array<i64: 1, 32>}, {pipeline_mode = #tpu.pipeline_mode<synchronous>, transform_indices = @transform_17, window_bounds = array<i64: 32, 32>}, {pipeline_mode = #tpu.pipeline_mode<synchronous>, transform_indices = @transform_18, window_bounds = array<i64: 1, 32>}, {pipeline_mode = #tpu.pipeline_mode<synchronous>, transform_indices = @transform_19, window_bounds = array<i64: 32, 64>}, {pipeline_mode = #tpu.pipeline_mode<synchronous>, transform_indices = @transform_20, window_bounds = array<i64: 1, 64>}, {pipeline_mode = #tpu.pipeline_mode<synchronous>, transform_indices = @transform_21, window_bounds = array<i64: 32, 32>}, {pipeline_mode = #tpu.pipeline_mode<synchronous>, transform_indices = @transform_22, window_bounds = array<i64: 1, 32>}, {pipeline_mode = #tpu.pipeline_mode<synchronous>, transform_indices = @transform_23, window_bounds = array<i64: 1, 32>}, {pipeline_mode = #tpu.pipeline_mode<synchronous>, transform_indices = @transform_24, window_bounds = array<i64: 1, 32>}, {pipeline_mode = #tpu.pipeline_mode<synchronous>, transform_indices = @transform_25, window_bounds = array<i64: 32, 128>}, {pipeline_mode = #tpu.pipeline_mode<synchronous>, transform_indices = @transform_26, window_bounds = array<i64: 1, 128>}, {pipeline_mode = #tpu.pipeline_mode<synchronous>, transform_indices = @transform_27, window_bounds = array<i64: 128, 32>}, {pipeline_mode = #tpu.pipeline_mode<synchronous>, transform_indices = @transform_28, window_bounds = array<i64: 1, 32>}, {pipeline_mode = #tpu.pipeline_mode<synchronous>, transform_indices = @transform_29, window_bounds = array<i64: 1, 32>}, {pipeline_mode = #tpu.pipeline_mode<synchronous>, transform_indices = @transform_30, window_bounds = array<i64: 1, 32>}, {transform_indices = @transform_31, window_bounds = array<i64: 1, 8, 32>}]} {
    %c0 = arith.constant 0 : index
    %c0_0 = arith.constant 0 : index
    %c0_1 = arith.constant 0 : index
    %0 = vector.load %arg1[%c0, %c0_0, %c0_1] : memref<1x8x32xf32, #tpu.memory_space<vmem>>, vector<1x8x32xf32>
    %1 = vector.shape_cast %0 : vector<1x8x32xf32> to vector<8x32xf32>
    %c0_2 = arith.constant 0 : index
    %c0_3 = arith.constant 0 : index
    %c0_4 = arith.constant 0 : index
    %2 = vector.load %arg2[%c0_2, %c0_3, %c0_4] : memref<1x8x32xf32, #tpu.memory_space<vmem>>, vector<1x8x32xf32>
    %3 = vector.shape_cast %2 : vector<1x8x32xf32> to vector<8x32xf32>
    %c0_5 = arith.constant 0 : index
    %c0_6 = arith.constant 0 : index
    %c0_7 = arith.constant 0 : index
    %4 = vector.load %arg3[%c0_5, %c0_6, %c0_7] : memref<1x16x32xf32, #tpu.memory_space<vmem>>, vector<1x16x32xf32>
    %5 = vector.shape_cast %4 : vector<1x16x32xf32> to vector<16x32xf32>
    %c0_8 = arith.constant 0 : index
    %c0_9 = arith.constant 0 : index
    %c0_10 = arith.constant 0 : index
    %6 = vector.load %arg4[%c0_8, %c0_9, %c0_10] : memref<1x8x32xf32, #tpu.memory_space<vmem>>, vector<1x8x32xf32>
    %7 = vector.shape_cast %6 : vector<1x8x32xf32> to vector<8x32xf32>
    %c0_11 = arith.constant 0 : index
    %c0_12 = arith.constant 0 : index
    %8 = vector.load %arg5[%c0_11, %c0_12] : memref<32x32xf32, #tpu.memory_space<vmem>>, vector<32x32xf32>
    %cst = arith.constant dense<0.000000e+00> : vector<8x32xf32>
    %9 = tpu.matmul %1, %8, %cst {dimension_numbers = #tpu.dot_dimension_numbers<[1], [0], [0], [1], [0, 0, 1, 1], [], []>} : vector<8x32xf32>, vector<32x32xf32>, vector<8x32xf32> -> vector<8x32xf32>
    %c0_13 = arith.constant 0 : index
    %c0_14 = arith.constant 0 : index
    %10 = vector.load %arg6[%c0_13, %c0_14] : memref<1x32xf32, #tpu.memory_space<vmem>>, vector<1x32xf32>
    %11 = vector.broadcast %10 : vector<1x32xf32> to vector<8x32xf32>
    %12 = arith.addf %9, %11 : vector<8x32xf32>
    %cst_15 = arith.constant 0.000000e+00 : f32
    %13 = vector.broadcast %cst_15 : f32 to vector<8x32xf32>
    %14 = arith.maximumf %12, %13 : vector<8x32xf32>
    %c0_16 = arith.constant 0 : index
    %c0_17 = arith.constant 0 : index
    %15 = vector.load %arg7[%c0_16, %c0_17] : memref<32x32xf32, #tpu.memory_space<vmem>>, vector<32x32xf32>
    %cst_18 = arith.constant dense<0.000000e+00> : vector<8x32xf32>
    %16 = tpu.matmul %14, %15, %cst_18 {dimension_numbers = #tpu.dot_dimension_numbers<[1], [0], [0], [1], [0, 0, 1, 1], [], []>} : vector<8x32xf32>, vector<32x32xf32>, vector<8x32xf32> -> vector<8x32xf32>
    %c0_19 = arith.constant 0 : index
    %c0_20 = arith.constant 0 : index
    %17 = vector.load %arg8[%c0_19, %c0_20] : memref<1x32xf32, #tpu.memory_space<vmem>>, vector<1x32xf32>
    %18 = vector.broadcast %17 : vector<1x32xf32> to vector<8x32xf32>
    %19 = arith.addf %16, %18 : vector<8x32xf32>
    %20 = arith.addf %1, %3 : vector<8x32xf32>
    %c0_21 = arith.constant 0 : index
    %c0_22 = arith.constant 0 : index
    %21 = vector.load %arg9[%c0_21, %c0_22] : memref<32x64xf32, #tpu.memory_space<vmem>>, vector<32x64xf32>
    %cst_23 = arith.constant dense<0.000000e+00> : vector<8x64xf32>
    %22 = tpu.matmul %20, %21, %cst_23 {dimension_numbers = #tpu.dot_dimension_numbers<[1], [0], [0], [1], [0, 0, 1, 1], [], []>} : vector<8x32xf32>, vector<32x64xf32>, vector<8x64xf32> -> vector<8x64xf32>
    %c0_24 = arith.constant 0 : index
    %c0_25 = arith.constant 0 : index
    %23 = vector.load %arg10[%c0_24, %c0_25] : memref<1x64xf32, #tpu.memory_space<vmem>>, vector<1x64xf32>
    %24 = vector.broadcast %23 : vector<1x64xf32> to vector<8x64xf32>
    %25 = arith.addf %22, %24 : vector<8x64xf32>
    %26 = vector.extract_strided_slice %25 {offsets = [0, 0], sizes = [8, 32], strides = [1, 1]} : vector<8x64xf32> to vector<8x32xf32>
    %27 = vector.extract_strided_slice %25 {offsets = [0, 32], sizes = [8, 32], strides = [1, 1]} : vector<8x64xf32> to vector<8x32xf32>
    %c0_26 = arith.constant 0 : index
    %c0_27 = arith.constant 0 : index
    %28 = vector.load %arg11[%c0_26, %c0_27] : memref<32x32xf32, #tpu.memory_space<vmem>>, vector<32x32xf32>
    %cst_28 = arith.constant dense<0.000000e+00> : vector<8x32xf32>
    %29 = tpu.matmul %1, %28, %cst_28 {dimension_numbers = #tpu.dot_dimension_numbers<[1], [0], [0], [1], [0, 0, 1, 1], [], []>} : vector<8x32xf32>, vector<32x32xf32>, vector<8x32xf32> -> vector<8x32xf32>
    %c0_29 = arith.constant 0 : index
    %c0_30 = arith.constant 0 : index
    %30 = vector.load %arg12[%c0_29, %c0_30] : memref<1x32xf32, #tpu.memory_space<vmem>>, vector<1x32xf32>
    %31 = vector.broadcast %30 : vector<1x32xf32> to vector<8x32xf32>
    %32 = arith.addf %29, %31 : vector<8x32xf32>
    %c0_31 = arith.constant 0 : index
    %c0_32 = arith.constant 0 : index
    %33 = vector.load %arg13[%c0_31, %c0_32] : memref<32x32xf32, #tpu.memory_space<vmem>>, vector<32x32xf32>
    %c0_33 = arith.constant 0 : index
    %c0_34 = arith.constant 0 : index
    %34 = vector.load %arg14[%c0_33, %c0_34] : memref<1x32xf32, #tpu.memory_space<vmem>>, vector<1x32xf32>
    %35 = vector.extract_strided_slice %26 {offsets = [0, 0], sizes = [8, 8], strides = [1, 1]} : vector<8x32xf32> to vector<8x8xf32>
    %cst_35 = arith.constant 0.353553385 : f32
    %36 = vector.broadcast %cst_35 : f32 to vector<8x8xf32>
    %37 = arith.mulf %35, %36 : vector<8x8xf32>
    %38 = vector.extract_strided_slice %27 {offsets = [0, 0], sizes = [8, 8], strides = [1, 1]} : vector<8x32xf32> to vector<8x8xf32>
    %39 = vector.extract_strided_slice %32 {offsets = [0, 0], sizes = [8, 8], strides = [1, 1]} : vector<8x32xf32> to vector<8x8xf32>
    %cst_36 = arith.constant dense<0.000000e+00> : vector<8x8xf32>
    %40 = tpu.matmul %37, %38, %cst_36 {dimension_numbers = #tpu.dot_dimension_numbers<[1], [1], [0], [0], [0, 0, 1, 0], [], []>} : vector<8x8xf32>, vector<8x8xf32>, vector<8x8xf32> -> vector<8x8xf32>
    %cst_37 = arith.constant dense<0xFF800000> : vector<8xf32>
    %41 = vector.multi_reduction <maximumf>, %40, %cst_37 [1] : vector<8x8xf32> to vector<8xf32>
    %42 = vector.shape_cast %41 : vector<8xf32> to vector<8x1xf32>
    %43 = vector.broadcast %42 : vector<8x1xf32> to vector<8x8xf32>
    %44 = arith.subf %40, %43 : vector<8x8xf32>
    %45 = math.exp %44 : vector<8x8xf32>
    %cst_38 = arith.constant dense<0.000000e+00> : vector<8xf32>
    %46 = vector.multi_reduction <add>, %45, %cst_38 [1] : vector<8x8xf32> to vector<8xf32>
    %47 = vector.shape_cast %46 : vector<8xf32> to vector<8x1xf32>
    %48 = tpu.reciprocal %47 {approx = true} : vector<8x1xf32> -> vector<8x1xf32>
    %49 = vector.broadcast %48 : vector<8x1xf32> to vector<8x8xf32>
    %50 = arith.mulf %45, %49 : vector<8x8xf32>
    %cst_39 = arith.constant dense<0.000000e+00> : vector<8x8xf32>
    %51 = tpu.matmul %50, %39, %cst_39 {dimension_numbers = #tpu.dot_dimension_numbers<[1], [0], [0], [1], [0, 0, 1, 1], [], []>} : vector<8x8xf32>, vector<8x8xf32>, vector<8x8xf32> -> vector<8x8xf32>
    %52 = vector.extract_strided_slice %33 {offsets = [0, 0], sizes = [8, 32], strides = [1, 1]} : vector<32x32xf32> to vector<8x32xf32>
    %cst_40 = arith.constant dense<0.000000e+00> : vector<8x32xf32>
    %53 = tpu.matmul %51, %52, %cst_40 {dimension_numbers = #tpu.dot_dimension_numbers<[1], [0], [0], [1], [0, 0, 1, 1], [], []>} : vector<8x8xf32>, vector<8x32xf32>, vector<8x32xf32> -> vector<8x32xf32>
    %54 = vector.extract_strided_slice %26 {offsets = [0, 8], sizes = [8, 8], strides = [1, 1]} : vector<8x32xf32> to vector<8x8xf32>
    %cst_41 = arith.constant 0.353553385 : f32
    %55 = vector.broadcast %cst_41 : f32 to vector<8x8xf32>
    %56 = arith.mulf %54, %55 : vector<8x8xf32>
    %57 = vector.extract_strided_slice %27 {offsets = [0, 8], sizes = [8, 8], strides = [1, 1]} : vector<8x32xf32> to vector<8x8xf32>
    %58 = vector.extract_strided_slice %32 {offsets = [0, 8], sizes = [8, 8], strides = [1, 1]} : vector<8x32xf32> to vector<8x8xf32>
    %cst_42 = arith.constant dense<0.000000e+00> : vector<8x8xf32>
    %59 = tpu.matmul %56, %57, %cst_42 {dimension_numbers = #tpu.dot_dimension_numbers<[1], [1], [0], [0], [0, 0, 1, 0], [], []>} : vector<8x8xf32>, vector<8x8xf32>, vector<8x8xf32> -> vector<8x8xf32>
    %cst_43 = arith.constant dense<0xFF800000> : vector<8xf32>
    %60 = vector.multi_reduction <maximumf>, %59, %cst_43 [1] : vector<8x8xf32> to vector<8xf32>
    %61 = vector.shape_cast %60 : vector<8xf32> to vector<8x1xf32>
    %62 = vector.broadcast %61 : vector<8x1xf32> to vector<8x8xf32>
    %63 = arith.subf %59, %62 : vector<8x8xf32>
    %64 = math.exp %63 : vector<8x8xf32>
    %cst_44 = arith.constant dense<0.000000e+00> : vector<8xf32>
    %65 = vector.multi_reduction <add>, %64, %cst_44 [1] : vector<8x8xf32> to vector<8xf32>
    %66 = vector.shape_cast %65 : vector<8xf32> to vector<8x1xf32>
    %67 = tpu.reciprocal %66 {approx = true} : vector<8x1xf32> -> vector<8x1xf32>
    %68 = vector.broadcast %67 : vector<8x1xf32> to vector<8x8xf32>
    %69 = arith.mulf %64, %68 : vector<8x8xf32>
    %cst_45 = arith.constant dense<0.000000e+00> : vector<8x8xf32>
    %70 = tpu.matmul %69, %58, %cst_45 {dimension_numbers = #tpu.dot_dimension_numbers<[1], [0], [0], [1], [0, 0, 1, 1], [], []>} : vector<8x8xf32>, vector<8x8xf32>, vector<8x8xf32> -> vector<8x8xf32>
    %71 = vector.extract_strided_slice %33 {offsets = [8, 0], sizes = [8, 32], strides = [1, 1]} : vector<32x32xf32> to vector<8x32xf32>
    %cst_46 = arith.constant dense<0.000000e+00> : vector<8x32xf32>
    %72 = tpu.matmul %70, %71, %cst_46 {dimension_numbers = #tpu.dot_dimension_numbers<[1], [0], [0], [1], [0, 0, 1, 1], [], []>} : vector<8x8xf32>, vector<8x32xf32>, vector<8x32xf32> -> vector<8x32xf32>
    %73 = arith.addf %53, %72 : vector<8x32xf32>
    %74 = vector.extract_strided_slice %26 {offsets = [0, 16], sizes = [8, 8], strides = [1, 1]} : vector<8x32xf32> to vector<8x8xf32>
    %cst_47 = arith.constant 0.353553385 : f32
    %75 = vector.broadcast %cst_47 : f32 to vector<8x8xf32>
    %76 = arith.mulf %74, %75 : vector<8x8xf32>
    %77 = vector.extract_strided_slice %27 {offsets = [0, 16], sizes = [8, 8], strides = [1, 1]} : vector<8x32xf32> to vector<8x8xf32>
    %78 = vector.extract_strided_slice %32 {offsets = [0, 16], sizes = [8, 8], strides = [1, 1]} : vector<8x32xf32> to vector<8x8xf32>
    %cst_48 = arith.constant dense<0.000000e+00> : vector<8x8xf32>
    %79 = tpu.matmul %76, %77, %cst_48 {dimension_numbers = #tpu.dot_dimension_numbers<[1], [1], [0], [0], [0, 0, 1, 0], [], []>} : vector<8x8xf32>, vector<8x8xf32>, vector<8x8xf32> -> vector<8x8xf32>
    %cst_49 = arith.constant dense<0xFF800000> : vector<8xf32>
    %80 = vector.multi_reduction <maximumf>, %79, %cst_49 [1] : vector<8x8xf32> to vector<8xf32>
    %81 = vector.shape_cast %80 : vector<8xf32> to vector<8x1xf32>
    %82 = vector.broadcast %81 : vector<8x1xf32> to vector<8x8xf32>
    %83 = arith.subf %79, %82 : vector<8x8xf32>
    %84 = math.exp %83 : vector<8x8xf32>
    %cst_50 = arith.constant dense<0.000000e+00> : vector<8xf32>
    %85 = vector.multi_reduction <add>, %84, %cst_50 [1] : vector<8x8xf32> to vector<8xf32>
    %86 = vector.shape_cast %85 : vector<8xf32> to vector<8x1xf32>
    %87 = tpu.reciprocal %86 {approx = true} : vector<8x1xf32> -> vector<8x1xf32>
    %88 = vector.broadcast %87 : vector<8x1xf32> to vector<8x8xf32>
    %89 = arith.mulf %84, %88 : vector<8x8xf32>
    %cst_51 = arith.constant dense<0.000000e+00> : vector<8x8xf32>
    %90 = tpu.matmul %89, %78, %cst_51 {dimension_numbers = #tpu.dot_dimension_numbers<[1], [0], [0], [1], [0, 0, 1, 1], [], []>} : vector<8x8xf32>, vector<8x8xf32>, vector<8x8xf32> -> vector<8x8xf32>
    %91 = vector.extract_strided_slice %33 {offsets = [16, 0], sizes = [8, 32], strides = [1, 1]} : vector<32x32xf32> to vector<8x32xf32>
    %cst_52 = arith.constant dense<0.000000e+00> : vector<8x32xf32>
    %92 = tpu.matmul %90, %91, %cst_52 {dimension_numbers = #tpu.dot_dimension_numbers<[1], [0], [0], [1], [0, 0, 1, 1], [], []>} : vector<8x8xf32>, vector<8x32xf32>, vector<8x32xf32> -> vector<8x32xf32>
    %93 = arith.addf %73, %92 : vector<8x32xf32>
    %94 = vector.extract_strided_slice %26 {offsets = [0, 24], sizes = [8, 8], strides = [1, 1]} : vector<8x32xf32> to vector<8x8xf32>
    %cst_53 = arith.constant 0.353553385 : f32
    %95 = vector.broadcast %cst_53 : f32 to vector<8x8xf32>
    %96 = arith.mulf %94, %95 : vector<8x8xf32>
    %97 = vector.extract_strided_slice %27 {offsets = [0, 24], sizes = [8, 8], strides = [1, 1]} : vector<8x32xf32> to vector<8x8xf32>
    %98 = vector.extract_strided_slice %32 {offsets = [0, 24], sizes = [8, 8], strides = [1, 1]} : vector<8x32xf32> to vector<8x8xf32>
    %cst_54 = arith.constant dense<0.000000e+00> : vector<8x8xf32>
    %99 = tpu.matmul %96, %97, %cst_54 {dimension_numbers = #tpu.dot_dimension_numbers<[1], [1], [0], [0], [0, 0, 1, 0], [], []>} : vector<8x8xf32>, vector<8x8xf32>, vector<8x8xf32> -> vector<8x8xf32>
    %cst_55 = arith.constant dense<0xFF800000> : vector<8xf32>
    %100 = vector.multi_reduction <maximumf>, %99, %cst_55 [1] : vector<8x8xf32> to vector<8xf32>
    %101 = vector.shape_cast %100 : vector<8xf32> to vector<8x1xf32>
    %102 = vector.broadcast %101 : vector<8x1xf32> to vector<8x8xf32>
    %103 = arith.subf %99, %102 : vector<8x8xf32>
    %104 = math.exp %103 : vector<8x8xf32>
    %cst_56 = arith.constant dense<0.000000e+00> : vector<8xf32>
    %105 = vector.multi_reduction <add>, %104, %cst_56 [1] : vector<8x8xf32> to vector<8xf32>
    %106 = vector.shape_cast %105 : vector<8xf32> to vector<8x1xf32>
    %107 = tpu.reciprocal %106 {approx = true} : vector<8x1xf32> -> vector<8x1xf32>
    %108 = vector.broadcast %107 : vector<8x1xf32> to vector<8x8xf32>
    %109 = arith.mulf %104, %108 : vector<8x8xf32>
    %cst_57 = arith.constant dense<0.000000e+00> : vector<8x8xf32>
    %110 = tpu.matmul %109, %98, %cst_57 {dimension_numbers = #tpu.dot_dimension_numbers<[1], [0], [0], [1], [0, 0, 1, 1], [], []>} : vector<8x8xf32>, vector<8x8xf32>, vector<8x8xf32> -> vector<8x8xf32>
    %111 = vector.extract_strided_slice %33 {offsets = [24, 0], sizes = [8, 32], strides = [1, 1]} : vector<32x32xf32> to vector<8x32xf32>
    %cst_58 = arith.constant dense<0.000000e+00> : vector<8x32xf32>
    %112 = tpu.matmul %110, %111, %cst_58 {dimension_numbers = #tpu.dot_dimension_numbers<[1], [0], [0], [1], [0, 0, 1, 1], [], []>} : vector<8x8xf32>, vector<8x32xf32>, vector<8x32xf32> -> vector<8x32xf32>
    %113 = arith.addf %93, %112 : vector<8x32xf32>
    %114 = vector.broadcast %34 : vector<1x32xf32> to vector<8x32xf32>
    %115 = arith.addf %113, %114 : vector<8x32xf32>
    %116 = arith.addf %1, %115 : vector<8x32xf32>
    %c0_59 = arith.constant 0 : index
    %c0_60 = arith.constant 0 : index
    %117 = vector.load %arg15[%c0_59, %c0_60] : memref<1x32xf32, #tpu.memory_space<vmem>>, vector<1x32xf32>
    %c0_61 = arith.constant 0 : index
    %c0_62 = arith.constant 0 : index
    %118 = vector.load %arg16[%c0_61, %c0_62] : memref<1x32xf32, #tpu.memory_space<vmem>>, vector<1x32xf32>
    %cst_63 = arith.constant dense<0.000000e+00> : vector<8xf32>
    %119 = vector.multi_reduction <add>, %116, %cst_63 [1] : vector<8x32xf32> to vector<8xf32>
    %120 = vector.shape_cast %119 : vector<8xf32> to vector<8x1xf32>
    %cst_64 = arith.constant 3.200000e+01 : f32
    %121 = vector.broadcast %cst_64 : f32 to vector<8x1xf32>
    %122 = arith.divf %120, %121 : vector<8x1xf32>
    %123 = vector.broadcast %122 : vector<8x1xf32> to vector<8x32xf32>
    %124 = arith.subf %116, %123 : vector<8x32xf32>
    %125 = arith.mulf %124, %124 : vector<8x32xf32>
    %cst_65 = arith.constant dense<0.000000e+00> : vector<8xf32>
    %126 = vector.multi_reduction <add>, %125, %cst_65 [1] : vector<8x32xf32> to vector<8xf32>
    %127 = vector.shape_cast %126 : vector<8xf32> to vector<8x1xf32>
    %cst_66 = arith.constant 3.200000e+01 : f32
    %128 = vector.broadcast %cst_66 : f32 to vector<8x1xf32>
    %129 = arith.divf %127, %128 : vector<8x1xf32>
    %130 = vector.broadcast %122 : vector<8x1xf32> to vector<8x32xf32>
    %131 = arith.subf %116, %130 : vector<8x32xf32>
    %cst_67 = arith.constant 9.99999974E-6 : f32
    %132 = vector.broadcast %cst_67 : f32 to vector<8x1xf32>
    %133 = arith.addf %129, %132 : vector<8x1xf32>
    %134 = math.rsqrt %133 : vector<8x1xf32>
    %135 = vector.broadcast %134 : vector<8x1xf32> to vector<8x32xf32>
    %136 = arith.mulf %131, %135 : vector<8x32xf32>
    %137 = vector.broadcast %117 : vector<1x32xf32> to vector<8x32xf32>
    %138 = arith.mulf %136, %137 : vector<8x32xf32>
    %139 = vector.broadcast %118 : vector<1x32xf32> to vector<8x32xf32>
    %140 = arith.addf %138, %139 : vector<8x32xf32>
    %c0_68 = arith.constant 0 : index
    %c0_69 = arith.constant 0 : index
    %141 = vector.load %arg17[%c0_68, %c0_69] : memref<1x32xf32, #tpu.memory_space<vmem>>, vector<1x32xf32>
    %142 = vector.broadcast %141 : vector<1x32xf32> to vector<8x32xf32>
    %143 = arith.mulf %142, %7 : vector<8x32xf32>
    %144 = arith.mulf %19, %143 : vector<8x32xf32>
    %145 = arith.addf %140, %144 : vector<8x32xf32>
    %c0_70 = arith.constant 0 : index
    %c0_71 = arith.constant 0 : index
    %146 = vector.load %arg18[%c0_70, %c0_71] : memref<32x32xf32, #tpu.memory_space<vmem>>, vector<32x32xf32>
    %cst_72 = arith.constant dense<0.000000e+00> : vector<8x32xf32>
    %147 = tpu.matmul %145, %146, %cst_72 {dimension_numbers = #tpu.dot_dimension_numbers<[1], [0], [0], [1], [0, 0, 1, 1], [], []>} : vector<8x32xf32>, vector<32x32xf32>, vector<8x32xf32> -> vector<8x32xf32>
    %c0_73 = arith.constant 0 : index
    %c0_74 = arith.constant 0 : index
    %148 = vector.load %arg19[%c0_73, %c0_74] : memref<1x32xf32, #tpu.memory_space<vmem>>, vector<1x32xf32>
    %149 = vector.broadcast %148 : vector<1x32xf32> to vector<8x32xf32>
    %150 = arith.addf %147, %149 : vector<8x32xf32>
    %c0_75 = arith.constant 0 : index
    %c0_76 = arith.constant 0 : index
    %151 = vector.load %arg20[%c0_75, %c0_76] : memref<32x64xf32, #tpu.memory_space<vmem>>, vector<32x64xf32>
    %cst_77 = arith.constant dense<0.000000e+00> : vector<16x64xf32>
    %152 = tpu.matmul %5, %151, %cst_77 {dimension_numbers = #tpu.dot_dimension_numbers<[1], [0], [0], [1], [0, 0, 1, 1], [], []>} : vector<16x32xf32>, vector<32x64xf32>, vector<16x64xf32> -> vector<16x64xf32>
    %c0_78 = arith.constant 0 : index
    %c0_79 = arith.constant 0 : index
    %153 = vector.load %arg21[%c0_78, %c0_79] : memref<1x64xf32, #tpu.memory_space<vmem>>, vector<1x64xf32>
    %154 = vector.broadcast %153 : vector<1x64xf32> to vector<16x64xf32>
    %155 = arith.addf %152, %154 : vector<16x64xf32>
    %156 = vector.extract_strided_slice %155 {offsets = [0, 0], sizes = [16, 32], strides = [1, 1]} : vector<16x64xf32> to vector<16x32xf32>
    %157 = vector.extract_strided_slice %155 {offsets = [0, 32], sizes = [16, 32], strides = [1, 1]} : vector<16x64xf32> to vector<16x32xf32>
    %c0_80 = arith.constant 0 : index
    %c0_81 = arith.constant 0 : index
    %158 = vector.load %arg22[%c0_80, %c0_81] : memref<32x32xf32, #tpu.memory_space<vmem>>, vector<32x32xf32>
    %c0_82 = arith.constant 0 : index
    %c0_83 = arith.constant 0 : index
    %159 = vector.load %arg23[%c0_82, %c0_83] : memref<1x32xf32, #tpu.memory_space<vmem>>, vector<1x32xf32>
    %160 = vector.extract_strided_slice %150 {offsets = [0, 0], sizes = [8, 8], strides = [1, 1]} : vector<8x32xf32> to vector<8x8xf32>
    %cst_84 = arith.constant 0.353553385 : f32
    %161 = vector.broadcast %cst_84 : f32 to vector<8x8xf32>
    %162 = arith.mulf %160, %161 : vector<8x8xf32>
    %163 = vector.extract_strided_slice %156 {offsets = [0, 0], sizes = [16, 8], strides = [1, 1]} : vector<16x32xf32> to vector<16x8xf32>
    %164 = vector.extract_strided_slice %157 {offsets = [0, 0], sizes = [16, 8], strides = [1, 1]} : vector<16x32xf32> to vector<16x8xf32>
    %cst_85 = arith.constant dense<0.000000e+00> : vector<8x16xf32>
    %165 = tpu.matmul %162, %163, %cst_85 {dimension_numbers = #tpu.dot_dimension_numbers<[1], [1], [0], [0], [0, 0, 1, 0], [], []>} : vector<8x8xf32>, vector<16x8xf32>, vector<8x16xf32> -> vector<8x16xf32>
    %cst_86 = arith.constant dense<0xFF800000> : vector<8xf32>
    %166 = vector.multi_reduction <maximumf>, %165, %cst_86 [1] : vector<8x16xf32> to vector<8xf32>
    %167 = vector.shape_cast %166 : vector<8xf32> to vector<8x1xf32>
    %168 = vector.broadcast %167 : vector<8x1xf32> to vector<8x16xf32>
    %169 = arith.subf %165, %168 : vector<8x16xf32>
    %170 = math.exp %169 : vector<8x16xf32>
    %cst_87 = arith.constant dense<0.000000e+00> : vector<8xf32>
    %171 = vector.multi_reduction <add>, %170, %cst_87 [1] : vector<8x16xf32> to vector<8xf32>
    %172 = vector.shape_cast %171 : vector<8xf32> to vector<8x1xf32>
    %173 = tpu.reciprocal %172 {approx = true} : vector<8x1xf32> -> vector<8x1xf32>
    %174 = vector.broadcast %173 : vector<8x1xf32> to vector<8x16xf32>
    %175 = arith.mulf %170, %174 : vector<8x16xf32>
    %cst_88 = arith.constant dense<0.000000e+00> : vector<8x8xf32>
    %176 = tpu.matmul %175, %164, %cst_88 {dimension_numbers = #tpu.dot_dimension_numbers<[1], [0], [0], [1], [0, 0, 1, 1], [], []>} : vector<8x16xf32>, vector<16x8xf32>, vector<8x8xf32> -> vector<8x8xf32>
    %177 = vector.extract_strided_slice %158 {offsets = [0, 0], sizes = [8, 32], strides = [1, 1]} : vector<32x32xf32> to vector<8x32xf32>
    %cst_89 = arith.constant dense<0.000000e+00> : vector<8x32xf32>
    %178 = tpu.matmul %176, %177, %cst_89 {dimension_numbers = #tpu.dot_dimension_numbers<[1], [0], [0], [1], [0, 0, 1, 1], [], []>} : vector<8x8xf32>, vector<8x32xf32>, vector<8x32xf32> -> vector<8x32xf32>
    %179 = vector.extract_strided_slice %150 {offsets = [0, 8], sizes = [8, 8], strides = [1, 1]} : vector<8x32xf32> to vector<8x8xf32>
    %cst_90 = arith.constant 0.353553385 : f32
    %180 = vector.broadcast %cst_90 : f32 to vector<8x8xf32>
    %181 = arith.mulf %179, %180 : vector<8x8xf32>
    %182 = vector.extract_strided_slice %156 {offsets = [0, 8], sizes = [16, 8], strides = [1, 1]} : vector<16x32xf32> to vector<16x8xf32>
    %183 = vector.extract_strided_slice %157 {offsets = [0, 8], sizes = [16, 8], strides = [1, 1]} : vector<16x32xf32> to vector<16x8xf32>
    %cst_91 = arith.constant dense<0.000000e+00> : vector<8x16xf32>
    %184 = tpu.matmul %181, %182, %cst_91 {dimension_numbers = #tpu.dot_dimension_numbers<[1], [1], [0], [0], [0, 0, 1, 0], [], []>} : vector<8x8xf32>, vector<16x8xf32>, vector<8x16xf32> -> vector<8x16xf32>
    %cst_92 = arith.constant dense<0xFF800000> : vector<8xf32>
    %185 = vector.multi_reduction <maximumf>, %184, %cst_92 [1] : vector<8x16xf32> to vector<8xf32>
    %186 = vector.shape_cast %185 : vector<8xf32> to vector<8x1xf32>
    %187 = vector.broadcast %186 : vector<8x1xf32> to vector<8x16xf32>
    %188 = arith.subf %184, %187 : vector<8x16xf32>
    %189 = math.exp %188 : vector<8x16xf32>
    %cst_93 = arith.constant dense<0.000000e+00> : vector<8xf32>
    %190 = vector.multi_reduction <add>, %189, %cst_93 [1] : vector<8x16xf32> to vector<8xf32>
    %191 = vector.shape_cast %190 : vector<8xf32> to vector<8x1xf32>
    %192 = tpu.reciprocal %191 {approx = true} : vector<8x1xf32> -> vector<8x1xf32>
    %193 = vector.broadcast %192 : vector<8x1xf32> to vector<8x16xf32>
    %194 = arith.mulf %189, %193 : vector<8x16xf32>
    %cst_94 = arith.constant dense<0.000000e+00> : vector<8x8xf32>
    %195 = tpu.matmul %194, %183, %cst_94 {dimension_numbers = #tpu.dot_dimension_numbers<[1], [0], [0], [1], [0, 0, 1, 1], [], []>} : vector<8x16xf32>, vector<16x8xf32>, vector<8x8xf32> -> vector<8x8xf32>
    %196 = vector.extract_strided_slice %158 {offsets = [8, 0], sizes = [8, 32], strides = [1, 1]} : vector<32x32xf32> to vector<8x32xf32>
    %cst_95 = arith.constant dense<0.000000e+00> : vector<8x32xf32>
    %197 = tpu.matmul %195, %196, %cst_95 {dimension_numbers = #tpu.dot_dimension_numbers<[1], [0], [0], [1], [0, 0, 1, 1], [], []>} : vector<8x8xf32>, vector<8x32xf32>, vector<8x32xf32> -> vector<8x32xf32>
    %198 = arith.addf %178, %197 : vector<8x32xf32>
    %199 = vector.extract_strided_slice %150 {offsets = [0, 16], sizes = [8, 8], strides = [1, 1]} : vector<8x32xf32> to vector<8x8xf32>
    %cst_96 = arith.constant 0.353553385 : f32
    %200 = vector.broadcast %cst_96 : f32 to vector<8x8xf32>
    %201 = arith.mulf %199, %200 : vector<8x8xf32>
    %202 = vector.extract_strided_slice %156 {offsets = [0, 16], sizes = [16, 8], strides = [1, 1]} : vector<16x32xf32> to vector<16x8xf32>
    %203 = vector.extract_strided_slice %157 {offsets = [0, 16], sizes = [16, 8], strides = [1, 1]} : vector<16x32xf32> to vector<16x8xf32>
    %cst_97 = arith.constant dense<0.000000e+00> : vector<8x16xf32>
    %204 = tpu.matmul %201, %202, %cst_97 {dimension_numbers = #tpu.dot_dimension_numbers<[1], [1], [0], [0], [0, 0, 1, 0], [], []>} : vector<8x8xf32>, vector<16x8xf32>, vector<8x16xf32> -> vector<8x16xf32>
    %cst_98 = arith.constant dense<0xFF800000> : vector<8xf32>
    %205 = vector.multi_reduction <maximumf>, %204, %cst_98 [1] : vector<8x16xf32> to vector<8xf32>
    %206 = vector.shape_cast %205 : vector<8xf32> to vector<8x1xf32>
    %207 = vector.broadcast %206 : vector<8x1xf32> to vector<8x16xf32>
    %208 = arith.subf %204, %207 : vector<8x16xf32>
    %209 = math.exp %208 : vector<8x16xf32>
    %cst_99 = arith.constant dense<0.000000e+00> : vector<8xf32>
    %210 = vector.multi_reduction <add>, %209, %cst_99 [1] : vector<8x16xf32> to vector<8xf32>
    %211 = vector.shape_cast %210 : vector<8xf32> to vector<8x1xf32>
    %212 = tpu.reciprocal %211 {approx = true} : vector<8x1xf32> -> vector<8x1xf32>
    %213 = vector.broadcast %212 : vector<8x1xf32> to vector<8x16xf32>
    %214 = arith.mulf %209, %213 : vector<8x16xf32>
    %cst_100 = arith.constant dense<0.000000e+00> : vector<8x8xf32>
    %215 = tpu.matmul %214, %203, %cst_100 {dimension_numbers = #tpu.dot_dimension_numbers<[1], [0], [0], [1], [0, 0, 1, 1], [], []>} : vector<8x16xf32>, vector<16x8xf32>, vector<8x8xf32> -> vector<8x8xf32>
    %216 = vector.extract_strided_slice %158 {offsets = [16, 0], sizes = [8, 32], strides = [1, 1]} : vector<32x32xf32> to vector<8x32xf32>
    %cst_101 = arith.constant dense<0.000000e+00> : vector<8x32xf32>
    %217 = tpu.matmul %215, %216, %cst_101 {dimension_numbers = #tpu.dot_dimension_numbers<[1], [0], [0], [1], [0, 0, 1, 1], [], []>} : vector<8x8xf32>, vector<8x32xf32>, vector<8x32xf32> -> vector<8x32xf32>
    %218 = arith.addf %198, %217 : vector<8x32xf32>
    %219 = vector.extract_strided_slice %150 {offsets = [0, 24], sizes = [8, 8], strides = [1, 1]} : vector<8x32xf32> to vector<8x8xf32>
    %cst_102 = arith.constant 0.353553385 : f32
    %220 = vector.broadcast %cst_102 : f32 to vector<8x8xf32>
    %221 = arith.mulf %219, %220 : vector<8x8xf32>
    %222 = vector.extract_strided_slice %156 {offsets = [0, 24], sizes = [16, 8], strides = [1, 1]} : vector<16x32xf32> to vector<16x8xf32>
    %223 = vector.extract_strided_slice %157 {offsets = [0, 24], sizes = [16, 8], strides = [1, 1]} : vector<16x32xf32> to vector<16x8xf32>
    %cst_103 = arith.constant dense<0.000000e+00> : vector<8x16xf32>
    %224 = tpu.matmul %221, %222, %cst_103 {dimension_numbers = #tpu.dot_dimension_numbers<[1], [1], [0], [0], [0, 0, 1, 0], [], []>} : vector<8x8xf32>, vector<16x8xf32>, vector<8x16xf32> -> vector<8x16xf32>
    %cst_104 = arith.constant dense<0xFF800000> : vector<8xf32>
    %225 = vector.multi_reduction <maximumf>, %224, %cst_104 [1] : vector<8x16xf32> to vector<8xf32>
    %226 = vector.shape_cast %225 : vector<8xf32> to vector<8x1xf32>
    %227 = vector.broadcast %226 : vector<8x1xf32> to vector<8x16xf32>
    %228 = arith.subf %224, %227 : vector<8x16xf32>
    %229 = math.exp %228 : vector<8x16xf32>
    %cst_105 = arith.constant dense<0.000000e+00> : vector<8xf32>
    %230 = vector.multi_reduction <add>, %229, %cst_105 [1] : vector<8x16xf32> to vector<8xf32>
    %231 = vector.shape_cast %230 : vector<8xf32> to vector<8x1xf32>
    %232 = tpu.reciprocal %231 {approx = true} : vector<8x1xf32> -> vector<8x1xf32>
    %233 = vector.broadcast %232 : vector<8x1xf32> to vector<8x16xf32>
    %234 = arith.mulf %229, %233 : vector<8x16xf32>
    %cst_106 = arith.constant dense<0.000000e+00> : vector<8x8xf32>
    %235 = tpu.matmul %234, %223, %cst_106 {dimension_numbers = #tpu.dot_dimension_numbers<[1], [0], [0], [1], [0, 0, 1, 1], [], []>} : vector<8x16xf32>, vector<16x8xf32>, vector<8x8xf32> -> vector<8x8xf32>
    %236 = vector.extract_strided_slice %158 {offsets = [24, 0], sizes = [8, 32], strides = [1, 1]} : vector<32x32xf32> to vector<8x32xf32>
    %cst_107 = arith.constant dense<0.000000e+00> : vector<8x32xf32>
    %237 = tpu.matmul %235, %236, %cst_107 {dimension_numbers = #tpu.dot_dimension_numbers<[1], [0], [0], [1], [0, 0, 1, 1], [], []>} : vector<8x8xf32>, vector<8x32xf32>, vector<8x32xf32> -> vector<8x32xf32>
    %238 = arith.addf %218, %237 : vector<8x32xf32>
    %239 = vector.broadcast %159 : vector<1x32xf32> to vector<8x32xf32>
    %240 = arith.addf %238, %239 : vector<8x32xf32>
    %241 = arith.addf %140, %240 : vector<8x32xf32>
    %c0_108 = arith.constant 0 : index
    %c0_109 = arith.constant 0 : index
    %242 = vector.load %arg24[%c0_108, %c0_109] : memref<1x32xf32, #tpu.memory_space<vmem>>, vector<1x32xf32>
    %c0_110 = arith.constant 0 : index
    %c0_111 = arith.constant 0 : index
    %243 = vector.load %arg25[%c0_110, %c0_111] : memref<1x32xf32, #tpu.memory_space<vmem>>, vector<1x32xf32>
    %cst_112 = arith.constant dense<0.000000e+00> : vector<8xf32>
    %244 = vector.multi_reduction <add>, %241, %cst_112 [1] : vector<8x32xf32> to vector<8xf32>
    %245 = vector.shape_cast %244 : vector<8xf32> to vector<8x1xf32>
    %cst_113 = arith.constant 3.200000e+01 : f32
    %246 = vector.broadcast %cst_113 : f32 to vector<8x1xf32>
    %247 = arith.divf %245, %246 : vector<8x1xf32>
    %248 = vector.broadcast %247 : vector<8x1xf32> to vector<8x32xf32>
    %249 = arith.subf %241, %248 : vector<8x32xf32>
    %250 = arith.mulf %249, %249 : vector<8x32xf32>
    %cst_114 = arith.constant dense<0.000000e+00> : vector<8xf32>
    %251 = vector.multi_reduction <add>, %250, %cst_114 [1] : vector<8x32xf32> to vector<8xf32>
    %252 = vector.shape_cast %251 : vector<8xf32> to vector<8x1xf32>
    %cst_115 = arith.constant 3.200000e+01 : f32
    %253 = vector.broadcast %cst_115 : f32 to vector<8x1xf32>
    %254 = arith.divf %252, %253 : vector<8x1xf32>
    %255 = vector.broadcast %247 : vector<8x1xf32> to vector<8x32xf32>
    %256 = arith.subf %241, %255 : vector<8x32xf32>
    %cst_116 = arith.constant 9.99999974E-6 : f32
    %257 = vector.broadcast %cst_116 : f32 to vector<8x1xf32>
    %258 = arith.addf %254, %257 : vector<8x1xf32>
    %259 = math.rsqrt %258 : vector<8x1xf32>
    %260 = vector.broadcast %259 : vector<8x1xf32> to vector<8x32xf32>
    %261 = arith.mulf %256, %260 : vector<8x32xf32>
    %262 = vector.broadcast %242 : vector<1x32xf32> to vector<8x32xf32>
    %263 = arith.mulf %261, %262 : vector<8x32xf32>
    %264 = vector.broadcast %243 : vector<1x32xf32> to vector<8x32xf32>
    %265 = arith.addf %263, %264 : vector<8x32xf32>
    %c0_117 = arith.constant 0 : index
    %c0_118 = arith.constant 0 : index
    %266 = vector.load %arg26[%c0_117, %c0_118] : memref<32x128xf32, #tpu.memory_space<vmem>>, vector<32x128xf32>
    %cst_119 = arith.constant dense<0.000000e+00> : vector<8x128xf32>
    %267 = tpu.matmul %265, %266, %cst_119 {dimension_numbers = #tpu.dot_dimension_numbers<[1], [0], [0], [1], [0, 0, 1, 1], [], []>} : vector<8x32xf32>, vector<32x128xf32>, vector<8x128xf32> -> vector<8x128xf32>
    %c0_120 = arith.constant 0 : index
    %c0_121 = arith.constant 0 : index
    %268 = vector.load %arg27[%c0_120, %c0_121] : memref<1x128xf32, #tpu.memory_space<vmem>>, vector<1x128xf32>
    %269 = vector.broadcast %268 : vector<1x128xf32> to vector<8x128xf32>
    %270 = arith.addf %267, %269 : vector<8x128xf32>
    %cst_122 = arith.constant 0.000000e+00 : f32
    %271 = vector.broadcast %cst_122 : f32 to vector<8x128xf32>
    %272 = arith.maximumf %270, %271 : vector<8x128xf32>
    %c0_123 = arith.constant 0 : index
    %c0_124 = arith.constant 0 : index
    %273 = vector.load %arg28[%c0_123, %c0_124] : memref<128x32xf32, #tpu.memory_space<vmem>>, vector<128x32xf32>
    %cst_125 = arith.constant dense<0.000000e+00> : vector<8x32xf32>
    %274 = tpu.matmul %272, %273, %cst_125 {dimension_numbers = #tpu.dot_dimension_numbers<[1], [0], [0], [1], [0, 0, 1, 1], [], []>} : vector<8x128xf32>, vector<128x32xf32>, vector<8x32xf32> -> vector<8x32xf32>
    %c0_126 = arith.constant 0 : index
    %c0_127 = arith.constant 0 : index
    %275 = vector.load %arg29[%c0_126, %c0_127] : memref<1x32xf32, #tpu.memory_space<vmem>>, vector<1x32xf32>
    %276 = vector.broadcast %275 : vector<1x32xf32> to vector<8x32xf32>
    %277 = arith.addf %274, %276 : vector<8x32xf32>
    %278 = arith.addf %265, %277 : vector<8x32xf32>
    %c0_128 = arith.constant 0 : index
    %c0_129 = arith.constant 0 : index
    %279 = vector.load %arg30[%c0_128, %c0_129] : memref<1x32xf32, #tpu.memory_space<vmem>>, vector<1x32xf32>
    %c0_130 = arith.constant 0 : index
    %c0_131 = arith.constant 0 : index
    %280 = vector.load %arg31[%c0_130, %c0_131] : memref<1x32xf32, #tpu.memory_space<vmem>>, vector<1x32xf32>
    %cst_132 = arith.constant dense<0.000000e+00> : vector<8xf32>
    %281 = vector.multi_reduction <add>, %278, %cst_132 [1] : vector<8x32xf32> to vector<8xf32>
    %282 = vector.shape_cast %281 : vector<8xf32> to vector<8x1xf32>
    %cst_133 = arith.constant 3.200000e+01 : f32
    %283 = vector.broadcast %cst_133 : f32 to vector<8x1xf32>
    %284 = arith.divf %282, %283 : vector<8x1xf32>
    %285 = vector.broadcast %284 : vector<8x1xf32> to vector<8x32xf32>
    %286 = arith.subf %278, %285 : vector<8x32xf32>
    %287 = arith.mulf %286, %286 : vector<8x32xf32>
    %cst_134 = arith.constant dense<0.000000e+00> : vector<8xf32>
    %288 = vector.multi_reduction <add>, %287, %cst_134 [1] : vector<8x32xf32> to vector<8xf32>
    %289 = vector.shape_cast %288 : vector<8xf32> to vector<8x1xf32>
    %cst_135 = arith.constant 3.200000e+01 : f32
    %290 = vector.broadcast %cst_135 : f32 to vector<8x1xf32>
    %291 = arith.divf %289, %290 : vector<8x1xf32>
    %292 = vector.broadcast %284 : vector<8x1xf32> to vector<8x32xf32>
    %293 = arith.subf %278, %292 : vector<8x32xf32>
    %cst_136 = arith.constant 9.99999974E-6 : f32
    %294 = vector.broadcast %cst_136 : f32 to vector<8x1xf32>
    %295 = arith.addf %291, %294 : vector<8x1xf32>
    %296 = math.rsqrt %295 : vector<8x1xf32>
    %297 = vector.broadcast %296 : vector<8x1xf32> to vector<8x32xf32>
    %298 = arith.mulf %293, %297 : vector<8x32xf32>
    %299 = vector.broadcast %279 : vector<1x32xf32> to vector<8x32xf32>
    %300 = arith.mulf %298, %299 : vector<8x32xf32>
    %301 = vector.broadcast %280 : vector<1x32xf32> to vector<8x32xf32>
    %302 = arith.addf %300, %301 : vector<8x32xf32>
    %c0_137 = arith.constant 0 : index
    %c0_138 = arith.constant 0 : index
    %c0_139 = arith.constant 0 : index
    %303 = vector.load %arg32[%c0_137, %c0_138, %c0_139] : memref<1x8x32xf32, #tpu.memory_space<vmem>>, vector<1x8x32xf32>
    %304 = vector.shape_cast %303 : vector<1x8x32xf32> to vector<8x32xf32>
    %305 = vector.shape_cast %302 : vector<8x32xf32> to vector<1x8x32xf32>
    tpu.vector_store %arg32[%c0_137, %c0_138, %c0_139], %305 {strides = array<i32>} : memref<1x8x32xf32, #tpu.memory_space<vmem>>, vector<1x8x32xf32>,
    return
  }
  func.func @transform_0(%arg0: i32) -> (i32, i32, i32) {
    %c0_i32 = arith.constant 0 : i32
    %c0_i32_0 = arith.constant 0 : i32
    %c0_i32_1 = arith.constant 0 : i32
    return %arg0, %c0_i32, %c0_i32_0 : i32, i32, i32
  }
  func.func @transform_1(%arg0: i32) -> (i32, i32, i32) {
    %c0_i32 = arith.constant 0 : i32
    %c0_i32_0 = arith.constant 0 : i32
    %c0_i32_1 = arith.constant 0 : i32
    return %arg0, %c0_i32, %c0_i32_0 : i32, i32, i32
  }
  func.func @transform_2(%arg0: i32) -> (i32, i32, i32) {
    %c0_i32 = arith.constant 0 : i32
    %c0_i32_0 = arith.constant 0 : i32
    %c0_i32_1 = arith.constant 0 : i32
    return %arg0, %c0_i32, %c0_i32_0 : i32, i32, i32
  }
  func.func @transform_3(%arg0: i32) -> (i32, i32, i32) {
    %c0_i32 = arith.constant 0 : i32
    %c0_i32_0 = arith.constant 0 : i32
    %c0_i32_1 = arith.constant 0 : i32
    return %arg0, %c0_i32, %c0_i32_0 : i32, i32, i32
  }
  func.func @transform_4(%arg0: i32) -> (i32, i32) {
    %c0_i32 = arith.constant 0 : i32
    %c0_i32_0 = arith.constant 0 : i32
    %c0_i32_1 = arith.constant 0 : i32
    return %c0_i32, %c0_i32_0 : i32, i32
  }
  func.func @transform_5(%arg0: i32) -> (i32, i32) {
    %c0_i32 = arith.constant 0 : i32
    %c0_i32_0 = arith.constant 0 : i32
    %c0_i32_1 = arith.constant 0 : i32
    return %c0_i32, %c0_i32_0 : i32, i32
  }
  func.func @transform_6(%arg0: i32) -> (i32, i32) {
    %c0_i32 = arith.constant 0 : i32
    %c0_i32_0 = arith.constant 0 : i32
    %c0_i32_1 = arith.constant 0 : i32
    return %c0_i32, %c0_i32_0 : i32, i32
  }
  func.func @transform_7(%arg0: i32) -> (i32, i32) {
    %c0_i32 = arith.constant 0 : i32
    %c0_i32_0 = arith.constant 0 : i32
    %c0_i32_1 = arith.constant 0 : i32
    return %c0_i32, %c0_i32_0 : i32, i32
  }
  func.func @transform_8(%arg0: i32) -> (i32, i32) {
    %c0_i32 = arith.constant 0 : i32
    %c0_i32_0 = arith.constant 0 : i32
    %c0_i32_1 = arith.constant 0 : i32
    return %c0_i32, %c0_i32_0 : i32, i32
  }
  func.func @transform_9(%arg0: i32) -> (i32, i32) {
    %c0_i32 = arith.constant 0 : i32
    %c0_i32_0 = arith.constant 0 : i32
    %c0_i32_1 = arith.constant 0 : i32
    return %c0_i32, %c0_i32_0 : i32, i32
  }
  func.func @transform_10(%arg0: i32) -> (i32, i32) {
    %c0_i32 = arith.constant 0 : i32
    %c0_i32_0 = arith.constant 0 : i32
    %c0_i32_1 = arith.constant 0 : i32
    return %c0_i32, %c0_i32_0 : i32, i32
  }
  func.func @transform_11(%arg0: i32) -> (i32, i32) {
    %c0_i32 = arith.constant 0 : i32
    %c0_i32_0 = arith.constant 0 : i32
    %c0_i32_1 = arith.constant 0 : i32
    return %c0_i32, %c0_i32_0 : i32, i32
  }
  func.func @transform_12(%arg0: i32) -> (i32, i32) {
    %c0_i32 = arith.constant 0 : i32
    %c0_i32_0 = arith.constant 0 : i32
    %c0_i32_1 = arith.constant 0 : i32
    return %c0_i32, %c0_i32_0 : i32, i32
  }
  func.func @transform_13(%arg0: i32) -> (i32, i32) {
    %c0_i32 = arith.constant 0 : i32
    %c0_i32_0 = arith.constant 0 : i32
    %c0_i32_1 = arith.constant 0 : i32
    return %c0_i32, %c0_i32_0 : i32, i32
  }
  func.func @transform_14(%arg0: i32) -> (i32, i32) {
    %c0_i32 = arith.constant 0 : i32
    %c0_i32_0 = arith.constant 0 : i32
    %c0_i32_1 = arith.constant 0 : i32
    return %c0_i32, %c0_i32_0 : i32, i32
  }
  func.func @transform_15(%arg0: i32) -> (i32, i32) {
    %c0_i32 = arith.constant 0 : i32
    %c0_i32_0 = arith.constant 0 : i32
    %c0_i32_1 = arith.constant 0 : i32
    return %c0_i32, %c0_i32_0 : i32, i32
  }
  func.func @transform_16(%arg0: i32) -> (i32, i32) {
    %c0_i32 = arith.constant 0 : i32
    %c0_i32_0 = arith.constant 0 : i32
    %c0_i32_1 = arith.constant 0 : i32
    return %c0_i32, %c0_i32_0 : i32, i32
  }
  func.func @transform_17(%arg0: i32) -> (i32, i32) {
    %c0_i32 = arith.constant 0 : i32
    %c0_i32_0 = arith.constant 0 : i32
    %c0_i32_1 = arith.constant 0 : i32
    return %c0_i32, %c0_i32_0 : i32, i32
  }
  func.func @transform_18(%arg0: i32) -> (i32, i32) {
    %c0_i32 = arith.constant 0 : i32
    %c0_i32_0 = arith.constant 0 : i32
    %c0_i32_1 = arith.constant 0 : i32
    return %c0_i32, %c0_i32_0 : i32, i32
  }
  func.func @transform_19(%arg0: i32) -> (i32, i32) {
    %c0_i32 = arith.constant 0 : i32
    %c0_i32_0 = arith.constant 0 : i32
    %c0_i32_1 = arith.constant 0 : i32
    return %c0_i32, %c0_i32_0 : i32, i32
  }
  func.func @transform_20(%arg0: i32) -> (i32, i32) {
    %c0_i32 = arith.constant 0 : i32
    %c0_i32_0 = arith.constant 0 : i32
    %c0_i32_1 = arith.constant 0 : i32
    return %c0_i32, %c0_i32_0 : i32, i32
  }
  func.func @transform_21(%arg0: i32) -> (i32, i32) {
    %c0_i32 = arith.constant 0 : i32
    %c0_i32_0 = arith.constant 0 : i32
    %c0_i32_1 = arith.constant 0 : i32
    return %c0_i32, %c0_i32_0 : i32, i32
  }
  func.func @transform_22(%arg0: i32) -> (i32, i32) {
    %c0_i32 = arith.constant 0 : i32
    %c0_i32_0 = arith.constant 0 : i32
    %c0_i32_1 = arith.constant 0 : i32
    return %c0_i32, %c0_i32_0 : i32, i32
  }
  func.func @transform_23(%arg0: i32) -> (i32, i32) {
    %c0_i32 = arith.constant 0 : i32
    %c0_i32_0 = arith.constant 0 : i32
    %c0_i32_1 = arith.constant 0 : i32
    return %c0_i32, %c0_i32_0 : i32, i32
  }
  func.func @transform_24(%arg0: i32) -> (i32, i32) {
    %c0_i32 = arith.constant 0 : i32
    %c0_i32_0 = arith.constant 0 : i32
    %c0_i32_1 = arith.constant 0 : i32
    return %c0_i32, %c0_i32_0 : i32, i32
  }
  func.func @transform_25(%arg0: i32) -> (i32, i32) {
    %c0_i32 = arith.constant 0 : i32
    %c0_i32_0 = arith.constant 0 : i32
    %c0_i32_1 = arith.constant 0 : i32
    return %c0_i32, %c0_i32_0 : i32, i32
  }
  func.func @transform_26(%arg0: i32) -> (i32, i32) {
    %c0_i32 = arith.constant 0 : i32
    %c0_i32_0 = arith.constant 0 : i32
    %c0_i32_1 = arith.constant 0 : i32
    return %c0_i32, %c0_i32_0 : i32, i32
  }
  func.func @transform_27(%arg0: i32) -> (i32, i32) {
    %c0_i32 = arith.constant 0 : i32
    %c0_i32_0 = arith.constant 0 : i32
    %c0_i32_1 = arith.constant 0 : i32
    return %c0_i32, %c0_i32_0 : i32, i32
  }
  func.func @transform_28(%arg0: i32) -> (i32, i32) {
    %c0_i32 = arith.constant 0 : i32
    %c0_i32_0 = arith.constant 0 : i32
    %c0_i32_1 = arith.constant 0 : i32
    return %c0_i32, %c0_i32_0 : i32, i32
  }
  func.func @transform_29(%arg0: i32) -> (i32, i32) {
    %c0_i32 = arith.constant 0 : i32
    %c0_i32_0 = arith.constant 0 : i32
    %c0_i32_1 = arith.constant 0 : i32
    return %c0_i32, %c0_i32_0 : i32, i32
  }
  func.func @transform_30(%arg0: i32) -> (i32, i32) {
    %c0_i32 = arith.constant 0 : i32
    %c0_i32_0 = arith.constant 0 : i32
    %c0_i32_1 = arith.constant 0 : i32
    return %c0_i32, %c0_i32_0 : i32, i32
  }
  func.func @transform_31(%arg0: i32) -> (i32, i32, i32) {
    %c0_i32 = arith.constant 0 : i32
    %c0_i32_0 = arith.constant 0 : i32
    %c0_i32_1 = arith.constant 0 : i32
    return %arg0, %c0_i32, %c0_i32_0 : i32, i32, i32
  }
}

</mosaic_0001>

<llo_original>
// kernel: cos.2
$region0: #{cos.2}
  #allocation0 [shape = 's32[1]{0}', space=sflag, size = 0x4, scoped, tag = 'scoped memory for cos.2']
  %s0 = inlined_call_operand.vmem [shape: f32[2,8,8], index: 0, kind: input, shape index: {}]
  %s1 = inlined_call_operand.vmem [shape: f32[2,8,8], index: 1, kind: output, shape index: {}]
  %v2 = vld [vmem:[%s0] sm:$0xff]
  %v3 = vand.u32 2147483647, %v2
  %vm4 = vcmp.le.f32.partialorder %v3, 0.7853982
  %vm5 = vcmp.lt.s32.totalorder %v2, 0
  %v6 = vand.u32 %v2, 2139095040
  %v7 = vshrl.u32 %v6, 23
  %v8 = vsub.s32 %v7, 127
  %v9 = vand.u32 2147483647, %v2
  %v10 = vand.u32 %v9, 8388607
  %v11 = vor.u32 %v10, 8388608
  %v12 = vsub.s32 0, %v11
  %v13 = vadd.s32 %v8, 1
  %vm14 = vcmp.gt.s32.totalorder %v13, 0
  %v15 = vsel %vm14, %v13, 0
  %v16 = vshrl.u32 %v15, 5
  %v17 = vand.u32 %v15, 31
  %v18 = vsub.s32 32, %v17
  %v19 = vshrl.u32 683565275, %v18
  %v20 = vshll.u32 683565275, %v17
  %v21 = vshrl.u32 2475754826, %v18
  %v22 = vor.u32 %v20, %v21
  %v23 = vshll.u32 2475754826, %v17
  %v24 = vshrl.u32 2131351028, %v18
  %v25 = vor.u32 %v23, %v24
  %v26 = vshll.u32 2131351028, %v17
  %v27 = vshrl.u32 2102212464, %v18
  %v28 = vor.u32 %v26, %v27
  %v29 = vshll.u32 2102212464, %v17
  %v30 = vshrl.u32 920167782, %v18
  %v31 = vor.u32 %v29, %v30
  %v32 = vshll.u32 920167782, %v17
  %v33 = vshrl.u32 1326507024, %v18
  %v34 = vor.u32 %v32, %v33
  %vm35 = vcmp.lt.s32.totalorder %v16, 1
  %vm36 = vcmp.lt.s32.totalorder %v16, 2
  %vm37 = vcmp.lt.s32.totalorder %v16, 3
  %vm38 = vcmp.lt.s32.totalorder %v16, 4
  %v39 = vsel %vm35, %v19, %v22
  %v40 = vsel %vm38, %v28, 2102212464
  %v41 = vsel %vm37, %v25, %v40
  %v42 = vsel %vm36, %v39, %v41
  %v43 = vsel %vm35, %v22, %v25
  %v44 = vsel %vm38, %v31, 920167782
  %v45 = vsel %vm37, %v28, %v44
  %v46 = vsel %vm36, %v43, %v45
  %v47 = vsel %vm35, %v25, %v28
  %v48 = vsel %vm38, %v34, 1326507024
  %v49 = vsel %vm37, %v31, %v48
  %v50 = vsel %vm36, %v47, %v49
  %v51 = vshll.u32 %v11, 8
  %v52 = vmul.u32.u64.compose %v51, %v50
  %v53 = vextract.low.u32 %v52
  %v54 = vextract.high.u32 %v52
  %v55 = vmul.u32.u64.compose %v51, %v46
  %v56 = vextract.low.u32 %v55
  %v57 = vextract.high.u32 %v55
  %v58 = vmul.u32 %v51, %v42
  %v59 = vadd.s32 %v54, %v56
  %vm60 = vc.u32 %v54, %v56
  %v61 = vadd.s32 %v57, 1
  %v62 = vsel %vm60, %v61, %v57
  %v63 = vadd.s32 %v58, %v62
  %v64 = vadd.s32 %v63, 536870912
  %v65 = vshrl.u32 %v64, 30
  %v66 = vshll.u32 %v65, 30
  %v67 = vsub.s32 %v63, %v66
  %vm68 = vcmp.lt.s32.totalorder %v67, 0
  %v69 = vsub.s32 0, %v67
  %v70 = vsel %vm68, %v69, %v67
  %v71 = vclz %v70
  %v72 = vsub.s32 %v71, 2
  %vm73 = vcmp.gt.s32.totalorder 0, %v72
  %v74 = vsel %vm73, 0, %v72
  %v75 = vsub.s32 32, %v74
  %v76 = vshll.u32 %v67, %v74
  %v77 = vshrl.u32 %v59, %v75
  %v78 = vor.u32 %v76, %v77
  %v79 = vsub.s32 4294967266, %v74
  %v80 = vadd.s32 %v79, 127
  %v81 = vshll.u32 %v80, 23
  %v82 = vor.u32 4788187, %v81
  %v83 = vand.u32 2147483647, %v82
  %v85 = vcvt.s32.f32 %v78
  %v86 = vmul.f32 %v85, %v83
  %v87 = vxor.u32 %v86, 2147483648
  %v88 = vsel %vm5, %v87, %v86
  %v89 = vsub.s32 4, %v65
  %v90 = vsel %vm5, %v89, %v65
  %v91 = vsel %vm4, %v2, %v88
  %v92 = vsel %vm4, 0, %v90
  %v93 = vcosq.f32.pop %v91
  %v94 = vsinq.f32.pop %v91
  %vm95 = vweird.f32 %v2
  %v96 = vand.u32 %v92, 3
  %vm97 = vcmp.lt.s32.totalorder %v96, 2
  %vm98 = vcmp.eq.s32.totalorder %v96, 0
  %v99 = vxor.u32 %v94, 2147483648
  %v100 = vsel %vm98, %v93, %v99
  %vm101 = vcmp.eq.s32.totalorder %v96, 2
  %v102 = vxor.u32 %v93, 2147483648
  %v103 = vsel %vm101, %v102, %v94
  %v104 = vsel %vm97, %v100, %v103
  %v105 = vsel %vm95, nan, %v104
  %106 = vst [vmem:[%s1] sm:$0xff] %v105
  %s107 = scalar_lea.vmem %s0, 8
  %v108 = vld [vmem:[%s107] sm:$0xff]
  %v109 = vand.u32 2147483647, %v108
  %vm110 = vcmp.le.f32.partialorder %v109, 0.7853982
  %vm111 = vcmp.lt.s32.totalorder %v108, 0
  %v112 = vand.u32 %v108, 2139095040
  %v113 = vshrl.u32 %v112, 23
  %v114 = vsub.s32 %v113, 127
  %v115 = vand.u32 2147483647, %v108
  %v116 = vand.u32 %v115, 8388607
  %v117 = vor.u32 %v116, 8388608
  %v118 = vsub.s32 0, %v117
  %v119 = vadd.s32 %v114, 1
  %vm120 = vcmp.gt.s32.totalorder %v119, 0
  %v121 = vsel %vm120, %v119, 0
  %v122 = vshrl.u32 %v121, 5
  %v123 = vand.u32 %v121, 31
  %v124 = vsub.s32 32, %v123
  %v125 = vshrl.u32 683565275, %v124
  %v126 = vshll.u32 683565275, %v123
  %v127 = vshrl.u32 2475754826, %v124
  %v128 = vor.u32 %v126, %v127
  %v129 = vshll.u32 2475754826, %v123
  %v130 = vshrl.u32 2131351028, %v124
  %v131 = vor.u32 %v129, %v130
  %v132 = vshll.u32 2131351028, %v123
  %v133 = vshrl.u32 2102212464, %v124
  %v134 = vor.u32 %v132, %v133
  %v135 = vshll.u32 2102212464, %v123
  %v136 = vshrl.u32 920167782, %v124
  %v137 = vor.u32 %v135, %v136
  %v138 = vshll.u32 920167782, %v123
  %v139 = vshrl.u32 1326507024, %v124
  %v140 = vor.u32 %v138, %v139
  %vm141 = vcmp.lt.s32.totalorder %v122, 1
  %vm142 = vcmp.lt.s32.totalorder %v122, 2
  %vm143 = vcmp.lt.s32.totalorder %v122, 3
  %vm144 = vcmp.lt.s32.totalorder %v122, 4
  %v145 = vsel %vm141, %v125, %v128
  %v146 = vsel %vm144, %v134, 2102212464
  %v147 = vsel %vm143, %v131, %v146
  %v148 = vsel %vm142, %v145, %v147
  %v149 = vsel %vm141, %v128, %v131
  %v150 = vsel %vm144, %v137, 920167782
  %v151 = vsel %vm143, %v134, %v150
  %v152 = vsel %vm142, %v149, %v151
  %v153 = vsel %vm141, %v131, %v134
  %v154 = vsel %vm144, %v140, 1326507024
  %v155 = vsel %vm143, %v137, %v154
  %v156 = vsel %vm142, %v153, %v155
  %v157 = vshll.u32 %v117, 8
  %v158 = vmul.u32.u64.compose %v157, %v156
  %v159 = vextract.low.u32 %v158
  %v160 = vextract.high.u32 %v158
  %v161 = vmul.u32.u64.compose %v157, %v152
  %v162 = vextract.low.u32 %v161
  %v163 = vextract.high.u32 %v161
  %v164 = vmul.u32 %v157, %v148
  %v165 = vadd.s32 %v160, %v162
  %vm166 = vc.u32 %v160, %v162
  %v167 = vadd.s32 %v163, 1
  %v168 = vsel %vm166, %v167, %v163
  %v169 = vadd.s32 %v164, %v168
  %v170 = vadd.s32 %v169, 536870912
  %v171 = vshrl.u32 %v170, 30
  %v172 = vshll.u32 %v171, 30
  %v173 = vsub.s32 %v169, %v172
  %vm174 = vcmp.lt.s32.totalorder %v173, 0
  %v175 = vsub.s32 0, %v173
  %v176 = vsel %vm174, %v175, %v173
  %v177 = vclz %v176
  %v178 = vsub.s32 %v177, 2
  %vm179 = vcmp.gt.s32.totalorder 0, %v178
  %v180 = vsel %vm179, 0, %v178
  %v181 = vsub.s32 32, %v180
  %v182 = vshll.u32 %v173, %v180
  %v183 = vshrl.u32 %v165, %v181
  %v184 = vor.u32 %v182, %v183
  %v185 = vsub.s32 4294967266, %v180
  %v186 = vadd.s32 %v185, 127
  %v187 = vshll.u32 %v186, 23
  %v188 = vor.u32 4788187, %v187
  %v189 = vand.u32 2147483647, %v188
  %v191 = vcvt.s32.f32 %v184
  %v192 = vmul.f32 %v191, %v189
  %v193 = vxor.u32 %v192, 2147483648
  %v194 = vsel %vm111, %v193, %v192
  %v195 = vsub.s32 4, %v171
  %v196 = vsel %vm111, %v195, %v171
  %v197 = vsel %vm110, %v108, %v194
  %v198 = vsel %vm110, 0, %v196
  %v199 = vcosq.f32.pop %v197
  %v200 = vsinq.f32.pop %v197
  %vm201 = vweird.f32 %v108
  %v202 = vand.u32 %v198, 3
  %vm203 = vcmp.lt.s32.totalorder %v202, 2
  %vm204 = vcmp.eq.s32.totalorder %v202, 0
  %v205 = vxor.u32 %v200, 2147483648
  %v206 = vsel %vm204, %v199, %v205
  %vm207 = vcmp.eq.s32.totalorder %v202, 2
  %v208 = vxor.u32 %v199, 2147483648
  %v209 = vsel %vm207, %v208, %v200
  %v210 = vsel %vm203, %v206, %v209
  %v211 = vsel %vm201, nan, %v210
  %s212 = scalar_lea.vmem %s1, 8
  %213 = vst [vmem:[%s212] sm:$0xff] %v211

// kernel: sin.2
$region0: #{sin.2}
  #allocation0 [shape = 's32[1]{0}', space=sflag, size = 0x4, scoped, tag = 'scoped memory for sin.2']
  %s0 = inlined_call_operand.vmem [shape: f32[2,8,8], index: 0, kind: input, shape index: {}]
  %s1 = inlined_call_operand.vmem [shape: f32[2,8,8], index: 1, kind: output, shape index: {}]
  %v2 = vld [vmem:[%s0] sm:$0xff]
  %v3 = vand.u32 2147483647, %v2
  %vm4 = vcmp.le.f32.partialorder %v3, 0.7853982
  %vm5 = vcmp.lt.s32.totalorder %v2, 0
  %v6 = vand.u32 %v2, 2139095040
  %v7 = vshrl.u32 %v6, 23
  %v8 = vsub.s32 %v7, 127
  %v9 = vand.u32 2147483647, %v2
  %v10 = vand.u32 %v9, 8388607
  %v11 = vor.u32 %v10, 8388608
  %v12 = vsub.s32 0, %v11
  %v13 = vadd.s32 %v8, 1
  %vm14 = vcmp.gt.s32.totalorder %v13, 0
  %v15 = vsel %vm14, %v13, 0
  %v16 = vshrl.u32 %v15, 5
  %v17 = vand.u32 %v15, 31
  %v18 = vsub.s32 32, %v17
  %v19 = vshrl.u32 683565275, %v18
  %v20 = vshll.u32 683565275, %v17
  %v21 = vshrl.u32 2475754826, %v18
  %v22 = vor.u32 %v20, %v21
  %v23 = vshll.u32 2475754826, %v17
  %v24 = vshrl.u32 2131351028, %v18
  %v25 = vor.u32 %v23, %v24
  %v26 = vshll.u32 2131351028, %v17
  %v27 = vshrl.u32 2102212464, %v18
  %v28 = vor.u32 %v26, %v27
  %v29 = vshll.u32 2102212464, %v17
  %v30 = vshrl.u32 920167782, %v18
  %v31 = vor.u32 %v29, %v30
  %v32 = vshll.u32 920167782, %v17
  %v33 = vshrl.u32 1326507024, %v18
  %v34 = vor.u32 %v32, %v33
  %vm35 = vcmp.lt.s32.totalorder %v16, 1
  %vm36 = vcmp.lt.s32.totalorder %v16, 2
  %vm37 = vcmp.lt.s32.totalorder %v16, 3
  %vm38 = vcmp.lt.s32.totalorder %v16, 4
  %v39 = vsel %vm35, %v19, %v22
  %v40 = vsel %vm38, %v28, 2102212464
  %v41 = vsel %vm37, %v25, %v40
  %v42 = vsel %vm36, %v39, %v41
  %v43 = vsel %vm35, %v22, %v25
  %v44 = vsel %vm38, %v31, 920167782
  %v45 = vsel %vm37, %v28, %v44
  %v46 = vsel %vm36, %v43, %v45
  %v47 = vsel %vm35, %v25, %v28
  %v48 = vsel %vm38, %v34, 1326507024
  %v49 = vsel %vm37, %v31, %v48
  %v50 = vsel %vm36, %v47, %v49
  %v51 = vshll.u32 %v11, 8
  %v52 = vmul.u32.u64.compose %v51, %v50
  %v53 = vextract.low.u32 %v52
  %v54 = vextract.high.u32 %v52
  %v55 = vmul.u32.u64.compose %v51, %v46
  %v56 = vextract.low.u32 %v55
  %v57 = vextract.high.u32 %v55
  %v58 = vmul.u32 %v51, %v42
  %v59 = vadd.s32 %v54, %v56
  %vm60 = vc.u32 %v54, %v56
  %v61 = vadd.s32 %v57, 1
  %v62 = vsel %vm60, %v61, %v57
  %v63 = vadd.s32 %v58, %v62
  %v64 = vadd.s32 %v63, 536870912
  %v65 = vshrl.u32 %v64, 30
  %v66 = vshll.u32 %v65, 30
  %v67 = vsub.s32 %v63, %v66
  %vm68 = vcmp.lt.s32.totalorder %v67, 0
  %v69 = vsub.s32 0, %v67
  %v70 = vsel %vm68, %v69, %v67
  %v71 = vclz %v70
  %v72 = vsub.s32 %v71, 2
  %vm73 = vcmp.gt.s32.totalorder 0, %v72
  %v74 = vsel %vm73, 0, %v72
  %v75 = vsub.s32 32, %v74
  %v76 = vshll.u32 %v67, %v74
  %v77 = vshrl.u32 %v59, %v75
  %v78 = vor.u32 %v76, %v77
  %v79 = vsub.s32 4294967266, %v74
  %v80 = vadd.s32 %v79, 127
  %v81 = vshll.u32 %v80, 23
  %v82 = vor.u32 4788187, %v81
  %v83 = vand.u32 2147483647, %v82
  %v85 = vcvt.s32.f32 %v78
  %v86 = vmul.f32 %v85, %v83
  %v87 = vxor.u32 %v86, 2147483648
  %v88 = vsel %vm5, %v87, %v86
  %v89 = vsub.s32 4, %v65
  %v90 = vsel %vm5, %v89, %v65
  %v91 = vsel %vm4, %v2, %v88
  %v92 = vsel %vm4, 0, %v90
  %v93 = vcosq.f32.pop %v91
  %v94 = vsinq.f32.pop %v91
  %vm95 = vweird.f32 %v2
  %v96 = vadd.s32 %v92, 3
  %v97 = vand.u32 %v96, 3
  %vm98 = vcmp.lt.s32.totalorder %v97, 2
  %vm99 = vcmp.eq.s32.totalorder %v97, 0
  %v100 = vxor.u32 %v94, 2147483648
  %v101 = vsel %vm99, %v93, %v100
  %vm102 = vcmp.eq.s32.totalorder %v97, 2
  %v103 = vxor.u32 %v93, 2147483648
  %v104 = vsel %vm102, %v103, %v94
  %v105 = vsel %vm98, %v101, %v104
  %v106 = vsel %vm95, nan, %v105
  %107 = vst [vmem:[%s1] sm:$0xff] %v106
  %s108 = scalar_lea.vmem %s0, 8
  %v109 = vld [vmem:[%s108] sm:$0xff]
  %v110 = vand.u32 2147483647, %v109
  %vm111 = vcmp.le.f32.partialorder %v110, 0.7853982
  %vm112 = vcmp.lt.s32.totalorder %v109, 0
  %v113 = vand.u32 %v109, 2139095040
  %v114 = vshrl.u32 %v113, 23
  %v115 = vsub.s32 %v114, 127
  %v116 = vand.u32 2147483647, %v109
  %v117 = vand.u32 %v116, 8388607
  %v118 = vor.u32 %v117, 8388608
  %v119 = vsub.s32 0, %v118
  %v120 = vadd.s32 %v115, 1
  %vm121 = vcmp.gt.s32.totalorder %v120, 0
  %v122 = vsel %vm121, %v120, 0
  %v123 = vshrl.u32 %v122, 5
  %v124 = vand.u32 %v122, 31
  %v125 = vsub.s32 32, %v124
  %v126 = vshrl.u32 683565275, %v125
  %v127 = vshll.u32 683565275, %v124
  %v128 = vshrl.u32 2475754826, %v125
  %v129 = vor.u32 %v127, %v128
  %v130 = vshll.u32 2475754826, %v124
  %v131 = vshrl.u32 2131351028, %v125
  %v132 = vor.u32 %v130, %v131
  %v133 = vshll.u32 2131351028, %v124
  %v134 = vshrl.u32 2102212464, %v125
  %v135 = vor.u32 %v133, %v134
  %v136 = vshll.u32 2102212464, %v124
  %v137 = vshrl.u32 920167782, %v125
  %v138 = vor.u32 %v136, %v137
  %v139 = vshll.u32 920167782, %v124
  %v140 = vshrl.u32 1326507024, %v125
  %v141 = vor.u32 %v139, %v140
  %vm142 = vcmp.lt.s32.totalorder %v123, 1
  %vm143 = vcmp.lt.s32.totalorder %v123, 2
  %vm144 = vcmp.lt.s32.totalorder %v123, 3
  %vm145 = vcmp.lt.s32.totalorder %v123, 4
  %v146 = vsel %vm142, %v126, %v129
  %v147 = vsel %vm145, %v135, 2102212464
  %v148 = vsel %vm144, %v132, %v147
  %v149 = vsel %vm143, %v146, %v148
  %v150 = vsel %vm142, %v129, %v132
  %v151 = vsel %vm145, %v138, 920167782
  %v152 = vsel %vm144, %v135, %v151
  %v153 = vsel %vm143, %v150, %v152
  %v154 = vsel %vm142, %v132, %v135
  %v155 = vsel %vm145, %v141, 1326507024
  %v156 = vsel %vm144, %v138, %v155
  %v157 = vsel %vm143, %v154, %v156
  %v158 = vshll.u32 %v118, 8
  %v159 = vmul.u32.u64.compose %v158, %v157
  %v160 = vextract.low.u32 %v159
  %v161 = vextract.high.u32 %v159
  %v162 = vmul.u32.u64.compose %v158, %v153
  %v163 = vextract.low.u32 %v162
  %v164 = vextract.high.u32 %v162
  %v165 = vmul.u32 %v158, %v149
  %v166 = vadd.s32 %v161, %v163
  %vm167 = vc.u32 %v161, %v163
  %v168 = vadd.s32 %v164, 1
  %v169 = vsel %vm167, %v168, %v164
  %v170 = vadd.s32 %v165, %v169
  %v171 = vadd.s32 %v170, 536870912
  %v172 = vshrl.u32 %v171, 30
  %v173 = vshll.u32 %v172, 30
  %v174 = vsub.s32 %v170, %v173
  %vm175 = vcmp.lt.s32.totalorder %v174, 0
  %v176 = vsub.s32 0, %v174
  %v177 = vsel %vm175, %v176, %v174
  %v178 = vclz %v177
  %v179 = vsub.s32 %v178, 2
  %vm180 = vcmp.gt.s32.totalorder 0, %v179
  %v181 = vsel %vm180, 0, %v179
  %v182 = vsub.s32 32, %v181
  %v183 = vshll.u32 %v174, %v181
  %v184 = vshrl.u32 %v166, %v182
  %v185 = vor.u32 %v183, %v184
  %v186 = vsub.s32 4294967266, %v181
  %v187 = vadd.s32 %v186, 127
  %v188 = vshll.u32 %v187, 23
  %v189 = vor.u32 4788187, %v188
  %v190 = vand.u32 2147483647, %v189
  %v192 = vcvt.s32.f32 %v185
  %v193 = vmul.f32 %v192, %v190
  %v194 = vxor.u32 %v193, 2147483648
  %v195 = vsel %vm112, %v194, %v193
  %v196 = vsub.s32 4, %v172
  %v197 = vsel %vm112, %v196, %v172
  %v198 = vsel %vm111, %v109, %v195
  %v199 = vsel %vm111, 0, %v197
  %v200 = vcosq.f32.pop %v198
  %v201 = vsinq.f32.pop %v198
  %vm202 = vweird.f32 %v109
  %v203 = vadd.s32 %v199, 3
  %v204 = vand.u32 %v203, 3
  %vm205 = vcmp.lt.s32.totalorder %v204, 2
  %vm206 = vcmp.eq.s32.totalorder %v204, 0
  %v207 = vxor.u32 %v201, 2147483648
  %v208 = vsel %vm206, %v200, %v207
  %vm209 = vcmp.eq.s32.totalorder %v204, 2
  %v210 = vxor.u32 %v200, 2147483648
  %v211 = vsel %vm209, %v210, %v201
  %v212 = vsel %vm205, %v208, %v211
  %v213 = vsel %vm202, nan, %v212
  %s214 = scalar_lea.vmem %s1, 8
  %215 = vst [vmem:[%s214] sm:$0xff] %v213

// kernel: conditional_decoder_layer.1
$region0: #{conditional_decoder_layer.1}
  #allocation0 [shape = 'u32[]', space=smem, size = 0x4, offset = 0x4, fixed_abs, tag = 'smem constant byte address 0x4 - core index']
  #allocation1 [shape = 'u32[144,128]{1,0:T(1,128)}', space=vmem, size = 0x12000, scoped, tag = 'internal scratch']
  %s0 = inlined_call_operand.smem [shape: u32[32], index: -1, kind: input, shape index: {}]
  %s1 = sld [smem:[%s0]]
  %s2 = scalar_lea.smem %s0, 1
  %s3 = sld [smem:[%s2]]
  %s4 = scalar_lea.smem %s0, 2
  %s5 = sld [smem:[%s4]]
  %s6 = scalar_lea.smem %s0, 3
  %s7 = sld [smem:[%s6]]
  %s8 = scalar_lea.smem %s0, 4
  %s9 = sld [smem:[%s8]]
  %s10 = scalar_lea.smem %s0, 5
  %s11 = sld [smem:[%s10]]
  %s12 = scalar_lea.smem %s0, 6
  %s13 = sld [smem:[%s12]]
  %s14 = scalar_lea.smem %s0, 7
  %s15 = sld [smem:[%s14]]
  %s16 = scalar_lea.smem %s0, 8
  %s17 = sld [smem:[%s16]]
  %s18 = scalar_lea.smem %s0, 9
  %s19 = sld [smem:[%s18]]
  %s20 = scalar_lea.smem %s0, 10
  %s21 = sld [smem:[%s20]]
  %s22 = scalar_lea.smem %s0, 11
  %s23 = sld [smem:[%s22]]
  %s24 = scalar_lea.smem %s0, 12
  %s25 = sld [smem:[%s24]]
  %s26 = scalar_lea.smem %s0, 13
  %s27 = sld [smem:[%s26]]
  %s28 = scalar_lea.smem %s0, 14
  %s29 = sld [smem:[%s28]]
  %s30 = scalar_lea.smem %s0, 15
  %s31 = sld [smem:[%s30]]
  %s32 = scalar_lea.smem %s0, 16
  %s33 = sld [smem:[%s32]]
  %s34 = scalar_lea.smem %s0, 17
  %s35 = sld [smem:[%s34]]
  %s36 = scalar_lea.smem %s0, 18
  %s37 = sld [smem:[%s36]]
  %s38 = scalar_lea.smem %s0, 19
  %s39 = sld [smem:[%s38]]
  %s40 = scalar_lea.smem %s0, 20
  %s41 = sld [smem:[%s40]]
  %s42 = scalar_lea.smem %s0, 21
  %s43 = sld [smem:[%s42]]
  %s44 = scalar_lea.smem %s0, 22
  %s45 = sld [smem:[%s44]]
  %s46 = scalar_lea.smem %s0, 23
  %s47 = sld [smem:[%s46]]
  %s48 = scalar_lea.smem %s0, 24
  %s49 = sld [smem:[%s48]]
  %s50 = scalar_lea.smem %s0, 25
  %s51 = sld [smem:[%s50]]
  %s52 = scalar_lea.smem %s0, 26
  %s53 = sld [smem:[%s52]]
  %s54 = scalar_lea.smem %s0, 27
  %s55 = sld [smem:[%s54]]
  %s56 = scalar_lea.smem %s0, 28
  %s57 = sld [smem:[%s56]]
  %s58 = scalar_lea.smem %s0, 29
  %s59 = sld [smem:[%s58]]
  %s60 = scalar_lea.smem %s0, 30
  %s61 = sld [smem:[%s60]]
  %s62 = scalar_lea.smem %s0, 31
  %s63 = sld [smem:[%s62]]
  %s64 = sld [smem:[#allocation0]]
  $region157: #{conditional_decoder_layer.1} parent=0
    _
  %s66 = ssub.s32 1, %s64
  %s67 = scalar_select 0, %s66, %s64
  $region1: #{conditional_decoder_layer.1} parent=0
    #allocation2 [shape = 'u8[8192]{0}', space=vmem, size = 0x2000, scoped, tag = 'output window, operand 0']
    #allocation3 [shape = 's32[2]{0}', space=sflag, size = 0x8, scoped, tag = 'scoped memory for conditional_decoder_layer.1']
    %68 = vsyncpa [#allocation3], 0
    %s69 = scalar_lea.sflag [#allocation3], 1
    %70 = vsyncpa %s69, 0
    loop: start=0, step=1, limit=4
    $region2: #{conditional_decoder_layer.1} parent=1 // loop_pre_header
      _
    $region3: #{conditional_decoder_layer.1} parent=1 // loop_header
      %s72 = sphi 0, %s76
      %p73 = scmp.ge.s32.totalorder %s72, 4
      %s82 = sphi 0, %s84
      %s85 = sphi 0, %s82
      %s86 = sphi 0, %s85
      %s102 = sphi 0, %s86
      %s108 = sphi 0, %s110
      %s111 = sphi 0, %s108
      %s112 = sphi 0, %s111
      %s128 = sphi 0, %s112
      %s134 = sphi 0, %s136
      %s137 = sphi 0, %s134
      %s138 = sphi 0, %s137
      %s154 = sphi 0, %s138
      %s160 = sphi 0, %s162
      %s163 = sphi 0, %s160
      %s164 = sphi 0, %s163
      %s180 = sphi 0, %s164
      %s184 = sphi 0, %s184
      %s186 = sphi 0, %s184
      %s187 = sphi 0, %s186
      %s201 = sphi 0, %s187
      %s205 = sphi 0, %s205
      %s207 = sphi 0, %s205
      %s208 = sphi 0, %s207
      %s222 = sphi 0, %s208
      %s226 = sphi 0, %s226
      %s228 = sphi 0, %s226
      %s229 = sphi 0, %s228
      %s243 = sphi 0, %s229
      %s247 = sphi 0, %s247
      %s249 = sphi 0, %s247
      %s250 = sphi 0, %s249
      %s264 = sphi 0, %s250
      %s268 = sphi 0, %s268
      %s270 = sphi 0, %s268
      %s271 = sphi 0, %s270
      %s285 = sphi 0, %s271
      %s289 = sphi 0, %s289
      %s291 = sphi 0, %s289
      %s292 = sphi 0, %s291
      %s306 = sphi 0, %s292
      %s310 = sphi 0, %s310
      %s312 = sphi 0, %s310
      %s313 = sphi 0, %s312
      %s327 = sphi 0, %s313
      %s331 = sphi 0, %s331
      %s333 = sphi 0, %s331
      %s334 = sphi 0, %s333
      %s348 = sphi 0, %s334
      %s352 = sphi 0, %s352
      %s354 = sphi 0, %s352
      %s355 = sphi 0, %s354
      %s369 = sphi 0, %s355
      %s373 = sphi 0, %s373
      %s375 = sphi 0, %s373
      %s376 = sphi 0, %s375
      %s390 = sphi 0, %s376
      %s394 = sphi 0, %s394
      %s396 = sphi 0, %s394
      %s397 = sphi 0, %s396
      %s411 = sphi 0, %s397
      %s415 = sphi 0, %s415
      %s417 = sphi 0, %s415
      %s418 = sphi 0, %s417
      %s432 = sphi 0, %s418
      %s436 = sphi 0, %s436
      %s438 = sphi 0, %s436
      %s439 = sphi 0, %s438
      %s453 = sphi 0, %s439
      %s457 = sphi 0, %s457
      %s459 = sphi 0, %s457
      %s460 = sphi 0, %s459
      %s474 = sphi 0, %s460
      %s478 = sphi 0, %s478
      %s480 = sphi 0, %s478
      %s481 = sphi 0, %s480
      %s495 = sphi 0, %s481
      %s499 = sphi 0, %s499
      %s501 = sphi 0, %s499
      %s502 = sphi 0, %s501
      %s516 = sphi 0, %s502
      %s520 = sphi 0, %s520
      %s522 = sphi 0, %s520
      %s523 = sphi 0, %s522
      %s537 = sphi 0, %s523
      %s541 = sphi 0, %s541
      %s543 = sphi 0, %s541
      %s544 = sphi 0, %s543
      %s558 = sphi 0, %s544
      %s562 = sphi 0, %s562
      %s564 = sphi 0, %s562
      %s565 = sphi 0, %s564
      %s579 = sphi 0, %s565
      %s583 = sphi 0, %s583
      %s585 = sphi 0, %s583
      %s586 = sphi 0, %s585
      %s600 = sphi 0, %s586
      %s604 = sphi 0, %s604
      %s606 = sphi 0, %s604
      %s607 = sphi 0, %s606
      %s621 = sphi 0, %s607
      %s625 = sphi 0, %s625
      %s627 = sphi 0, %s625
      %s628 = sphi 0, %s627
      %s642 = sphi 0, %s628
      %s646 = sphi 0, %s646
      %s648 = sphi 0, %s646
      %s649 = sphi 0, %s648
      %s663 = sphi 0, %s649
      %s667 = sphi 0, %s667
      %s669 = sphi 0, %s667
      %s670 = sphi 0, %s669
      %s684 = sphi 0, %s670
      %s688 = sphi 0, %s688
      %s690 = sphi 0, %s688
      %s691 = sphi 0, %s690
      %s705 = sphi 0, %s691
      %s709 = sphi 0, %s709
      %s711 = sphi 0, %s709
      %s712 = sphi 0, %s711
      %s726 = sphi 0, %s712
      %s730 = sphi 0, %s730
      %s732 = sphi 0, %s730
      %s733 = sphi 0, %s732
      %s747 = sphi 0, %s733
      %s753 = sphi 0, %s755
      %s756 = sphi 0, %s753
      %s757 = sphi 0, %s756
      %s773 = sphi 0, %s757
    $region4: #{conditional_decoder_layer.1} parent=1 // loop_header_branch
      %75 = sbr.rel (%p73) target = $region8
    $region5: #{conditional_decoder_layer.1} parent=1 // loop_body
      %s77 = ssub.s32 %s72, 1
      %s78 = ssub.s32 %s72, 2
      %s79 = sadd.s32 %s72, 1
      %s80 = ssub.s32 %s72, %s79
      %p81 = scmp.eq.s32.totalorder %s80, 0
      %s83 = sadd.s32 %s82, 1
      %s84 = scalar_select %p81, %s82, %s83
      %p87 = pneg %p81
      %p88 = scmp.eq.s32.totalorder %s72, 1
      %p89 = por %p87, %p88
      %p90 = scmp.ne.s32.totalorder %s82, %s85
      %p91 = scmp.eq.s32.totalorder %s72, 0
      %p92 = por %p90, %p91
      %p93 = scmp.ne.s32.totalorder %s82, %s85
      %p94 = scmp.eq.s32.totalorder %s77, 1
      %p95 = por %p93, %p94
      %p96 = scmp.ne.s32.totalorder %s85, %s86
      %p97 = scmp.eq.s32.totalorder %s77, 0
      %p98 = por %p96, %p97
      %p99 = scmp.ne.s32.totalorder %s85, %s86
      %p100 = scmp.eq.s32.totalorder %s78, 1
      %p101 = por %p99, %p100
      %p103 = scmp.ne.s32.totalorder %s86, %s102
      %p104 = scmp.eq.s32.totalorder %s78, 0
      %p105 = por %p103, %p104
      %s106 = ssub.s32 %s72, %s79
      %p107 = scmp.eq.s32.totalorder %s106, 0
      %s109 = sadd.s32 %s108, 1
      %s110 = scalar_select %p107, %s108, %s109
      %p113 = pneg %p107
      %p114 = scmp.eq.s32.totalorder %s72, 1
      %p115 = por %p113, %p114
      %p116 = scmp.ne.s32.totalorder %s108, %s111
      %p117 = scmp.eq.s32.totalorder %s72, 0
      %p118 = por %p116, %p117
      %p119 = scmp.ne.s32.totalorder %s108, %s111
      %p120 = scmp.eq.s32.totalorder %s77, 1
      %p121 = por %p119, %p120
      %p122 = scmp.ne.s32.totalorder %s111, %s112
      %p123 = scmp.eq.s32.totalorder %s77, 0
      %p124 = por %p122, %p123
      %p125 = scmp.ne.s32.totalorder %s111, %s112
      %p126 = scmp.eq.s32.totalorder %s78, 1
      %p127 = por %p125, %p126
      %p129 = scmp.ne.s32.totalorder %s112, %s128
      %p130 = scmp.eq.s32.totalorder %s78, 0
      %p131 = por %p129, %p130
      %s132 = ssub.s32 %s72, %s79
      %p133 = scmp.eq.s32.totalorder %s132, 0
      %s135 = sadd.s32 %s134, 1
      %s136 = scalar_select %p133, %s134, %s135
      %p139 = pneg %p133
      %p140 = scmp.eq.s32.totalorder %s72, 1
      %p141 = por %p139, %p140
      %p142 = scmp.ne.s32.totalorder %s134, %s137
      %p143 = scmp.eq.s32.totalorder %s72, 0
      %p144 = por %p142, %p143
      %p145 = scmp.ne.s32.totalorder %s134, %s137
      %p146 = scmp.eq.s32.totalorder %s77, 1
      %p147 = por %p145, %p146
      %p148 = scmp.ne.s32.totalorder %s137, %s138
      %p149 = scmp.eq.s32.totalorder %s77, 0
      %p150 = por %p148, %p149
      %p151 = scmp.ne.s32.totalorder %s137, %s138
      %p152 = scmp.eq.s32.totalorder %s78, 1
      %p153 = por %p151, %p152
      %p155 = scmp.ne.s32.totalorder %s138, %s154
      %p156 = scmp.eq.s32.totalorder %s78, 0
      %p157 = por %p155, %p156
      %s158 = ssub.s32 %s72, %s79
      %p159 = scmp.eq.s32.totalorder %s158, 0
      %s161 = sadd.s32 %s160, 1
      %s162 = scalar_select %p159, %s160, %s161
      %p165 = pneg %p159
      %p166 = scmp.eq.s32.totalorder %s72, 1
      %p167 = por %p165, %p166
      %p168 = scmp.ne.s32.totalorder %s160, %s163
      %p169 = scmp.eq.s32.totalorder %s72, 0
      %p170 = por %p168, %p169
      %p171 = scmp.ne.s32.totalorder %s160, %s163
      %p172 = scmp.eq.s32.totalorder %s77, 1
      %p173 = por %p171, %p172
      %p174 = scmp.ne.s32.totalorder %s163, %s164
      %p175 = scmp.eq.s32.totalorder %s77, 0
      %p176 = por %p174, %p175
      %p177 = scmp.ne.s32.totalorder %s163, %s164
      %p178 = scmp.eq.s32.totalorder %s78, 1
      %p179 = por %p177, %p178
      %p181 = scmp.ne.s32.totalorder %s164, %s180
      %p182 = scmp.eq.s32.totalorder %s78, 0
      %p183 = por %p181, %p182
      %s185 = sadd.s32 %s184, 1
      %p188 = scmp.eq.s32.totalorder %s72, 1
      %p189 = scmp.ne.s32.totalorder %s184, %s186
      %p190 = scmp.eq.s32.totalorder %s72, 0
      %p191 = por %p189, %p190
      %p192 = scmp.ne.s32.totalorder %s184, %s186
      %p193 = scmp.eq.s32.totalorder %s77, 1
      %p194 = por %p192, %p193
      %p195 = scmp.ne.s32.totalorder %s186, %s187
      %p196 = scmp.eq.s32.totalorder %s77, 0
      %p197 = por %p195, %p196
      %p198 = scmp.ne.s32.totalorder %s186, %s187
      %p199 = scmp.eq.s32.totalorder %s78, 1
      %p200 = por %p198, %p199
      %p202 = scmp.ne.s32.totalorder %s187, %s201
      %p203 = scmp.eq.s32.totalorder %s78, 0
      %p204 = por %p202, %p203
      %s206 = sadd.s32 %s205, 1
      %p209 = scmp.eq.s32.totalorder %s72, 1
      %p210 = scmp.ne.s32.totalorder %s205, %s207
      %p211 = scmp.eq.s32.totalorder %s72, 0
      %p212 = por %p210, %p211
      %p213 = scmp.ne.s32.totalorder %s205, %s207
      %p214 = scmp.eq.s32.totalorder %s77, 1
      %p215 = por %p213, %p214
      %p216 = scmp.ne.s32.totalorder %s207, %s208
      %p217 = scmp.eq.s32.totalorder %s77, 0
      %p218 = por %p216, %p217
      %p219 = scmp.ne.s32.totalorder %s207, %s208
      %p220 = scmp.eq.s32.totalorder %s78, 1
      %p221 = por %p219, %p220
      %p223 = scmp.ne.s32.totalorder %s208, %s222
      %p224 = scmp.eq.s32.totalorder %s78, 0
      %p225 = por %p223, %p224
      %s227 = sadd.s32 %s226, 1
      %p230 = scmp.eq.s32.totalorder %s72, 1
      %p231 = scmp.ne.s32.totalorder %s226, %s228
      %p232 = scmp.eq.s32.totalorder %s72, 0
      %p233 = por %p231, %p232
      %p234 = scmp.ne.s32.totalorder %s226, %s228
      %p235 = scmp.eq.s32.totalorder %s77, 1
      %p236 = por %p234, %p235
      %p237 = scmp.ne.s32.totalorder %s228, %s229
      %p238 = scmp.eq.s32.totalorder %s77, 0
      %p239 = por %p237, %p238
      %p240 = scmp.ne.s32.totalorder %s228, %s229
      %p241 = scmp.eq.s32.totalorder %s78, 1
      %p242 = por %p240, %p241
      %p244 = scmp.ne.s32.totalorder %s229, %s243
      %p245 = scmp.eq.s32.totalorder %s78, 0
      %p246 = por %p244, %p245
      %s248 = sadd.s32 %s247, 1
      %p251 = scmp.eq.s32.totalorder %s72, 1
      %p252 = scmp.ne.s32.totalorder %s247, %s249
      %p253 = scmp.eq.s32.totalorder %s72, 0
      %p254 = por %p252, %p253
      %p255 = scmp.ne.s32.totalorder %s247, %s249
      %p256 = scmp.eq.s32.totalorder %s77, 1
      %p257 = por %p255, %p256
      %p258 = scmp.ne.s32.totalorder %s249, %s250
      %p259 = scmp.eq.s32.totalorder %s77, 0
      %p260 = por %p258, %p259
      %p261 = scmp.ne.s32.totalorder %s249, %s250
      %p262 = scmp.eq.s32.totalorder %s78, 1
      %p263 = por %p261, %p262
      %p265 = scmp.ne.s32.totalorder %s250, %s264
      %p266 = scmp.eq.s32.totalorder %s78, 0
      %p267 = por %p265, %p266
      %s269 = sadd.s32 %s268, 1
      %p272 = scmp.eq.s32.totalorder %s72, 1
      %p273 = scmp.ne.s32.totalorder %s268, %s270
      %p274 = scmp.eq.s32.totalorder %s72, 0
      %p275 = por %p273, %p274
      %p276 = scmp.ne.s32.totalorder %s268, %s270
      %p277 = scmp.eq.s32.totalorder %s77, 1
      %p278 = por %p276, %p277
      %p279 = scmp.ne.s32.totalorder %s270, %s271
      %p280 = scmp.eq.s32.totalorder %s77, 0
      %p281 = por %p279, %p280
      %p282 = scmp.ne.s32.totalorder %s270, %s271
      %p283 = scmp.eq.s32.totalorder %s78, 1
      %p284 = por %p282, %p283
      %p286 = scmp.ne.s32.totalorder %s271, %s285
      %p287 = scmp.eq.s32.totalorder %s78, 0
      %p288 = por %p286, %p287
      %s290 = sadd.s32 %s289, 1
      %p293 = scmp.eq.s32.totalorder %s72, 1
      %p294 = scmp.ne.s32.totalorder %s289, %s291
      %p295 = scmp.eq.s32.totalorder %s72, 0
      %p296 = por %p294, %p295
      %p297 = scmp.ne.s32.totalorder %s289, %s291
      %p298 = scmp.eq.s32.totalorder %s77, 1
      %p299 = por %p297, %p298
      %p300 = scmp.ne.s32.totalorder %s291, %s292
      %p301 = scmp.eq.s32.totalorder %s77, 0
      %p302 = por %p300, %p301
      %p303 = scmp.ne.s32.totalorder %s291, %s292
      %p304 = scmp.eq.s32.totalorder %s78, 1
      %p305 = por %p303, %p304
      %p307 = scmp.ne.s32.totalorder %s292, %s306
      %p308 = scmp.eq.s32.totalorder %s78, 0
      %p309 = por %p307, %p308
      %s311 = sadd.s32 %s310, 1
      %p314 = scmp.eq.s32.totalorder %s72, 1
      %p315 = scmp.ne.s32.totalorder %s310, %s312
      %p316 = scmp.eq.s32.totalorder %s72, 0
      %p317 = por %p315, %p316
      %p318 = scmp.ne.s32.totalorder %s310, %s312
      %p319 = scmp.eq.s32.totalorder %s77, 1
      %p320 = por %p318, %p319
      %p321 = scmp.ne.s32.totalorder %s312, %s313
      %p322 = scmp.eq.s32.totalorder %s77, 0
      %p323 = por %p321, %p322
      %p324 = scmp.ne.s32.totalorder %s312, %s313
      %p325 = scmp.eq.s32.totalorder %s78, 1
      %p326 = por %p324, %p325
      %p328 = scmp.ne.s32.totalorder %s313, %s327
      %p329 = scmp.eq.s32.totalorder %s78, 0
      %p330 = por %p328, %p329
      %s332 = sadd.s32 %s331, 1
      %p335 = scmp.eq.s32.totalorder %s72, 1
      %p336 = scmp.ne.s32.totalorder %s331, %s333
      %p337 = scmp.eq.s32.totalorder %s72, 0
      %p338 = por %p336, %p337
      %p339 = scmp.ne.s32.totalorder %s331, %s333
      %p340 = scmp.eq.s32.totalorder %s77, 1
      %p341 = por %p339, %p340
      %p342 = scmp.ne.s32.totalorder %s333, %s334
      %p343 = scmp.eq.s32.totalorder %s77, 0
      %p344 = por %p342, %p343
      %p345 = scmp.ne.s32.totalorder %s333, %s334
      %p346 = scmp.eq.s32.totalorder %s78, 1
      %p347 = por %p345, %p346
      %p349 = scmp.ne.s32.totalorder %s334, %s348
      %p350 = scmp.eq.s32.totalorder %s78, 0
      %p351 = por %p349, %p350
      %s353 = sadd.s32 %s352, 1
      %p356 = scmp.eq.s32.totalorder %s72, 1
      %p357 = scmp.ne.s32.totalorder %s352, %s354
      %p358 = scmp.eq.s32.totalorder %s72, 0
      %p359 = por %p357, %p358
      %p360 = scmp.ne.s32.totalorder %s352, %s354
      %p361 = scmp.eq.s32.totalorder %s77, 1
      %p362 = por %p360, %p361
      %p363 = scmp.ne.s32.totalorder %s354, %s355
      %p364 = scmp.eq.s32.totalorder %s77, 0
      %p365 = por %p363, %p364
      %p366 = scmp.ne.s32.totalorder %s354, %s355
      %p367 = scmp.eq.s32.totalorder %s78, 1
      %p368 = por %p366, %p367
      %p370 = scmp.ne.s32.totalorder %s355, %s369
      %p371 = scmp.eq.s32.totalorder %s78, 0
      %p372 = por %p370, %p371
      %s374 = sadd.s32 %s373, 1
      %p377 = scmp.eq.s32.totalorder %s72, 1
      %p378 = scmp.ne.s32.totalorder %s373, %s375
      %p379 = scmp.eq.s32.totalorder %s72, 0
      %p380 = por %p378, %p379
      %p381 = scmp.ne.s32.totalorder %s373, %s375
      %p382 = scmp.eq.s32.totalorder %s77, 1
      %p383 = por %p381, %p382
      %p384 = scmp.ne.s32.totalorder %s375, %s376
      %p385 = scmp.eq.s32.totalorder %s77, 0
      %p386 = por %p384, %p385
      %p387 = scmp.ne.s32.totalorder %s375, %s376
      %p388 = scmp.eq.s32.totalorder %s78, 1
      %p389 = por %p387, %p388
      %p391 = scmp.ne.s32.totalorder %s376, %s390
      %p392 = scmp.eq.s32.totalorder %s78, 0
      %p393 = por %p391, %p392
      %s395 = sadd.s32 %s394, 1
      %p398 = scmp.eq.s32.totalorder %s72, 1
      %p399 = scmp.ne.s32.totalorder %s394, %s396
      %p400 = scmp.eq.s32.totalorder %s72, 0
      %p401 = por %p399, %p400
      %p402 = scmp.ne.s32.totalorder %s394, %s396
      %p403 = scmp.eq.s32.totalorder %s77, 1
      %p404 = por %p402, %p403
      %p405 = scmp.ne.s32.totalorder %s396, %s397
      %p406 = scmp.eq.s32.totalorder %s77, 0
      %p407 = por %p405, %p406
      %p408 = scmp.ne.s32.totalorder %s396, %s397
      %p409 = scmp.eq.s32.totalorder %s78, 1
      %p410 = por %p408, %p409
      %p412 = scmp.ne.s32.totalorder %s397, %s411
      %p413 = scmp.eq.s32.totalorder %s78, 0
      %p414 = por %p412, %p413
      %s416 = sadd.s32 %s415, 1
      %p419 = scmp.eq.s32.totalorder %s72, 1
      %p420 = scmp.ne.s32.totalorder %s415, %s417
      %p421 = scmp.eq.s32.totalorder %s72, 0
      %p422 = por %p420, %p421
      %p423 = scmp.ne.s32.totalorder %s415, %s417
      %p424 = scmp.eq.s32.totalorder %s77, 1
      %p425 = por %p423, %p424
      %p426 = scmp.ne.s32.totalorder %s417, %s418
      %p427 = scmp.eq.s32.totalorder %s77, 0
      %p428 = por %p426, %p427
      %p429 = scmp.ne.s32.totalorder %s417, %s418
      %p430 = scmp.eq.s32.totalorder %s78, 1
      %p431 = por %p429, %p430
      %p433 = scmp.ne.s32.totalorder %s418, %s432
      %p434 = scmp.eq.s32.totalorder %s78, 0
      %p435 = por %p433, %p434
      %s437 = sadd.s32 %s436, 1
      %p440 = scmp.eq.s32.totalorder %s72, 1
      %p441 = scmp.ne.s32.totalorder %s436, %s438
      %p442 = scmp.eq.s32.totalorder %s72, 0
      %p443 = por %p441, %p442
      %p444 = scmp.ne.s32.totalorder %s436, %s438
      %p445 = scmp.eq.s32.totalorder %s77, 1
      %p446 = por %p444, %p445
      %p447 = scmp.ne.s32.totalorder %s438, %s439
      %p448 = scmp.eq.s32.totalorder %s77, 0
      %p449 = por %p447, %p448
      %p450 = scmp.ne.s32.totalorder %s438, %s439
      %p451 = scmp.eq.s32.totalorder %s78, 1
      %p452 = por %p450, %p451
      %p454 = scmp.ne.s32.totalorder %s439, %s453
      %p455 = scmp.eq.s32.totalorder %s78, 0
      %p456 = por %p454, %p455
      %s458 = sadd.s32 %s457, 1
      %p461 = scmp.eq.s32.totalorder %s72, 1
      %p462 = scmp.ne.s32.totalorder %s457, %s459
      %p463 = scmp.eq.s32.totalorder %s72, 0
      %p464 = por %p462, %p463
      %p465 = scmp.ne.s32.totalorder %s457, %s459
      %p466 = scmp.eq.s32.totalorder %s77, 1
      %p467 = por %p465, %p466
      %p468 = scmp.ne.s32.totalorder %s459, %s460
      %p469 = scmp.eq.s32.totalorder %s77, 0
      %p470 = por %p468, %p469
      %p471 = scmp.ne.s32.totalorder %s459, %s460
      %p472 = scmp.eq.s32.totalorder %s78, 1
      %p473 = por %p471, %p472
      %p475 = scmp.ne.s32.totalorder %s460, %s474
      %p476 = scmp.eq.s32.totalorder %s78, 0
      %p477 = por %p475, %p476
      %s479 = sadd.s32 %s478, 1
      %p482 = scmp.eq.s32.totalorder %s72, 1
      %p483 = scmp.ne.s32.totalorder %s478, %s480
      %p484 = scmp.eq.s32.totalorder %s72, 0
      %p485 = por %p483, %p484
      %p486 = scmp.ne.s32.totalorder %s478, %s480
      %p487 = scmp.eq.s32.totalorder %s77, 1
      %p488 = por %p486, %p487
      %p489 = scmp.ne.s32.totalorder %s480, %s481
      %p490 = scmp.eq.s32.totalorder %s77, 0
      %p491 = por %p489, %p490
      %p492 = scmp.ne.s32.totalorder %s480, %s481
      %p493 = scmp.eq.s32.totalorder %s78, 1
      %p494 = por %p492, %p493
      %p496 = scmp.ne.s32.totalorder %s481, %s495
      %p497 = scmp.eq.s32.totalorder %s78, 0
      %p498 = por %p496, %p497
      %s500 = sadd.s32 %s499, 1
      %p503 = scmp.eq.s32.totalorder %s72, 1
      %p504 = scmp.ne.s32.totalorder %s499, %s501
      %p505 = scmp.eq.s32.totalorder %s72, 0
      %p506 = por %p504, %p505
      %p507 = scmp.ne.s32.totalorder %s499, %s501
      %p508 = scmp.eq.s32.totalorder %s77, 1
      %p509 = por %p507, %p508
      %p510 = scmp.ne.s32.totalorder %s501, %s502
      %p511 = scmp.eq.s32.totalorder %s77, 0
      %p512 = por %p510, %p511
      %p513 = scmp.ne.s32.totalorder %s501, %s502
      %p514 = scmp.eq.s32.totalorder %s78, 1
      %p515 = por %p513, %p514
      %p517 = scmp.ne.s32.totalorder %s502, %s516
      %p518 = scmp.eq.s32.totalorder %s78, 0
      %p519 = por %p517, %p518
      %s521 = sadd.s32 %s520, 1
      %p524 = scmp.eq.s32.totalorder %s72, 1
      %p525 = scmp.ne.s32.totalorder %s520, %s522
      %p526 = scmp.eq.s32.totalorder %s72, 0
      %p527 = por %p525, %p526
      %p528 = scmp.ne.s32.totalorder %s520, %s522
      %p529 = scmp.eq.s32.totalorder %s77, 1
      %p530 = por %p528, %p529
      %p531 = scmp.ne.s32.totalorder %s522, %s523
      %p532 = scmp.eq.s32.totalorder %s77, 0
      %p533 = por %p531, %p532
      %p534 = scmp.ne.s32.totalorder %s522, %s523
      %p535 = scmp.eq.s32.totalorder %s78, 1
      %p536 = por %p534, %p535
      %p538 = scmp.ne.s32.totalorder %s523, %s537
      %p539 = scmp.eq.s32.totalorder %s78, 0
      %p540 = por %p538, %p539
      %s542 = sadd.s32 %s541, 1
      %p545 = scmp.eq.s32.totalorder %s72, 1
      %p546 = scmp.ne.s32.totalorder %s541, %s543
      %p547 = scmp.eq.s32.totalorder %s72, 0
      %p548 = por %p546, %p547
      %p549 = scmp.ne.s32.totalorder %s541, %s543
      %p550 = scmp.eq.s32.totalorder %s77, 1
      %p551 = por %p549, %p550
      %p552 = scmp.ne.s32.totalorder %s543, %s544
      %p553 = scmp.eq.s32.totalorder %s77, 0
      %p554 = por %p552, %p553
      %p555 = scmp.ne.s32.totalorder %s543, %s544
      %p556 = scmp.eq.s32.totalorder %s78, 1
      %p557 = por %p555, %p556
      %p559 = scmp.ne.s32.totalorder %s544, %s558
      %p560 = scmp.eq.s32.totalorder %s78, 0
      %p561 = por %p559, %p560
      %s563 = sadd.s32 %s562, 1
      %p566 = scmp.eq.s32.totalorder %s72, 1
      %p567 = scmp.ne.s32.totalorder %s562, %s564
      %p568 = scmp.eq.s32.totalorder %s72, 0
      %p569 = por %p567, %p568
      %p570 = scmp.ne.s32.totalorder %s562, %s564
      %p571 = scmp.eq.s32.totalorder %s77, 1
      %p572 = por %p570, %p571
      %p573 = scmp.ne.s32.totalorder %s564, %s565
      %p574 = scmp.eq.s32.totalorder %s77, 0
      %p575 = por %p573, %p574
      %p576 = scmp.ne.s32.totalorder %s564, %s565
      %p577 = scmp.eq.s32.totalorder %s78, 1
      %p578 = por %p576, %p577
      %p580 = scmp.ne.s32.totalorder %s565, %s579
      %p581 = scmp.eq.s32.totalorder %s78, 0
      %p582 = por %p580, %p581
      %s584 = sadd.s32 %s583, 1
      %p587 = scmp.eq.s32.totalorder %s72, 1
      %p588 = scmp.ne.s32.totalorder %s583, %s585
      %p589 = scmp.eq.s32.totalorder %s72, 0
      %p590 = por %p588, %p589
      %p591 = scmp.ne.s32.totalorder %s583, %s585
      %p592 = scmp.eq.s32.totalorder %s77, 1
      %p593 = por %p591, %p592
      %p594 = scmp.ne.s32.totalorder %s585, %s586
      %p595 = scmp.eq.s32.totalorder %s77, 0
      %p596 = por %p594, %p595
      %p597 = scmp.ne.s32.totalorder %s585, %s586
      %p598 = scmp.eq.s32.totalorder %s78, 1
      %p599 = por %p597, %p598
      %p601 = scmp.ne.s32.totalorder %s586, %s600
      %p602 = scmp.eq.s32.totalorder %s78, 0
      %p603 = por %p601, %p602
      %s605 = sadd.s32 %s604, 1
      %p608 = scmp.eq.s32.totalorder %s72, 1
      %p609 = scmp.ne.s32.totalorder %s604, %s606
      %p610 = scmp.eq.s32.totalorder %s72, 0
      %p611 = por %p609, %p610
      %p612 = scmp.ne.s32.totalorder %s604, %s606
      %p613 = scmp.eq.s32.totalorder %s77, 1
      %p614 = por %p612, %p613
      %p615 = scmp.ne.s32.totalorder %s606, %s607
      %p616 = scmp.eq.s32.totalorder %s77, 0
      %p617 = por %p615, %p616
      %p618 = scmp.ne.s32.totalorder %s606, %s607
      %p619 = scmp.eq.s32.totalorder %s78, 1
      %p620 = por %p618, %p619
      %p622 = scmp.ne.s32.totalorder %s607, %s621
      %p623 = scmp.eq.s32.totalorder %s78, 0
      %p624 = por %p622, %p623
      %s626 = sadd.s32 %s625, 1
      %p629 = scmp.eq.s32.totalorder %s72, 1
      %p630 = scmp.ne.s32.totalorder %s625, %s627
      %p631 = scmp.eq.s32.totalorder %s72, 0
      %p632 = por %p630, %p631
      %p633 = scmp.ne.s32.totalorder %s625, %s627
      %p634 = scmp.eq.s32.totalorder %s77, 1
      %p635 = por %p633, %p634
      %p636 = scmp.ne.s32.totalorder %s627, %s628
      %p637 = scmp.eq.s32.totalorder %s77, 0
      %p638 = por %p636, %p637
      %p639 = scmp.ne.s32.totalorder %s627, %s628
      %p640 = scmp.eq.s32.totalorder %s78, 1
      %p641 = por %p639, %p640
      %p643 = scmp.ne.s32.totalorder %s628, %s642
      %p644 = scmp.eq.s32.totalorder %s78, 0
      %p645 = por %p643, %p644
      %s647 = sadd.s32 %s646, 1
      %p650 = scmp.eq.s32.totalorder %s72, 1
      %p651 = scmp.ne.s32.totalorder %s646, %s648
      %p652 = scmp.eq.s32.totalorder %s72, 0
      %p653 = por %p651, %p652
      %p654 = scmp.ne.s32.totalorder %s646, %s648
      %p655 = scmp.eq.s32.totalorder %s77, 1
      %p656 = por %p654, %p655
      %p657 = scmp.ne.s32.totalorder %s648, %s649
      %p658 = scmp.eq.s32.totalorder %s77, 0
      %p659 = por %p657, %p658
      %p660 = scmp.ne.s32.totalorder %s648, %s649
      %p661 = scmp.eq.s32.totalorder %s78, 1
      %p662 = por %p660, %p661
      %p664 = scmp.ne.s32.totalorder %s649, %s663
      %p665 = scmp.eq.s32.totalorder %s78, 0
      %p666 = por %p664, %p665
      %s668 = sadd.s32 %s667, 1
      %p671 = scmp.eq.s32.totalorder %s72, 1
      %p672 = scmp.ne.s32.totalorder %s667, %s669
      %p673 = scmp.eq.s32.totalorder %s72, 0
      %p674 = por %p672, %p673
      %p675 = scmp.ne.s32.totalorder %s667, %s669
      %p676 = scmp.eq.s32.totalorder %s77, 1
      %p677 = por %p675, %p676
      %p678 = scmp.ne.s32.totalorder %s669, %s670
      %p679 = scmp.eq.s32.totalorder %s77, 0
      %p680 = por %p678, %p679
      %p681 = scmp.ne.s32.totalorder %s669, %s670
      %p682 = scmp.eq.s32.totalorder %s78, 1
      %p683 = por %p681, %p682
      %p685 = scmp.ne.s32.totalorder %s670, %s684
      %p686 = scmp.eq.s32.totalorder %s78, 0
      %p687 = por %p685, %p686
      %s689 = sadd.s32 %s688, 1
      %p692 = scmp.eq.s32.totalorder %s72, 1
      %p693 = scmp.ne.s32.totalorder %s688, %s690
      %p694 = scmp.eq.s32.totalorder %s72, 0
      %p695 = por %p693, %p694
      %p696 = scmp.ne.s32.totalorder %s688, %s690
      %p697 = scmp.eq.s32.totalorder %s77, 1
      %p698 = por %p696, %p697
      %p699 = scmp.ne.s32.totalorder %s690, %s691
      %p700 = scmp.eq.s32.totalorder %s77, 0
      %p701 = por %p699, %p700
      %p702 = scmp.ne.s32.totalorder %s690, %s691
      %p703 = scmp.eq.s32.totalorder %s78, 1
      %p704 = por %p702, %p703
      %p706 = scmp.ne.s32.totalorder %s691, %s705
      %p707 = scmp.eq.s32.totalorder %s78, 0
      %p708 = por %p706, %p707
      %s710 = sadd.s32 %s709, 1
      %p713 = scmp.eq.s32.totalorder %s72, 1
      %p714 = scmp.ne.s32.totalorder %s709, %s711
      %p715 = scmp.eq.s32.totalorder %s72, 0
      %p716 = por %p714, %p715
      %p717 = scmp.ne.s32.totalorder %s709, %s711
      %p718 = scmp.eq.s32.totalorder %s77, 1
      %p719 = por %p717, %p718
      %p720 = scmp.ne.s32.totalorder %s711, %s712
      %p721 = scmp.eq.s32.totalorder %s77, 0
      %p722 = por %p720, %p721
      %p723 = scmp.ne.s32.totalorder %s711, %s712
      %p724 = scmp.eq.s32.totalorder %s78, 1
      %p725 = por %p723, %p724
      %p727 = scmp.ne.s32.totalorder %s712, %s726
      %p728 = scmp.eq.s32.totalorder %s78, 0
      %p729 = por %p727, %p728
      %s731 = sadd.s32 %s730, 1
      %p734 = scmp.eq.s32.totalorder %s72, 1
      %p735 = scmp.ne.s32.totalorder %s730, %s732
      %p736 = scmp.eq.s32.totalorder %s72, 0
      %p737 = por %p735, %p736
      %p738 = scmp.ne.s32.totalorder %s730, %s732
      %p739 = scmp.eq.s32.totalorder %s77, 1
      %p740 = por %p738, %p739
      %p741 = scmp.ne.s32.totalorder %s732, %s733
      %p742 = scmp.eq.s32.totalorder %s77, 0
      %p743 = por %p741, %p742
      %p744 = scmp.ne.s32.totalorder %s732, %s733
      %p745 = scmp.eq.s32.totalorder %s78, 1
      %p746 = por %p744, %p745
      %p748 = scmp.ne.s32.totalorder %s733, %s747
      %p749 = scmp.eq.s32.totalorder %s78, 0
      %p750 = por %p748, %p749
      %s751 = ssub.s32 %s72, %s79
      %p752 = scmp.eq.s32.totalorder %s751, 0
      %s754 = sadd.s32 %s753, 1
      %s755 = scalar_select %p752, %s753, %s754
      %p758 = pneg %p752
      %p759 = scmp.eq.s32.totalorder %s72, 1
      %p760 = por %p758, %p759
      %p761 = scmp.ne.s32.totalorder %s753, %s756
      %p762 = scmp.eq.s32.totalorder %s72, 0
      %p763 = por %p761, %p762
      %p764 = scmp.ne.s32.totalorder %s753, %s756
      %p765 = scmp.eq.s32.totalorder %s77, 1
      %p766 = por %p764, %p765
      %p767 = scmp.ne.s32.totalorder %s756, %s757
      %p768 = scmp.eq.s32.totalorder %s77, 0
      %p769 = por %p767, %p768
      %p770 = scmp.ne.s32.totalorder %s756, %s757
      %p771 = scmp.eq.s32.totalorder %s78, 1
      %p772 = por %p770, %p771
      %p774 = scmp.ne.s32.totalorder %s757, %s773
      %p775 = scmp.eq.s32.totalorder %s78, 0
      %p776 = por %p774, %p775
      %p777 = scmp.le.s32.totalorder 1, %s72
      %p778 = scmp.lt.s32.totalorder %s72, 3
      %p779 = pnand %p777, %p778
      %p780 = pneg %p779
      // Predicated region
      $region9: #{conditional_decoder_layer.1} parent=5 // pred_check
        _
      $region10: #{conditional_decoder_layer.1} parent=5 // pred_check_branch
        %782 = sbr.rel (%p779) target = $region12
      $region11: #{conditional_decoder_layer.1} parent=5 // pred_region
        %s783 = ssub.s32 %s72, 1
        // Predicated region
        $region13: #{conditional_decoder_layer.1} parent=11 // pred_check
          %p784 = pneg %p197
        $region14: #{conditional_decoder_layer.1} parent=11 // pred_check_branch
          %786 = sbr.rel (%p784) target = $region16
        $region15: #{conditional_decoder_layer.1} parent=11 // pred_region
          _
        $region16: #{conditional_decoder_layer.1} parent=11 // pred_fallthru
          _
        // Predicated region
        $region17: #{conditional_decoder_layer.1} parent=11 // pred_check
          %p787 = pneg %p218
        $region18: #{conditional_decoder_layer.1} parent=11 // pred_check_branch
          %789 = sbr.rel (%p787) target = $region20
        $region19: #{conditional_decoder_layer.1} parent=11 // pred_region
          _
        $region20: #{conditional_decoder_layer.1} parent=11 // pred_fallthru
          _
        // Predicated region
        $region21: #{conditional_decoder_layer.1} parent=11 // pred_check
          %p790 = pneg %p239
        $region22: #{conditional_decoder_layer.1} parent=11 // pred_check_branch
          %792 = sbr.rel (%p790) target = $region24
        $region23: #{conditional_decoder_layer.1} parent=11 // pred_region
          _
        $region24: #{conditional_decoder_layer.1} parent=11 // pred_fallthru
          _
        // Predicated region
        $region25: #{conditional_decoder_layer.1} parent=11 // pred_check
          %p793 = pneg %p260
        $region26: #{conditional_decoder_layer.1} parent=11 // pred_check_branch
          %795 = sbr.rel (%p793) target = $region28
        $region27: #{conditional_decoder_layer.1} parent=11 // pred_region
          _
        $region28: #{conditional_decoder_layer.1} parent=11 // pred_fallthru
          _
        // Predicated region
        $region29: #{conditional_decoder_layer.1} parent=11 // pred_check
          %p796 = pneg %p281
        $region30: #{conditional_decoder_layer.1} parent=11 // pred_check_branch
          %798 = sbr.rel (%p796) target = $region32
        $region31: #{conditional_decoder_layer.1} parent=11 // pred_region
          _
        $region32: #{conditional_decoder_layer.1} parent=11 // pred_fallthru
          _
        // Predicated region
        $region33: #{conditional_decoder_layer.1} parent=11 // pred_check
          %p799 = pneg %p302
        $region34: #{conditional_decoder_layer.1} parent=11 // pred_check_branch
          %801 = sbr.rel (%p799) target = $region36
        $region35: #{conditional_decoder_layer.1} parent=11 // pred_region
          _
        $region36: #{conditional_decoder_layer.1} parent=11 // pred_fallthru
          _
        // Predicated region
        $region37: #{conditional_decoder_layer.1} parent=11 // pred_check
          %p802 = pneg %p323
        $region38: #{conditional_decoder_layer.1} parent=11 // pred_check_branch
          %804 = sbr.rel (%p802) target = $region40
        $region39: #{conditional_decoder_layer.1} parent=11 // pred_region
          _
        $region40: #{conditional_decoder_layer.1} parent=11 // pred_fallthru
          _
        // Predicated region
        $region41: #{conditional_decoder_layer.1} parent=11 // pred_check
          %p805 = pneg %p344
        $region42: #{conditional_decoder_layer.1} parent=11 // pred_check_branch
          %807 = sbr.rel (%p805) target = $region44
        $region43: #{conditional_decoder_layer.1} parent=11 // pred_region
          _
        $region44: #{conditional_decoder_layer.1} parent=11 // pred_fallthru
          _
        // Predicated region
        $region45: #{conditional_decoder_layer.1} parent=11 // pred_check
          %p808 = pneg %p365
        $region46: #{conditional_decoder_layer.1} parent=11 // pred_check_branch
          %810 = sbr.rel (%p808) target = $region48
        $region47: #{conditional_decoder_layer.1} parent=11 // pred_region
          _
        $region48: #{conditional_decoder_layer.1} parent=11 // pred_fallthru
          _
        // Predicated region
        $region49: #{conditional_decoder_layer.1} parent=11 // pred_check
          %p811 = pneg %p386
        $region50: #{conditional_decoder_layer.1} parent=11 // pred_check_branch
          %813 = sbr.rel (%p811) target = $region52
        $region51: #{conditional_decoder_layer.1} parent=11 // pred_region
          _
        $region52: #{conditional_decoder_layer.1} parent=11 // pred_fallthru
          _
        // Predicated region
        $region53: #{conditional_decoder_layer.1} parent=11 // pred_check
          %p814 = pneg %p407
        $region54: #{conditional_decoder_layer.1} parent=11 // pred_check_branch
          %816 = sbr.rel (%p814) target = $region56
        $region55: #{conditional_decoder_layer.1} parent=11 // pred_region
          _
        $region56: #{conditional_decoder_layer.1} parent=11 // pred_fallthru
          _
        // Predicated region
        $region57: #{conditional_decoder_layer.1} parent=11 // pred_check
          %p817 = pneg %p428
        $region58: #{conditional_decoder_layer.1} parent=11 // pred_check_branch
          %819 = sbr.rel (%p817) target = $region60
        $region59: #{conditional_decoder_layer.1} parent=11 // pred_region
          _
        $region60: #{conditional_decoder_layer.1} parent=11 // pred_fallthru
          _
        // Predicated region
        $region61: #{conditional_decoder_layer.1} parent=11 // pred_check
          %p820 = pneg %p449
        $region62: #{conditional_decoder_layer.1} parent=11 // pred_check_branch
          %822 = sbr.rel (%p820) target = $region64
        $region63: #{conditional_decoder_layer.1} parent=11 // pred_region
          _
        $region64: #{conditional_decoder_layer.1} parent=11 // pred_fallthru
          _
        // Predicated region
        $region65: #{conditional_decoder_layer.1} parent=11 // pred_check
          %p823 = pneg %p470
        $region66: #{conditional_decoder_layer.1} parent=11 // pred_check_branch
          %825 = sbr.rel (%p823) target = $region68
        $region67: #{conditional_decoder_layer.1} parent=11 // pred_region
          _
        $region68: #{conditional_decoder_layer.1} parent=11 // pred_fallthru
          _
        // Predicated region
        $region69: #{conditional_decoder_layer.1} parent=11 // pred_check
          %p826 = pneg %p491
        $region70: #{conditional_decoder_layer.1} parent=11 // pred_check_branch
          %828 = sbr.rel (%p826) target = $region72
        $region71: #{conditional_decoder_layer.1} parent=11 // pred_region
          _
        $region72: #{conditional_decoder_layer.1} parent=11 // pred_fallthru
          _
        // Predicated region
        $region73: #{conditional_decoder_layer.1} parent=11 // pred_check
          %p829 = pneg %p512
        $region74: #{conditional_decoder_layer.1} parent=11 // pred_check_branch
          %831 = sbr.rel (%p829) target = $region76
        $region75: #{conditional_decoder_layer.1} parent=11 // pred_region
          _
        $region76: #{conditional_decoder_layer.1} parent=11 // pred_fallthru
          _
        // Predicated region
        $region77: #{conditional_decoder_layer.1} parent=11 // pred_check
          %p832 = pneg %p533
        $region78: #{conditional_decoder_layer.1} parent=11 // pred_check_branch
          %834 = sbr.rel (%p832) target = $region80
        $region79: #{conditional_decoder_layer.1} parent=11 // pred_region
          _
        $region80: #{conditional_decoder_layer.1} parent=11 // pred_fallthru
          _
        // Predicated region
        $region81: #{conditional_decoder_layer.1} parent=11 // pred_check
          %p835 = pneg %p554
        $region82: #{conditional_decoder_layer.1} parent=11 // pred_check_branch
          %837 = sbr.rel (%p835) target = $region84
        $region83: #{conditional_decoder_layer.1} parent=11 // pred_region
          _
        $region84: #{conditional_decoder_layer.1} parent=11 // pred_fallthru
          _
        // Predicated region
        $region85: #{conditional_decoder_layer.1} parent=11 // pred_check
          %p838 = pneg %p575
        $region86: #{conditional_decoder_layer.1} parent=11 // pred_check_branch
          %840 = sbr.rel (%p838) target = $region88
        $region87: #{conditional_decoder_layer.1} parent=11 // pred_region
          _
        $region88: #{conditional_decoder_layer.1} parent=11 // pred_fallthru
          _
        // Predicated region
        $region89: #{conditional_decoder_layer.1} parent=11 // pred_check
          %p841 = pneg %p596
        $region90: #{conditional_decoder_layer.1} parent=11 // pred_check_branch
          %843 = sbr.rel (%p841) target = $region92
        $region91: #{conditional_decoder_layer.1} parent=11 // pred_region
          _
        $region92: #{conditional_decoder_layer.1} parent=11 // pred_fallthru
          _
        // Predicated region
        $region93: #{conditional_decoder_layer.1} parent=11 // pred_check
          %p844 = pneg %p617
        $region94: #{conditional_decoder_layer.1} parent=11 // pred_check_branch
          %846 = sbr.rel (%p844) target = $region96
        $region95: #{conditional_decoder_layer.1} parent=11 // pred_region
          _
        $region96: #{conditional_decoder_layer.1} parent=11 // pred_fallthru
          _
        // Predicated region
        $region97: #{conditional_decoder_layer.1} parent=11 // pred_check
          %p847 = pneg %p638
        $region98: #{conditional_decoder_layer.1} parent=11 // pred_check_branch
          %849 = sbr.rel (%p847) target = $region100
        $region99: #{conditional_decoder_layer.1} parent=11 // pred_region
          _
        $region100: #{conditional_decoder_layer.1} parent=11 // pred_fallthru
          _
        // Predicated region
        $region101: #{conditional_decoder_layer.1} parent=11 // pred_check
          %p850 = pneg %p659
        $region102: #{conditional_decoder_layer.1} parent=11 // pred_check_branch
          %852 = sbr.rel (%p850) target = $region104
        $region103: #{conditional_decoder_layer.1} parent=11 // pred_region
          _
        $region104: #{conditional_decoder_layer.1} parent=11 // pred_fallthru
          _
        // Predicated region
        $region105: #{conditional_decoder_layer.1} parent=11 // pred_check
          %p853 = pneg %p680
        $region106: #{conditional_decoder_layer.1} parent=11 // pred_check_branch
          %855 = sbr.rel (%p853) target = $region108
        $region107: #{conditional_decoder_layer.1} parent=11 // pred_region
          _
        $region108: #{conditional_decoder_layer.1} parent=11 // pred_fallthru
          _
        // Predicated region
        $region109: #{conditional_decoder_layer.1} parent=11 // pred_check
          %p856 = pneg %p701
        $region110: #{conditional_decoder_layer.1} parent=11 // pred_check_branch
          %858 = sbr.rel (%p856) target = $region112
        $region111: #{conditional_decoder_layer.1} parent=11 // pred_region
          _
        $region112: #{conditional_decoder_layer.1} parent=11 // pred_fallthru
          _
        // Predicated region
        $region113: #{conditional_decoder_layer.1} parent=11 // pred_check
          %p859 = pneg %p722
        $region114: #{conditional_decoder_layer.1} parent=11 // pred_check_branch
          %861 = sbr.rel (%p859) target = $region116
        $region115: #{conditional_decoder_layer.1} parent=11 // pred_region
          _
        $region116: #{conditional_decoder_layer.1} parent=11 // pred_fallthru
          _
        // Predicated region
        $region117: #{conditional_decoder_layer.1} parent=11 // pred_check
          %p862 = pneg %p743
        $region118: #{conditional_decoder_layer.1} parent=11 // pred_check_branch
          %864 = sbr.rel (%p862) target = $region120
        $region119: #{conditional_decoder_layer.1} parent=11 // pred_region
          _
        $region120: #{conditional_decoder_layer.1} parent=11 // pred_fallthru
          _
      $region12: #{conditional_decoder_layer.1} parent=5 // pred_fallthru
        _
      %p865 = scmp.lt.s32.totalorder %s72, 2
      // Predicated region
      $region121: #{conditional_decoder_layer.1} parent=5 // pred_check
        %p866 = pneg %p865
      $region122: #{conditional_decoder_layer.1} parent=5 // pred_check_branch
        %868 = sbr.rel (%p866) target = $region124
      $region123: #{conditional_decoder_layer.1} parent=5 // pred_region
        // Predicated region
        $region125: #{conditional_decoder_layer.1} parent=123 // pred_check
          %p869 = pneg %p92
        $region126: #{conditional_decoder_layer.1} parent=123 // pred_check_branch
          %871 = sbr.rel (%p869) target = $region128
        $region127: #{conditional_decoder_layer.1} parent=123 // pred_region
          %p872 = scmp.lt.s32.totalorder %s72, 1
          %s873 = scalar_select %p872, %s72, 1
          %s874 = smul.addr %s873, 8
          %s875 = scalar_lea.vmem %s1, %s874
        $region128: #{conditional_decoder_layer.1} parent=123 // pred_fallthru
          _
        // Predicated region
        $region129: #{conditional_decoder_layer.1} parent=123 // pred_check
          %p876 = pneg %p118
        $region130: #{conditional_decoder_layer.1} parent=123 // pred_check_branch
          %878 = sbr.rel (%p876) target = $region132
        $region131: #{conditional_decoder_layer.1} parent=123 // pred_region
          %p879 = scmp.lt.s32.totalorder %s72, 1
          %s880 = scalar_select %p879, %s72, 1
          %s881 = smul.addr %s880, 8
          %s882 = scalar_lea.vmem %s3, %s881
        $region132: #{conditional_decoder_layer.1} parent=123 // pred_fallthru
          _
        // Predicated region
        $region133: #{conditional_decoder_layer.1} parent=123 // pred_check
          %p883 = pneg %p144
        $region134: #{conditional_decoder_layer.1} parent=123 // pred_check_branch
          %885 = sbr.rel (%p883) target = $region136
        $region135: #{conditional_decoder_layer.1} parent=123 // pred_region
          %p886 = scmp.lt.s32.totalorder %s72, 1
          %s887 = scalar_select %p886, %s72, 1
          %s888 = smul.addr %s887, 2
          %s889 = smul.addr %s888, 8
          %s890 = scalar_lea.vmem %s5, %s889
        $region136: #{conditional_decoder_layer.1} parent=123 // pred_fallthru
          _
        // Predicated region
        $region137: #{conditional_decoder_layer.1} parent=123 // pred_check
          %p891 = pneg %p170
        $region138: #{conditional_decoder_layer.1} parent=123 // pred_check_branch
          %893 = sbr.rel (%p891) target = $region140
        $region139: #{conditional_decoder_layer.1} parent=123 // pred_region
          %p894 = scmp.lt.s32.totalorder %s72, 1
          %s895 = scalar_select %p894, %s72, 1
          %s896 = smul.addr %s895, 8
          %s897 = scalar_lea.vmem %s7, %s896
        $region140: #{conditional_decoder_layer.1} parent=123 // pred_fallthru
          _
      $region124: #{conditional_decoder_layer.1} parent=5 // pred_fallthru
        _
      %p898 = scmp.le.s32.totalorder 1, %s72
      %p899 = scmp.lt.s32.totalorder %s72, 3
      %p900 = pnand %p898, %p899
      %p901 = pneg %p900
      // Predicated region
      $region141: #{conditional_decoder_layer.1} parent=5 // pred_check
        _
      $region142: #{conditional_decoder_layer.1} parent=5 // pred_check_branch
        %903 = sbr.rel (%p900) target = $region144
      $region143: #{conditional_decoder_layer.1} parent=5 // pred_region
        %s904 = ssub.s32 %s72, 1
        %p905 = scmp.lt.s32.totalorder %s77, 1
        %s906 = scalar_select %p905, %s77, 1
        %s907 = smul.addr %s906, 8
        %s908 = scalar_lea.vmem %s1, %s907
        %p909 = pneg %p98
        %p910 = pneg %p95
        %p911 = scmp.lt.s32.totalorder %s77, 1
        %s912 = scalar_select %p911, %s77, 1
        %s913 = smul.addr %s912, 8
        %s914 = scalar_lea.vmem %s3, %s913
        %p915 = pneg %p124
        %p916 = pneg %p121
        %p917 = scmp.lt.s32.totalorder %s77, 1
        %s918 = scalar_select %p917, %s77, 1
        %s919 = smul.addr %s918, 2
        %s920 = smul.addr %s919, 8
        %s921 = scalar_lea.vmem %s5, %s920
        %p922 = pneg %p150
        %p923 = pneg %p147
        %p924 = scmp.lt.s32.totalorder %s77, 1
        %s925 = scalar_select %p924, %s77, 1
        %s926 = smul.addr %s925, 8
        %s927 = scalar_lea.vmem %s7, %s926
        %p928 = pneg %p176
        %p929 = pneg %p173
        %p930 = pneg %p197
        %p931 = pneg %p194
        %p932 = pneg %p218
        %p933 = pneg %p215
        %p934 = pneg %p239
        %p935 = pneg %p236
        %p936 = pneg %p260
        %p937 = pneg %p257
        %p938 = pneg %p281
        %p939 = pneg %p278
        %p940 = pneg %p302
        %p941 = pneg %p299
        %p942 = pneg %p323
        %p943 = pneg %p320
        %p944 = pneg %p344
        %p945 = pneg %p341
        %p946 = pneg %p365
        %p947 = pneg %p362
        %p948 = pneg %p386
        %p949 = pneg %p383
        %p950 = pneg %p407
        %p951 = pneg %p404
        %p952 = pneg %p428
        %p953 = pneg %p425
        %p954 = pneg %p449
        %p955 = pneg %p446
        %p956 = pneg %p470
        %p957 = pneg %p467
        %p958 = pneg %p491
        %p959 = pneg %p488
        %p960 = pneg %p512
        %p961 = pneg %p509
        %p962 = pneg %p533
        %p963 = pneg %p530
        %p964 = pneg %p554
        %p965 = pneg %p551
        %p966 = pneg %p575
        %p967 = pneg %p572
        %p968 = pneg %p596
        %p969 = pneg %p593
        %p970 = pneg %p617
        %p971 = pneg %p614
        %p972 = pneg %p638
        %p973 = pneg %p635
        %p974 = pneg %p659
        %p975 = pneg %p656
        %p976 = pneg %p680
        %p977 = pneg %p677
        %p978 = pneg %p701
        %p979 = pneg %p698
        %p980 = pneg %p722
        %p981 = pneg %p719
        %p982 = pneg %p743
        %p983 = pneg %p740
        %p984 = pneg %p769
        %p985 = pneg %p766
        %s986 = sand.u32 %s756, 1
        %s987 = scalar_lea.sflag [#allocation3], %s986
        %s988 = sand.u32 %s756, 1
        %s989 = smul.addr %s988, 8
        %s990 = scalar_lea.vmem [#allocation2], %s989
        %p991 = scmp.lt.s32.totalorder %s77, 1
        %s992 = scalar_select %p991, %s77, 1
        %s993 = smul.addr %s992, 8
        %s994 = scalar_lea.vmem %s1, %s993
        %p995 = scmp.lt.s32.totalorder %s77, 1
        %s996 = scalar_select %p995, %s77, 1
        %s997 = smul.addr %s996, 8
        %s998 = scalar_lea.vmem %s3, %s997
        %p999 = scmp.lt.s32.totalorder %s77, 1
        %s1000 = scalar_select %p999, %s77, 1
        %s1001 = smul.addr %s1000, 2
        %s1002 = smul.addr %s1001, 8
        %s1003 = scalar_lea.vmem %s5, %s1002
        %p1004 = scmp.lt.s32.totalorder %s77, 1
        %s1005 = scalar_select %p1004, %s77, 1
        %s1006 = smul.addr %s1005, 8
        %s1007 = scalar_lea.vmem %s7, %s1006
        %v1008 = vld [vmem:[%s994] sm:$0xff]
        %v1009 = vld [vmem:[%s998] sm:$0xff]
        %v1010 = vld [vmem:[%s1003] sm:$0xff]
        %v1011 = vld [vmem:[%s1003 + $0x8] sm:$0xff]
        %v1012 = vld [vmem:[%s1007] sm:$0xff]
        %v1013 = vld [vmem:[%s9] sm:$0xff]
        %v1014 = vld [vmem:[%s9 + $0x8] sm:$0xff]
        %v1015 = vld [vmem:[%s9 + $0x10] sm:$0xff]
        %v1016 = vld [vmem:[%s9 + $0x18] sm:$0xff]
        %v1017 = vld [vmem:[%s11] sm:$0x1]
        %v1019 = vlaneseq
        %v1020 = vshrl.u32 %v1019, 7
        %v1021 = vsub.s32 0, %v1020
        %v1022 = vrot.slane %v1017, %v1021
        %vm1024 = vcmask 261120
        %v1026 = vsel %vm1024, %v1008, 0
        %1028 = vmatprep.subr.mxu0 0.0
        %1029 = vmatpush1.msra.mxu0 %v1013
        %1030 = vmatprep.subr.mxu0 0.0
        %1031 = vmatpush1.msra.mxu0 %v1014
        %1032 = vmatprep.subr.mxu0 0.0
        %1033 = vmatpush1.msra.mxu0 %v1015
        %1034 = vmatprep.subr.mxu0 0.0
        %1035 = vmatpush1.msra.mxu0 %v1016
        %1036 = vmatprep.subr.mxu0 0.0
        %1037 = vmatpush1.msra.mxu0 0.0
        %1038 = vmatprep.subr.mxu0 0.0
        %1039 = vmatpush1.msra.mxu0 0.0
        %1040 = vmatprep.subr.mxu0 0.0
        %1041 = vmatpush1.msra.mxu0 0.0
        %1042 = vmatprep.subr.mxu0 0.0
        %1043 = vmatpush1.msra.mxu0 0.0
        %1044 = vmatprep.subr.mxu0 0.0
        %1045 = vmatpush1.msra.mxu0 0.0
        %1046 = vmatprep.subr.mxu0 0.0
        %1047 = vmatpush1.msra.mxu0 0.0
        %1048 = vmatprep.subr.mxu0 0.0
        %1049 = vmatpush1.msra.mxu0 0.0
        %1050 = vmatprep.subr.mxu0 0.0
        %1051 = vmatpush1.msra.mxu0 0.0
        %1052 = vmatprep.subr.mxu0 0.0
        %1053 = vmatpush1.msra.mxu0 0.0
        %1054 = vmatprep.subr.mxu0 0.0
        %1055 = vmatpush1.msra.mxu0 0.0
        %1056 = vmatprep.subr.mxu0 0.0
        %1057 = vmatpush1.msra.mxu0 0.0
        %1058 = vmatprep.subr.mxu0 0.0
        %1059 = vmatpush1.msra.mxu0 0.0
        %1060 = vmatprep.subr.mxu0 0.0
        %1061 = vmatpush1.msra.mxu0 0.0
        %1062 = vmatprep.subr.mxu0 0.0
        %1063 = vmatpush1.msra.mxu0 0.0
        %1064 = vmatprep.subr.mxu0 0.0
        %1065 = vmatpush1.msra.mxu0 0.0
        %1066 = vmatprep.subr.mxu0 0.0
        %1067 = vmatpush1.msra.mxu0 0.0
        %1068 = vmatprep.subr.mxu0 0.0
        %1069 = vmatpush1.msra.mxu0 0.0
        %1070 = vmatprep.subr.mxu0 0.0
        %1071 = vmatpush1.msra.mxu0 0.0
        %1072 = vmatprep.subr.mxu0 0.0
        %1073 = vmatpush1.msra.mxu0 0.0
        %1074 = vmatprep.subr.mxu0 0.0
        %1075 = vmatpush1.msra.mxu0 0.0
        %1076 = vmatprep.subr.mxu0 0.0
        %1077 = vmatpush1.msra.mxu0 0.0
        %1078 = vmatprep.subr.mxu0 0.0
        %1079 = vmatpush1.msra.mxu0 0.0
        %1080 = vmatprep.subr.mxu0 0.0
        %1081 = vmatpush1.msra.mxu0 0.0
        %1082 = vmatprep.subr.mxu0 0.0
        %1083 = vmatpush1.msra.mxu0 0.0
        %1084 = vmatprep.subr.mxu0 0.0
        %1085 = vmatpush1.msra.mxu0 0.0
        %1086 = vmatprep.subr.mxu0 0.0
        %1087 = vmatpush1.msra.mxu0 0.0
        %1088 = vmatprep.subr.mxu0 0.0
        %1089 = vmatpush1.msra.mxu0 0.0
        %1090 = vmatprep.subr.mxu0 0.0
        %1091 = vmatpush1.msra.mxu0 0.0
        %1092 = vmatprep.mubr.f32.mxu0 0.0
        %1093 = vmatmul.mubr.f32.gmra.mrb[0].mxu0 %v1026
        %v1094 = vpop.f32.mrb[0].mxu0
        %v1095 = vadd.f32 %v1022, %v1094
        %v1096 = vpop.f32.mrb[0].mxu0
        %1097 = vdwg.mxu0
        %v1098 = vmax.f32 %v1095, 0.0
        %v1099 = vld [vmem:[%s13] sm:$0xff]
        %v1100 = vld [vmem:[%s13 + $0x8] sm:$0xff]
        %v1101 = vld [vmem:[%s13 + $0x10] sm:$0xff]
        %v1102 = vld [vmem:[%s13 + $0x18] sm:$0xff]
        %v1103 = vld [vmem:[%s15] sm:$0x1]
        %v1105 = vlaneseq
        %v1106 = vshrl.u32 %v1105, 7
        %v1107 = vsub.s32 0, %v1106
        %v1108 = vrot.slane %v1103, %v1107
        %v1111 = vsel %vm1024, %v1098, 0
        %1113 = vmatprep.subr.mxu0 0.0
        %1114 = vmatpush1.msra.mxu0 %v1099
        %1115 = vmatprep.subr.mxu0 0.0
        %1116 = vmatpush1.msra.mxu0 %v1100
        %1117 = vmatprep.subr.mxu0 0.0
        %1118 = vmatpush1.msra.mxu0 %v1101
        %1119 = vmatprep.subr.mxu0 0.0
        %1120 = vmatpush1.msra.mxu0 %v1102
        %1121 = vmatprep.subr.mxu0 0.0
        %1122 = vmatpush1.msra.mxu0 0.0
        %1123 = vmatprep.subr.mxu0 0.0
        %1124 = vmatpush1.msra.mxu0 0.0
        %1125 = vmatprep.subr.mxu0 0.0
        %1126 = vmatpush1.msra.mxu0 0.0
        %1127 = vmatprep.subr.mxu0 0.0
        %1128 = vmatpush1.msra.mxu0 0.0
        %1129 = vmatprep.subr.mxu0 0.0
        %1130 = vmatpush1.msra.mxu0 0.0
        %1131 = vmatprep.subr.mxu0 0.0
        %1132 = vmatpush1.msra.mxu0 0.0
        %1133 = vmatprep.subr.mxu0 0.0
        %1134 = vmatpush1.msra.mxu0 0.0
        %1135 = vmatprep.subr.mxu0 0.0
        %1136 = vmatpush1.msra.mxu0 0.0
        %1137 = vmatprep.subr.mxu0 0.0
        %1138 = vmatpush1.msra.mxu0 0.0
        %1139 = vmatprep.subr.mxu0 0.0
        %1140 = vmatpush1.msra.mxu0 0.0
        %1141 = vmatprep.subr.mxu0 0.0
        %1142 = vmatpush1.msra.mxu0 0.0
        %1143 = vmatprep.subr.mxu0 0.0
        %1144 = vmatpush1.msra.mxu0 0.0
        %1145 = vmatprep.subr.mxu0 0.0
        %1146 = vmatpush1.msra.mxu0 0.0
        %1147 = vmatprep.subr.mxu0 0.0
        %1148 = vmatpush1.msra.mxu0 0.0
        %1149 = vmatprep.subr.mxu0 0.0
        %1150 = vmatpush1.msra.mxu0 0.0
        %1151 = vmatprep.subr.mxu0 0.0
        %1152 = vmatpush1.msra.mxu0 0.0
        %1153 = vmatprep.subr.mxu0 0.0
        %1154 = vmatpush1.msra.mxu0 0.0
        %1155 = vmatprep.subr.mxu0 0.0
        %1156 = vmatpush1.msra.mxu0 0.0
        %1157 = vmatprep.subr.mxu0 0.0
        %1158 = vmatpush1.msra.mxu0 0.0
        %1159 = vmatprep.subr.mxu0 0.0
        %1160 = vmatpush1.msra.mxu0 0.0
        %1161 = vmatprep.subr.mxu0 0.0
        %1162 = vmatpush1.msra.mxu0 0.0
        %1163 = vmatprep.subr.mxu0 0.0
        %1164 = vmatpush1.msra.mxu0 0.0
        %1165 = vmatprep.subr.mxu0 0.0
        %1166 = vmatpush1.msra.mxu0 0.0
        %1167 = vmatprep.subr.mxu0 0.0
        %1168 = vmatpush1.msra.mxu0 0.0
        %1169 = vmatprep.subr.mxu0 0.0
        %1170 = vmatpush1.msra.mxu0 0.0
        %1171 = vmatprep.subr.mxu0 0.0
        %1172 = vmatpush1.msra.mxu0 0.0
        %1173 = vmatprep.subr.mxu0 0.0
        %1174 = vmatpush1.msra.mxu0 0.0
        %1175 = vmatprep.subr.mxu0 0.0
        %1176 = vmatpush1.msra.mxu0 0.0
        %1177 = vmatprep.mubr.f32.mxu0 0.0
        %1178 = vmatmul.mubr.f32.gmra.mrb[0].mxu0 %v1111
        %v1179 = vpop.f32.mrb[0].mxu0
        %v1180 = vadd.f32 %v1108, %v1179
        %v1181 = vpop.f32.mrb[0].mxu0
        %1182 = vdwg.mxu0
        %v1183 = vadd.f32 %v1008, %v1009
        %v1184 = vld [vmem:[%s17] sm:$0xff]
        %v1185 = vld [vmem:[%s17 + $0x8] sm:$0xff]
        %v1186 = vld [vmem:[%s17 + $0x10] sm:$0xff]
        %v1187 = vld [vmem:[%s17 + $0x18] sm:$0xff]
        %v1188 = vld [vmem:[%s19] sm:$0x1]
        %v1190 = vlaneseq
        %v1191 = vshrl.u32 %v1190, 7
        %v1192 = vsub.s32 0, %v1191
        %v1193 = vrot.slane %v1188, %v1192
        %v1196 = vsel %vm1024, %v1183, 0
        %1198 = vmatprep.subr.mxu0 0.0
        %1199 = vmatpush1.msra.mxu0 %v1184
        %1200 = vmatprep.subr.mxu0 0.0
        %1201 = vmatpush1.msra.mxu0 %v1185
        %1202 = vmatprep.subr.mxu0 0.0
        %1203 = vmatpush1.msra.mxu0 %v1186
        %1204 = vmatprep.subr.mxu0 0.0
        %1205 = vmatpush1.msra.mxu0 %v1187
        %1206 = vmatprep.subr.mxu0 0.0
        %1207 = vmatpush1.msra.mxu0 0.0
        %1208 = vmatprep.subr.mxu0 0.0
        %1209 = vmatpush1.msra.mxu0 0.0
        %1210 = vmatprep.subr.mxu0 0.0
        %1211 = vmatpush1.msra.mxu0 0.0
        %1212 = vmatprep.subr.mxu0 0.0
        %1213 = vmatpush1.msra.mxu0 0.0
        %1214 = vmatprep.subr.mxu0 0.0
        %1215 = vmatpush1.msra.mxu0 0.0
        %1216 = vmatprep.subr.mxu0 0.0
        %1217 = vmatpush1.msra.mxu0 0.0
        %1218 = vmatprep.subr.mxu0 0.0
        %1219 = vmatpush1.msra.mxu0 0.0
        %1220 = vmatprep.subr.mxu0 0.0
        %1221 = vmatpush1.msra.mxu0 0.0
        %1222 = vmatprep.subr.mxu0 0.0
        %1223 = vmatpush1.msra.mxu0 0.0
        %1224 = vmatprep.subr.mxu0 0.0
        %1225 = vmatpush1.msra.mxu0 0.0
        %1226 = vmatprep.subr.mxu0 0.0
        %1227 = vmatpush1.msra.mxu0 0.0
        %1228 = vmatprep.subr.mxu0 0.0
        %1229 = vmatpush1.msra.mxu0 0.0
        %1230 = vmatprep.subr.mxu0 0.0
        %1231 = vmatpush1.msra.mxu0 0.0
        %1232 = vmatprep.subr.mxu0 0.0
        %1233 = vmatpush1.msra.mxu0 0.0
        %1234 = vmatprep.subr.mxu0 0.0
        %1235 = vmatpush1.msra.mxu0 0.0
        %1236 = vmatprep.subr.mxu0 0.0
        %1237 = vmatpush1.msra.mxu0 0.0
        %1238 = vmatprep.subr.mxu0 0.0
        %1239 = vmatpush1.msra.mxu0 0.0
        %1240 = vmatprep.subr.mxu0 0.0
        %1241 = vmatpush1.msra.mxu0 0.0
        %1242 = vmatprep.subr.mxu0 0.0
        %1243 = vmatpush1.msra.mxu0 0.0
        %1244 = vmatprep.subr.mxu0 0.0
        %1245 = vmatpush1.msra.mxu0 0.0
        %1246 = vmatprep.subr.mxu0 0.0
        %1247 = vmatpush1.msra.mxu0 0.0
        %1248 = vmatprep.subr.mxu0 0.0
        %1249 = vmatpush1.msra.mxu0 0.0
        %1250 = vmatprep.subr.mxu0 0.0
        %1251 = vmatpush1.msra.mxu0 0.0
        %1252 = vmatprep.subr.mxu0 0.0
        %1253 = vmatpush1.msra.mxu0 0.0
        %1254 = vmatprep.subr.mxu0 0.0
        %1255 = vmatpush1.msra.mxu0 0.0
        %1256 = vmatprep.subr.mxu0 0.0
        %1257 = vmatpush1.msra.mxu0 0.0
        %1258 = vmatprep.subr.mxu0 0.0
        %1259 = vmatpush1.msra.mxu0 0.0
        %1260 = vmatprep.subr.mxu0 0.0
        %1261 = vmatpush1.msra.mxu0 0.0
        %1262 = vmatprep.mubr.f32.mxu0 0.0
        %1263 = vmatmul.mubr.f32.gmra.mrb[0].mxu0 %v1196
        %v1264 = vpop.f32.mrb[0].mxu0
        %v1265 = vadd.f32 %v1193, %v1264
        %v1266 = vpop.f32.mrb[0].mxu0
        %1267 = vdwg.mxu0
        %v1268 = vld [vmem:[%s21] sm:$0xff]
        %v1269 = vld [vmem:[%s21 + $0x8] sm:$0xff]
        %v1270 = vld [vmem:[%s21 + $0x10] sm:$0xff]
        %v1271 = vld [vmem:[%s21 + $0x18] sm:$0xff]
        %v1272 = vld [vmem:[%s23] sm:$0x1]
        %v1274 = vlaneseq
        %v1275 = vshrl.u32 %v1274, 7
        %v1276 = vsub.s32 0, %v1275
        %v1277 = vrot.slane %v1272, %v1276
        %1279 = vmatprep.subr.mxu0 0.0
        %1280 = vmatpush1.msra.mxu0 %v1268
        %1281 = vmatprep.subr.mxu0 0.0
        %1282 = vmatpush1.msra.mxu0 %v1269
        %1283 = vmatprep.subr.mxu0 0.0
        %1284 = vmatpush1.msra.mxu0 %v1270
        %1285 = vmatprep.subr.mxu0 0.0
        %1286 = vmatpush1.msra.mxu0 %v1271
        %1287 = vmatprep.subr.mxu0 0.0
        %1288 = vmatpush1.msra.mxu0 0.0
        %1289 = vmatprep.subr.mxu0 0.0
        %1290 = vmatpush1.msra.mxu0 0.0
        %1291 = vmatprep.subr.mxu0 0.0
        %1292 = vmatpush1.msra.mxu0 0.0
        %1293 = vmatprep.subr.mxu0 0.0
        %1294 = vmatpush1.msra.mxu0 0.0
        %1295 = vmatprep.subr.mxu0 0.0
        %1296 = vmatpush1.msra.mxu0 0.0
        %1297 = vmatprep.subr.mxu0 0.0
        %1298 = vmatpush1.msra.mxu0 0.0
        %1299 = vmatprep.subr.mxu0 0.0
        %1300 = vmatpush1.msra.mxu0 0.0
        %1301 = vmatprep.subr.mxu0 0.0
        %1302 = vmatpush1.msra.mxu0 0.0
        %1303 = vmatprep.subr.mxu0 0.0
        %1304 = vmatpush1.msra.mxu0 0.0
        %1305 = vmatprep.subr.mxu0 0.0
        %1306 = vmatpush1.msra.mxu0 0.0
        %1307 = vmatprep.subr.mxu0 0.0
        %1308 = vmatpush1.msra.mxu0 0.0
        %1309 = vmatprep.subr.mxu0 0.0
        %1310 = vmatpush1.msra.mxu0 0.0
        %1311 = vmatprep.subr.mxu0 0.0
        %1312 = vmatpush1.msra.mxu0 0.0
        %1313 = vmatprep.subr.mxu0 0.0
        %1314 = vmatpush1.msra.mxu0 0.0
        %1315 = vmatprep.subr.mxu0 0.0
        %1316 = vmatpush1.msra.mxu0 0.0
        %1317 = vmatprep.subr.mxu0 0.0
        %1318 = vmatpush1.msra.mxu0 0.0
        %1319 = vmatprep.subr.mxu0 0.0
        %1320 = vmatpush1.msra.mxu0 0.0
        %1321 = vmatprep.subr.mxu0 0.0
        %1322 = vmatpush1.msra.mxu0 0.0
        %1323 = vmatprep.subr.mxu0 0.0
        %1324 = vmatpush1.msra.mxu0 0.0
        %1325 = vmatprep.subr.mxu0 0.0
        %1326 = vmatpush1.msra.mxu0 0.0
        %1327 = vmatprep.subr.mxu0 0.0
        %1328 = vmatpush1.msra.mxu0 0.0
        %1329 = vmatprep.subr.mxu0 0.0
        %1330 = vmatpush1.msra.mxu0 0.0
        %1331 = vmatprep.subr.mxu0 0.0
        %1332 = vmatpush1.msra.mxu0 0.0
        %1333 = vmatprep.subr.mxu0 0.0
        %1334 = vmatpush1.msra.mxu0 0.0
        %1335 = vmatprep.subr.mxu0 0.0
        %1336 = vmatpush1.msra.mxu0 0.0
        %1337 = vmatprep.subr.mxu0 0.0
        %1338 = vmatpush1.msra.mxu0 0.0
        %1339 = vmatprep.subr.mxu0 0.0
        %1340 = vmatpush1.msra.mxu0 0.0
        %1341 = vmatprep.subr.mxu0 0.0
        %1342 = vmatpush1.msra.mxu0 0.0
        %1343 = vmatprep.mubr.f32.mxu0 0.0
        %1344 = vmatmul.mubr.f32.gmra.mrb[0].mxu0 %v1026
        %v1345 = vpop.f32.mrb[0].mxu0
        %v1346 = vadd.f32 %v1277, %v1345
        %v1347 = vpop.f32.mrb[0].mxu0
        %1348 = vdwg.mxu0
        %v1349 = vld [vmem:[%s25] sm:$0xff]
        %v1350 = vld [vmem:[%s25 + $0x8] sm:$0xff]
        %v1351 = vld [vmem:[%s25 + $0x10] sm:$0xff]
        %v1352 = vld [vmem:[%s25 + $0x18] sm:$0xff]
        %v1353 = vld [vmem:[%s27] sm:$0x1]
        %v1354 = vmul.f32 %v1265, 0.35355338
        %1356 = vrot.lane.b32.xlu0 %v1265, 96
        %v1357 = vpop.permute.xlu0 %1356
        %vm1358 = vcmask 64512
        %v1360 = vsel %vm1358, %v1354, 0
        %v1362 = vsel %vm1358, %v1357, 0
        %1364 = vmatprep.subr.mxu0 0.0
        %1365 = vmatpush1.xpose.msra.mxu0 %v1362
        %1366 = vmatprep.subr.mxu0 0.0
        %1367 = vmatpush1.xpose.msra.mxu0 0.0
        %1368 = vmatprep.subr.mxu0 0.0
        %1369 = vmatpush1.xpose.msra.mxu0 0.0
        %1370 = vmatprep.subr.mxu0 0.0
        %1371 = vmatpush1.xpose.msra.mxu0 0.0
        %1372 = vmatprep.subr.mxu0 0.0
        %1373 = vmatpush1.xpose.msra.mxu0 0.0
        %1374 = vmatprep.subr.mxu0 0.0
        %1375 = vmatpush1.xpose.msra.mxu0 0.0
        %1376 = vmatprep.subr.mxu0 0.0
        %1377 = vmatpush1.xpose.msra.mxu0 0.0
        %1378 = vmatprep.subr.mxu0 0.0
        %1379 = vmatpush1.xpose.msra.mxu0 0.0
        %1380 = vmatprep.subr.mxu0 0.0
        %1381 = vmatpush1.xpose.msra.mxu0 0.0
        %1382 = vmatprep.subr.mxu0 0.0
        %1383 = vmatpush1.xpose.msra.mxu0 0.0
        %1384 = vmatprep.subr.mxu0 0.0
        %1385 = vmatpush1.xpose.msra.mxu0 0.0
        %1386 = vmatprep.subr.mxu0 0.0
        %1387 = vmatpush1.xpose.msra.mxu0 0.0
        %1388 = vmatprep.subr.mxu0 0.0
        %1389 = vmatpush1.xpose.msra.mxu0 0.0
        %1390 = vmatprep.subr.mxu0 0.0
        %1391 = vmatpush1.xpose.msra.mxu0 0.0
        %1392 = vmatprep.subr.mxu0 0.0
        %1393 = vmatpush1.xpose.msra.mxu0 0.0
        %1394 = vmatprep.subr.mxu0 0.0
        %1395 = vmatpush1.xpose.msra.mxu0 0.0
        %1396 = vmatprep.subr.mxu0 0.0
        %1397 = vmatpush1.xpose.msra.mxu0 0.0
        %1398 = vmatprep.subr.mxu0 0.0
        %1399 = vmatpush1.xpose.msra.mxu0 0.0
        %1400 = vmatprep.subr.mxu0 0.0
        %1401 = vmatpush1.xpose.msra.mxu0 0.0
        %1402 = vmatprep.subr.mxu0 0.0
        %1403 = vmatpush1.xpose.msra.mxu0 0.0
        %1404 = vmatprep.subr.mxu0 0.0
        %1405 = vmatpush1.xpose.msra.mxu0 0.0
        %1406 = vmatprep.subr.mxu0 0.0
        %1407 = vmatpush1.xpose.msra.mxu0 0.0
        %1408 = vmatprep.subr.mxu0 0.0
        %1409 = vmatpush1.xpose.msra.mxu0 0.0
        %1410 = vmatprep.subr.mxu0 0.0
        %1411 = vmatpush1.xpose.msra.mxu0 0.0
        %1412 = vmatprep.subr.mxu0 0.0
        %1413 = vmatpush1.xpose.msra.mxu0 0.0
        %1414 = vmatprep.subr.mxu0 0.0
        %1415 = vmatpush1.xpose.msra.mxu0 0.0
        %1416 = vmatprep.subr.mxu0 0.0
        %1417 = vmatpush1.xpose.msra.mxu0 0.0
        %1418 = vmatprep.subr.mxu0 0.0
        %1419 = vmatpush1.xpose.msra.mxu0 0.0
        %1420 = vmatprep.subr.mxu0 0.0
        %1421 = vmatpush1.xpose.msra.mxu0 0.0
        %1422 = vmatprep.subr.mxu0 0.0
        %1423 = vmatpush1.xpose.msra.mxu0 0.0
        %1424 = vmatprep.subr.mxu0 0.0
        %1425 = vmatpush1.xpose.msra.mxu0 0.0
        %1426 = vmatprep.subr.mxu0 0.0
        %1427 = vmatpush1.xpose.msra.mxu0 0.0
        %1428 = vmatprep.mubr.f32.mxu0 0.0
        %1429 = vmatmul.mubr.f32.gmra.mrb[0].mxu0 %v1360
        %v1430 = vpop.f32.mrb[0].mxu0
        %v1431 = vadd.f32 0.0, %v1430
        %v1432 = vpop.f32.mrb[0].mxu0
        %1433 = vdwg.mxu0
        %v1434 = vsel %vm1358, %v1431, -inf
        %1435 = vmax.xlane.f32.xlu0 %v1434
        %v1436 = vpop.xlane.xlu0 %1435
        %v1437 = vsub.f32 %v1431, %v1436
        %v1438 = vmul.f32 %v1437, 1.442695
        %v1439 = vpow.pop %v1438
        %v1440 = vsel %vm1358, %v1439, 0.0
        %1441 = vadd.xlane.f32.xlu0 %v1440
        %v1442 = vpop.xlane.xlu0 %1441
        %v1443 = vrcp.pop %v1442
        %v1444 = vmul.f32 %v1439, %v1443
        %v1446 = vsel %vm1358, %v1444, 0
        %1448 = vmatprep.subr.mxu0 0.0
        %1449 = vmatpush1.msra.mxu0 %v1346
        %1450 = vmatprep.subr.mxu0 0.0
        %1451 = vmatpush1.msra.mxu0 0.0
        %1452 = vmatprep.subr.mxu0 0.0
        %1453 = vmatpush1.msra.mxu0 0.0
        %1454 = vmatprep.subr.mxu0 0.0
        %1455 = vmatpush1.msra.mxu0 0.0
        %1456 = vmatprep.subr.mxu0 0.0
        %1457 = vmatpush1.msra.mxu0 0.0
        %1458 = vmatprep.subr.mxu0 0.0
        %1459 = vmatpush1.msra.mxu0 0.0
        %1460 = vmatprep.subr.mxu0 0.0
        %1461 = vmatpush1.msra.mxu0 0.0
        %1462 = vmatprep.subr.mxu0 0.0
        %1463 = vmatpush1.msra.mxu0 0.0
        %1464 = vmatprep.subr.mxu0 0.0
        %1465 = vmatpush1.msra.mxu0 0.0
        %1466 = vmatprep.subr.mxu0 0.0
        %1467 = vmatpush1.msra.mxu0 0.0
        %1468 = vmatprep.subr.mxu0 0.0
        %1469 = vmatpush1.msra.mxu0 0.0
        %1470 = vmatprep.subr.mxu0 0.0
        %1471 = vmatpush1.msra.mxu0 0.0
        %1472 = vmatprep.subr.mxu0 0.0
        %1473 = vmatpush1.msra.mxu0 0.0
        %1474 = vmatprep.subr.mxu0 0.0
        %1475 = vmatpush1.msra.mxu0 0.0
        %1476 = vmatprep.subr.mxu0 0.0
        %1477 = vmatpush1.msra.mxu0 0.0
        %1478 = vmatprep.subr.mxu0 0.0
        %1479 = vmatpush1.msra.mxu0 0.0
        %1480 = vmatprep.subr.mxu0 0.0
        %1481 = vmatpush1.msra.mxu0 0.0
        %1482 = vmatprep.subr.mxu0 0.0
        %1483 = vmatpush1.msra.mxu0 0.0
        %1484 = vmatprep.subr.mxu0 0.0
        %1485 = vmatpush1.msra.mxu0 0.0
        %1486 = vmatprep.subr.mxu0 0.0
        %1487 = vmatpush1.msra.mxu0 0.0
        %1488 = vmatprep.subr.mxu0 0.0
        %1489 = vmatpush1.msra.mxu0 0.0
        %1490 = vmatprep.subr.mxu0 0.0
        %1491 = vmatpush1.msra.mxu0 0.0
        %1492 = vmatprep.subr.mxu0 0.0
        %1493 = vmatpush1.msra.mxu0 0.0
        %1494 = vmatprep.subr.mxu0 0.0
        %1495 = vmatpush1.msra.mxu0 0.0
        %1496 = vmatprep.subr.mxu0 0.0
        %1497 = vmatpush1.msra.mxu0 0.0
        %1498 = vmatprep.subr.mxu0 0.0
        %1499 = vmatpush1.msra.mxu0 0.0
        %1500 = vmatprep.subr.mxu0 0.0
        %1501 = vmatpush1.msra.mxu0 0.0
        %1502 = vmatprep.subr.mxu0 0.0
        %1503 = vmatpush1.msra.mxu0 0.0
        %1504 = vmatprep.subr.mxu0 0.0
        %1505 = vmatpush1.msra.mxu0 0.0
        %1506 = vmatprep.subr.mxu0 0.0
        %1507 = vmatpush1.msra.mxu0 0.0
        %1508 = vmatprep.subr.mxu0 0.0
        %1509 = vmatpush1.msra.mxu0 0.0
        %1510 = vmatprep.subr.mxu0 0.0
        %1511 = vmatpush1.msra.mxu0 0.0
        %1512 = vmatprep.mubr.f32.mxu0 0.0
        %1513 = vmatmul.mubr.f32.gmra.mrb[0].mxu0 %v1446
        %v1514 = vpop.f32.mrb[0].mxu0
        %v1515 = vadd.f32 0.0, %v1514
        %v1516 = vpop.f32.mrb[0].mxu0
        %1517 = vdwg.mxu0
        %1518 = vrot.lane.b32.xlu0 %v1354, 120
        %v1519 = vpop.permute.xlu0 %1518
        %1520 = vrot.lane.b32.xlu0 %v1265, 88
        %v1521 = vpop.permute.xlu0 %1520
        %v1522 = vsel %vm1358, %v1519, 0
        %v1524 = vsel %vm1358, %v1521, 0
        %1526 = vmatprep.subr.mxu0 0.0
        %1527 = vmatpush1.xpose.msra.mxu0 %v1524
        %1528 = vmatprep.subr.mxu0 0.0
        %1529 = vmatpush1.xpose.msra.mxu0 0.0
        %1530 = vmatprep.subr.mxu0 0.0
        %1531 = vmatpush1.xpose.msra.mxu0 0.0
        %1532 = vmatprep.subr.mxu0 0.0
        %1533 = vmatpush1.xpose.msra.mxu0 0.0
        %1534 = vmatprep.subr.mxu0 0.0
        %1535 = vmatpush1.xpose.msra.mxu0 0.0
        %1536 = vmatprep.subr.mxu0 0.0
        %1537 = vmatpush1.xpose.msra.mxu0 0.0
        %1538 = vmatprep.subr.mxu0 0.0
        %1539 = vmatpush1.xpose.msra.mxu0 0.0
        %1540 = vmatprep.subr.mxu0 0.0
        %1541 = vmatpush1.xpose.msra.mxu0 0.0
        %1542 = vmatprep.subr.mxu0 0.0
        %1543 = vmatpush1.xpose.msra.mxu0 0.0
        %1544 = vmatprep.subr.mxu0 0.0
        %1545 = vmatpush1.xpose.msra.mxu0 0.0
        %1546 = vmatprep.subr.mxu0 0.0
        %1547 = vmatpush1.xpose.msra.mxu0 0.0
        %1548 = vmatprep.subr.mxu0 0.0
        %1549 = vmatpush1.xpose.msra.mxu0 0.0
        %1550 = vmatprep.subr.mxu0 0.0
        %1551 = vmatpush1.xpose.msra.mxu0 0.0
        %1552 = vmatprep.subr.mxu0 0.0
        %1553 = vmatpush1.xpose.msra.mxu0 0.0
        %1554 = vmatprep.subr.mxu0 0.0
        %1555 = vmatpush1.xpose.msra.mxu0 0.0
        %1556 = vmatprep.subr.mxu0 0.0
        %1557 = vmatpush1.xpose.msra.mxu0 0.0
        %1558 = vmatprep.subr.mxu0 0.0
        %1559 = vmatpush1.xpose.msra.mxu0 0.0
        %1560 = vmatprep.subr.mxu0 0.0
        %1561 = vmatpush1.xpose.msra.mxu0 0.0
        %1562 = vmatprep.subr.mxu0 0.0
        %1563 = vmatpush1.xpose.msra.mxu0 0.0
        %1564 = vmatprep.subr.mxu0 0.0
        %1565 = vmatpush1.xpose.msra.mxu0 0.0
        %1566 = vmatprep.subr.mxu0 0.0
        %1567 = vmatpush1.xpose.msra.mxu0 0.0
        %1568 = vmatprep.subr.mxu0 0.0
        %1569 = vmatpush1.xpose.msra.mxu0 0.0
        %1570 = vmatprep.subr.mxu0 0.0
        %1571 = vmatpush1.xpose.msra.mxu0 0.0
        %1572 = vmatprep.subr.mxu0 0.0
        %1573 = vmatpush1.xpose.msra.mxu0 0.0
        %1574 = vmatprep.subr.mxu0 0.0
        %1575 = vmatpush1.xpose.msra.mxu0 0.0
        %1576 = vmatprep.subr.mxu0 0.0
        %1577 = vmatpush1.xpose.msra.mxu0 0.0
        %1578 = vmatprep.subr.mxu0 0.0
        %1579 = vmatpush1.xpose.msra.mxu0 0.0
        %1580 = vmatprep.subr.mxu0 0.0
        %1581 = vmatpush1.xpose.msra.mxu0 0.0
        %1582 = vmatprep.subr.mxu0 0.0
        %1583 = vmatpush1.xpose.msra.mxu0 0.0
        %1584 = vmatprep.subr.mxu0 0.0
        %1585 = vmatpush1.xpose.msra.mxu0 0.0
        %1586 = vmatprep.subr.mxu0 0.0
        %1587 = vmatpush1.xpose.msra.mxu0 0.0
        %1588 = vmatprep.subr.mxu0 0.0
        %1589 = vmatpush1.xpose.msra.mxu0 0.0
        %1590 = vmatprep.mubr.f32.mxu0 0.0
        %1591 = vmatmul.mubr.f32.gmra.mrb[0].mxu0 %v1522
        %v1592 = vpop.f32.mrb[0].mxu0
        %v1593 = vadd.f32 0.0, %v1592
        %v1594 = vpop.f32.mrb[0].mxu0
        %1595 = vdwg.mxu0
        %v1596 = vsel %vm1358, %v1593, -inf
        %1597 = vmax.xlane.f32.xlu0 %v1596
        %v1598 = vpop.xlane.xlu0 %1597
        %v1599 = vsub.f32 %v1593, %v1598
        %v1600 = vmul.f32 %v1599, 1.442695
        %v1601 = vpow.pop %v1600
        %v1602 = vsel %vm1358, %v1601, 0.0
        %1603 = vadd.xlane.f32.xlu0 %v1602
        %v1604 = vpop.xlane.xlu0 %1603
        %v1605 = vrcp.pop %v1604
        %v1606 = vmul.f32 %v1601, %v1605
        %1608 = vrot.lane.b32.xlu0 %v1346, 120
        %v1609 = vpop.permute.xlu0 %1608
        %v1612 = vsel %vm1358, %v1606, 0
        %1614 = vmatprep.subr.mxu0 0.0
        %1615 = vmatpush1.msra.mxu0 %v1609
        %1616 = vmatprep.subr.mxu0 0.0
        %1617 = vmatpush1.msra.mxu0 0.0
        %1618 = vmatprep.subr.mxu0 0.0
        %1619 = vmatpush1.msra.mxu0 0.0
        %1620 = vmatprep.subr.mxu0 0.0
        %1621 = vmatpush1.msra.mxu0 0.0
        %1622 = vmatprep.subr.mxu0 0.0
        %1623 = vmatpush1.msra.mxu0 0.0
        %1624 = vmatprep.subr.mxu0 0.0
        %1625 = vmatpush1.msra.mxu0 0.0
        %1626 = vmatprep.subr.mxu0 0.0
        %1627 = vmatpush1.msra.mxu0 0.0
        %1628 = vmatprep.subr.mxu0 0.0
        %1629 = vmatpush1.msra.mxu0 0.0
        %1630 = vmatprep.subr.mxu0 0.0
        %1631 = vmatpush1.msra.mxu0 0.0
        %1632 = vmatprep.subr.mxu0 0.0
        %1633 = vmatpush1.msra.mxu0 0.0
        %1634 = vmatprep.subr.mxu0 0.0
        %1635 = vmatpush1.msra.mxu0 0.0
        %1636 = vmatprep.subr.mxu0 0.0
        %1637 = vmatpush1.msra.mxu0 0.0
        %1638 = vmatprep.subr.mxu0 0.0
        %1639 = vmatpush1.msra.mxu0 0.0
        %1640 = vmatprep.subr.mxu0 0.0
        %1641 = vmatpush1.msra.mxu0 0.0
        %1642 = vmatprep.subr.mxu0 0.0
        %1643 = vmatpush1.msra.mxu0 0.0
        %1644 = vmatprep.subr.mxu0 0.0
        %1645 = vmatpush1.msra.mxu0 0.0
        %1646 = vmatprep.subr.mxu0 0.0
        %1647 = vmatpush1.msra.mxu0 0.0
        %1648 = vmatprep.subr.mxu0 0.0
        %1649 = vmatpush1.msra.mxu0 0.0
        %1650 = vmatprep.subr.mxu0 0.0
        %1651 = vmatpush1.msra.mxu0 0.0
        %1652 = vmatprep.subr.mxu0 0.0
        %1653 = vmatpush1.msra.mxu0 0.0
        %1654 = vmatprep.subr.mxu0 0.0
        %1655 = vmatpush1.msra.mxu0 0.0
        %1656 = vmatprep.subr.mxu0 0.0
        %1657 = vmatpush1.msra.mxu0 0.0
        %1658 = vmatprep.subr.mxu0 0.0
        %1659 = vmatpush1.msra.mxu0 0.0
        %1660 = vmatprep.subr.mxu0 0.0
        %1661 = vmatpush1.msra.mxu0 0.0
        %1662 = vmatprep.subr.mxu0 0.0
        %1663 = vmatpush1.msra.mxu0 0.0
        %1664 = vmatprep.subr.mxu0 0.0
        %1665 = vmatpush1.msra.mxu0 0.0
        %1666 = vmatprep.subr.mxu0 0.0
        %1667 = vmatpush1.msra.mxu0 0.0
        %1668 = vmatprep.subr.mxu0 0.0
        %1669 = vmatpush1.msra.mxu0 0.0
        %1670 = vmatprep.subr.mxu0 0.0
        %1671 = vmatpush1.msra.mxu0 0.0
        %1672 = vmatprep.subr.mxu0 0.0
        %1673 = vmatpush1.msra.mxu0 0.0
        %1674 = vmatprep.subr.mxu0 0.0
        %1675 = vmatpush1.msra.mxu0 0.0
        %1676 = vmatprep.subr.mxu0 0.0
        %1677 = vmatpush1.msra.mxu0 0.0
        %1678 = vmatprep.mubr.f32.mxu0 0.0
        %1679 = vmatmul.mubr.f32.gmra.mrb[0].mxu0 %v1612
        %v1680 = vpop.f32.mrb[0].mxu0
        %v1681 = vadd.f32 0.0, %v1680
        %v1682 = vpop.f32.mrb[0].mxu0
        %1683 = vdwg.mxu0
        %v1685 = vsel %vm1358, %v1681, 0
        %1687 = vmatprep.subr.mxu0 0.0
        %1688 = vmatpush1.msra.mxu0 %v1350
        %1689 = vmatprep.subr.mxu0 0.0
        %1690 = vmatpush1.msra.mxu0 0.0
        %1691 = vmatprep.subr.mxu0 0.0
        %1692 = vmatpush1.msra.mxu0 0.0
        %1693 = vmatprep.subr.mxu0 0.0
        %1694 = vmatpush1.msra.mxu0 0.0
        %1695 = vmatprep.subr.mxu0 0.0
        %1696 = vmatpush1.msra.mxu0 0.0
        %1697 = vmatprep.subr.mxu0 0.0
        %1698 = vmatpush1.msra.mxu0 0.0
        %1699 = vmatprep.subr.mxu0 0.0
        %1700 = vmatpush1.msra.mxu0 0.0
        %1701 = vmatprep.subr.mxu0 0.0
        %1702 = vmatpush1.msra.mxu0 0.0
        %1703 = vmatprep.subr.mxu0 0.0
        %1704 = vmatpush1.msra.mxu0 0.0
        %1705 = vmatprep.subr.mxu0 0.0
        %1706 = vmatpush1.msra.mxu0 0.0
        %1707 = vmatprep.subr.mxu0 0.0
        %1708 = vmatpush1.msra.mxu0 0.0
        %1709 = vmatprep.subr.mxu0 0.0
        %1710 = vmatpush1.msra.mxu0 0.0
        %1711 = vmatprep.subr.mxu0 0.0
        %1712 = vmatpush1.msra.mxu0 0.0
        %1713 = vmatprep.subr.mxu0 0.0
        %1714 = vmatpush1.msra.mxu0 0.0
        %1715 = vmatprep.subr.mxu0 0.0
        %1716 = vmatpush1.msra.mxu0 0.0
        %1717 = vmatprep.subr.mxu0 0.0
        %1718 = vmatpush1.msra.mxu0 0.0
        %1719 = vmatprep.subr.mxu0 0.0
        %1720 = vmatpush1.msra.mxu0 0.0
        %1721 = vmatprep.subr.mxu0 0.0
        %1722 = vmatpush1.msra.mxu0 0.0
        %1723 = vmatprep.subr.mxu0 0.0
        %1724 = vmatpush1.msra.mxu0 0.0
        %1725 = vmatprep.subr.mxu0 0.0
        %1726 = vmatpush1.msra.mxu0 0.0
        %1727 = vmatprep.subr.mxu0 0.0
        %1728 = vmatpush1.msra.mxu0 0.0
        %1729 = vmatprep.subr.mxu0 0.0
        %1730 = vmatpush1.msra.mxu0 0.0
        %1731 = vmatprep.subr.mxu0 0.0
        %1732 = vmatpush1.msra.mxu0 0.0
        %1733 = vmatprep.subr.mxu0 0.0
        %1734 = vmatpush1.msra.mxu0 0.0
        %1735 = vmatprep.subr.mxu0 0.0
        %1736 = vmatpush1.msra.mxu0 0.0
        %1737 = vmatprep.subr.mxu0 0.0
        %1738 = vmatpush1.msra.mxu0 0.0
        %1739 = vmatprep.subr.mxu0 0.0
        %1740 = vmatpush1.msra.mxu0 0.0
        %1741 = vmatprep.subr.mxu0 0.0
        %1742 = vmatpush1.msra.mxu0 0.0
        %1743 = vmatprep.subr.mxu0 0.0
        %1744 = vmatpush1.msra.mxu0 0.0
        %1745 = vmatprep.subr.mxu0 0.0
        %1746 = vmatpush1.msra.mxu0 0.0
        %1747 = vmatprep.subr.mxu0 0.0
        %1748 = vmatpush1.msra.mxu0 0.0
        %1749 = vmatprep.subr.mxu0 0.0
        %1750 = vmatpush1.msra.mxu0 0.0
        %1751 = vmatprep.mubr.f32.mxu0 0.0
        %1752 = vmatmul.mubr.f32.gmra.mrb[0].mxu0 %v1685
        %v1753 = vpop.f32.mrb[0].mxu0
        %v1754 = vadd.f32 0.0, %v1753
        %v1755 = vpop.f32.mrb[0].mxu0
        %1756 = vdwg.mxu0
        %v1758 = vsel %vm1358, %v1515, 0
        %1760 = vmatprep.subr.mxu0 0.0
        %1761 = vmatpush1.msra.mxu0 %v1349
        %1762 = vmatprep.subr.mxu0 0.0
        %1763 = vmatpush1.msra.mxu0 0.0
        %1764 = vmatprep.subr.mxu0 0.0
        %1765 = vmatpush1.msra.mxu0 0.0
        %1766 = vmatprep.subr.mxu0 0.0
        %1767 = vmatpush1.msra.mxu0 0.0
        %1768 = vmatprep.subr.mxu0 0.0
        %1769 = vmatpush1.msra.mxu0 0.0
        %1770 = vmatprep.subr.mxu0 0.0
        %1771 = vmatpush1.msra.mxu0 0.0
        %1772 = vmatprep.subr.mxu0 0.0
        %1773 = vmatpush1.msra.mxu0 0.0
        %1774 = vmatprep.subr.mxu0 0.0
        %1775 = vmatpush1.msra.mxu0 0.0
        %1776 = vmatprep.subr.mxu0 0.0
        %1777 = vmatpush1.msra.mxu0 0.0
        %1778 = vmatprep.subr.mxu0 0.0
        %1779 = vmatpush1.msra.mxu0 0.0
        %1780 = vmatprep.subr.mxu0 0.0
        %1781 = vmatpush1.msra.mxu0 0.0
        %1782 = vmatprep.subr.mxu0 0.0
        %1783 = vmatpush1.msra.mxu0 0.0
        %1784 = vmatprep.subr.mxu0 0.0
        %1785 = vmatpush1.msra.mxu0 0.0
        %1786 = vmatprep.subr.mxu0 0.0
        %1787 = vmatpush1.msra.mxu0 0.0
        %1788 = vmatprep.subr.mxu0 0.0
        %1789 = vmatpush1.msra.mxu0 0.0
        %1790 = vmatprep.subr.mxu0 0.0
        %1791 = vmatpush1.msra.mxu0 0.0
        %1792 = vmatprep.subr.mxu0 0.0
        %1793 = vmatpush1.msra.mxu0 0.0
        %1794 = vmatprep.subr.mxu0 0.0
        %1795 = vmatpush1.msra.mxu0 0.0
        %1796 = vmatprep.subr.mxu0 0.0
        %1797 = vmatpush1.msra.mxu0 0.0
        %1798 = vmatprep.subr.mxu0 0.0
        %1799 = vmatpush1.msra.mxu0 0.0
        %1800 = vmatprep.subr.mxu0 0.0
        %1801 = vmatpush1.msra.mxu0 0.0
        %1802 = vmatprep.subr.mxu0 0.0
        %1803 = vmatpush1.msra.mxu0 0.0
        %1804 = vmatprep.subr.mxu0 0.0
        %1805 = vmatpush1.msra.mxu0 0.0
        %1806 = vmatprep.subr.mxu0 0.0
        %1807 = vmatpush1.msra.mxu0 0.0
        %1808 = vmatprep.subr.mxu0 0.0
        %1809 = vmatpush1.msra.mxu0 0.0
        %1810 = vmatprep.subr.mxu0 0.0
        %1811 = vmatpush1.msra.mxu0 0.0
        %1812 = vmatprep.subr.mxu0 0.0
        %1813 = vmatpush1.msra.mxu0 0.0
        %1814 = vmatprep.subr.mxu0 0.0
        %1815 = vmatpush1.msra.mxu0 0.0
        %1816 = vmatprep.subr.mxu0 0.0
        %1817 = vmatpush1.msra.mxu0 0.0
        %1818 = vmatprep.subr.mxu0 0.0
        %1819 = vmatpush1.msra.mxu0 0.0
        %1820 = vmatprep.subr.mxu0 0.0
        %1821 = vmatpush1.msra.mxu0 0.0
        %1822 = vmatprep.subr.mxu0 0.0
        %1823 = vmatpush1.msra.mxu0 0.0
        %1824 = vmatprep.mubr.f32.mxu0 0.0
        %1825 = vmatmul.mubr.f32.gmra.mrb[0].mxu0 %v1758
        %v1826 = vpop.f32.mrb[0].mxu0
        %v1827 = vadd.f32 %v1754, %v1826
        %v1828 = vpop.f32.mrb[0].mxu0
        %1829 = vdwg.mxu0
        %1830 = vrot.lane.b32.xlu0 %v1354, 112
        %v1831 = vpop.permute.xlu0 %1830
        %1832 = vrot.lane.b32.xlu0 %v1265, 80
        %v1833 = vpop.permute.xlu0 %1832
        %v1834 = vsel %vm1358, %v1831, 0
        %v1836 = vsel %vm1358, %v1833, 0
        %1838 = vmatprep.subr.mxu0 0.0
        %1839 = vmatpush1.xpose.msra.mxu0 %v1836
        %1840 = vmatprep.subr.mxu0 0.0
        %1841 = vmatpush1.xpose.msra.mxu0 0.0
        %1842 = vmatprep.subr.mxu0 0.0
        %1843 = vmatpush1.xpose.msra.mxu0 0.0
        %1844 = vmatprep.subr.mxu0 0.0
        %1845 = vmatpush1.xpose.msra.mxu0 0.0
        %1846 = vmatprep.subr.mxu0 0.0
        %1847 = vmatpush1.xpose.msra.mxu0 0.0
        %1848 = vmatprep.subr.mxu0 0.0
        %1849 = vmatpush1.xpose.msra.mxu0 0.0
        %1850 = vmatprep.subr.mxu0 0.0
        %1851 = vmatpush1.xpose.msra.mxu0 0.0
        %1852 = vmatprep.subr.mxu0 0.0
        %1853 = vmatpush1.xpose.msra.mxu0 0.0
        %1854 = vmatprep.subr.mxu0 0.0
        %1855 = vmatpush1.xpose.msra.mxu0 0.0
        %1856 = vmatprep.subr.mxu0 0.0
        %1857 = vmatpush1.xpose.msra.mxu0 0.0
        %1858 = vmatprep.subr.mxu0 0.0
        %1859 = vmatpush1.xpose.msra.mxu0 0.0
        %1860 = vmatprep.subr.mxu0 0.0
        %1861 = vmatpush1.xpose.msra.mxu0 0.0
        %1862 = vmatprep.subr.mxu0 0.0
        %1863 = vmatpush1.xpose.msra.mxu0 0.0
        %1864 = vmatprep.subr.mxu0 0.0
        %1865 = vmatpush1.xpose.msra.mxu0 0.0
        %1866 = vmatprep.subr.mxu0 0.0
        %1867 = vmatpush1.xpose.msra.mxu0 0.0
        %1868 = vmatprep.subr.mxu0 0.0
        %1869 = vmatpush1.xpose.msra.mxu0 0.0
        %1870 = vmatprep.subr.mxu0 0.0
        %1871 = vmatpush1.xpose.msra.mxu0 0.0
        %1872 = vmatprep.subr.mxu0 0.0
        %1873 = vmatpush1.xpose.msra.mxu0 0.0
        %1874 = vmatprep.subr.mxu0 0.0
        %1875 = vmatpush1.xpose.msra.mxu0 0.0
        %1876 = vmatprep.subr.mxu0 0.0
        %1877 = vmatpush1.xpose.msra.mxu0 0.0
        %1878 = vmatprep.subr.mxu0 0.0
        %1879 = vmatpush1.xpose.msra.mxu0 0.0
        %1880 = vmatprep.subr.mxu0 0.0
        %1881 = vmatpush1.xpose.msra.mxu0 0.0
        %1882 = vmatprep.subr.mxu0 0.0
        %1883 = vmatpush1.xpose.msra.mxu0 0.0
        %1884 = vmatprep.subr.mxu0 0.0
        %1885 = vmatpush1.xpose.msra.mxu0 0.0
        %1886 = vmatprep.subr.mxu0 0.0
        %1887 = vmatpush1.xpose.msra.mxu0 0.0
        %1888 = vmatprep.subr.mxu0 0.0
        %1889 = vmatpush1.xpose.msra.mxu0 0.0
        %1890 = vmatprep.subr.mxu0 0.0
        %1891 = vmatpush1.xpose.msra.mxu0 0.0
        %1892 = vmatprep.subr.mxu0 0.0
        %1893 = vmatpush1.xpose.msra.mxu0 0.0
        %1894 = vmatprep.subr.mxu0 0.0
        %1895 = vmatpush1.xpose.msra.mxu0 0.0
        %1896 = vmatprep.subr.mxu0 0.0
        %1897 = vmatpush1.xpose.msra.mxu0 0.0
        %1898 = vmatprep.subr.mxu0 0.0
        %1899 = vmatpush1.xpose.msra.mxu0 0.0
        %1900 = vmatprep.subr.mxu0 0.0
        %1901 = vmatpush1.xpose.msra.mxu0 0.0
        %1902 = vmatprep.mubr.f32.mxu0 0.0
        %1903 = vmatmul.mubr.f32.gmra.mrb[0].mxu0 %v1834
        %v1904 = vpop.f32.mrb[0].mxu0
        %v1905 = vadd.f32 0.0, %v1904
        %v1906 = vpop.f32.mrb[0].mxu0
        %1907 = vdwg.mxu0
        %v1908 = vsel %vm1358, %v1905, -inf
        %1909 = vmax.xlane.f32.xlu0 %v1908
        %v1910 = vpop.xlane.xlu0 %1909
        %v1911 = vsub.f32 %v1905, %v1910
        %v1912 = vmul.f32 %v1911, 1.442695
        %v1913 = vpow.pop %v1912
        %v1914 = vsel %vm1358, %v1913, 0.0
        %1915 = vadd.xlane.f32.xlu0 %v1914
        %v1916 = vpop.xlane.xlu0 %1915
        %v1917 = vrcp.pop %v1916
        %v1918 = vmul.f32 %v1913, %v1917
        %1919 = vrot.lane.b32.xlu0 %v1346, 112
        %v1920 = vpop.permute.xlu0 %1919
        %v1923 = vsel %vm1358, %v1918, 0
        %1925 = vmatprep.subr.mxu0 0.0
        %1926 = vmatpush1.msra.mxu0 %v1920
        %1927 = vmatprep.subr.mxu0 0.0
        %1928 = vmatpush1.msra.mxu0 0.0
        %1929 = vmatprep.subr.mxu0 0.0
        %1930 = vmatpush1.msra.mxu0 0.0
        %1931 = vmatprep.subr.mxu0 0.0
        %1932 = vmatpush1.msra.mxu0 0.0
        %1933 = vmatprep.subr.mxu0 0.0
        %1934 = vmatpush1.msra.mxu0 0.0
        %1935 = vmatprep.subr.mxu0 0.0
        %1936 = vmatpush1.msra.mxu0 0.0
        %1937 = vmatprep.subr.mxu0 0.0
        %1938 = vmatpush1.msra.mxu0 0.0
        %1939 = vmatprep.subr.mxu0 0.0
        %1940 = vmatpush1.msra.mxu0 0.0
        %1941 = vmatprep.subr.mxu0 0.0
        %1942 = vmatpush1.msra.mxu0 0.0
        %1943 = vmatprep.subr.mxu0 0.0
        %1944 = vmatpush1.msra.mxu0 0.0
        %1945 = vmatprep.subr.mxu0 0.0
        %1946 = vmatpush1.msra.mxu0 0.0
        %1947 = vmatprep.subr.mxu0 0.0
        %1948 = vmatpush1.msra.mxu0 0.0
        %1949 = vmatprep.subr.mxu0 0.0
        %1950 = vmatpush1.msra.mxu0 0.0
        %1951 = vmatprep.subr.mxu0 0.0
        %1952 = vmatpush1.msra.mxu0 0.0
        %1953 = vmatprep.subr.mxu0 0.0
        %1954 = vmatpush1.msra.mxu0 0.0
        %1955 = vmatprep.subr.mxu0 0.0
        %1956 = vmatpush1.msra.mxu0 0.0
        %1957 = vmatprep.subr.mxu0 0.0
        %1958 = vmatpush1.msra.mxu0 0.0
        %1959 = vmatprep.subr.mxu0 0.0
        %1960 = vmatpush1.msra.mxu0 0.0
        %1961 = vmatprep.subr.mxu0 0.0
        %1962 = vmatpush1.msra.mxu0 0.0
        %1963 = vmatprep.subr.mxu0 0.0
        %1964 = vmatpush1.msra.mxu0 0.0
        %1965 = vmatprep.subr.mxu0 0.0
        %1966 = vmatpush1.msra.mxu0 0.0
        %1967 = vmatprep.subr.mxu0 0.0
        %1968 = vmatpush1.msra.mxu0 0.0
        %1969 = vmatprep.subr.mxu0 0.0
        %1970 = vmatpush1.msra.mxu0 0.0
        %1971 = vmatprep.subr.mxu0 0.0
        %1972 = vmatpush1.msra.mxu0 0.0
        %1973 = vmatprep.subr.mxu0 0.0
        %1974 = vmatpush1.msra.mxu0 0.0
        %1975 = vmatprep.subr.mxu0 0.0
        %1976 = vmatpush1.msra.mxu0 0.0
        %1977 = vmatprep.subr.mxu0 0.0
        %1978 = vmatpush1.msra.mxu0 0.0
        %1979 = vmatprep.subr.mxu0 0.0
        %1980 = vmatpush1.msra.mxu0 0.0
        %1981 = vmatprep.subr.mxu0 0.0
        %1982 = vmatpush1.msra.mxu0 0.0
        %1983 = vmatprep.subr.mxu0 0.0
        %1984 = vmatpush1.msra.mxu0 0.0
        %1985 = vmatprep.subr.mxu0 0.0
        %1986 = vmatpush1.msra.mxu0 0.0
        %1987 = vmatprep.subr.mxu0 0.0
        %1988 = vmatpush1.msra.mxu0 0.0
        %1989 = vmatprep.mubr.f32.mxu0 0.0
        %1990 = vmatmul.mubr.f32.gmra.mrb[0].mxu0 %v1923
        %v1991 = vpop.f32.mrb[0].mxu0
        %v1992 = vadd.f32 0.0, %v1991
        %v1993 = vpop.f32.mrb[0].mxu0
        %1994 = vdwg.mxu0
        %v1996 = vsel %vm1358, %v1992, 0
        %1998 = vmatprep.subr.mxu0 0.0
        %1999 = vmatpush1.msra.mxu0 %v1351
        %2000 = vmatprep.subr.mxu0 0.0
        %2001 = vmatpush1.msra.mxu0 0.0
        %2002 = vmatprep.subr.mxu0 0.0
        %2003 = vmatpush1.msra.mxu0 0.0
        %2004 = vmatprep.subr.mxu0 0.0
        %2005 = vmatpush1.msra.mxu0 0.0
        %2006 = vmatprep.subr.mxu0 0.0
        %2007 = vmatpush1.msra.mxu0 0.0
        %2008 = vmatprep.subr.mxu0 0.0
        %2009 = vmatpush1.msra.mxu0 0.0
        %2010 = vmatprep.subr.mxu0 0.0
        %2011 = vmatpush1.msra.mxu0 0.0
        %2012 = vmatprep.subr.mxu0 0.0
        %2013 = vmatpush1.msra.mxu0 0.0
        %2014 = vmatprep.subr.mxu0 0.0
        %2015 = vmatpush1.msra.mxu0 0.0
        %2016 = vmatprep.subr.mxu0 0.0
        %2017 = vmatpush1.msra.mxu0 0.0
        %2018 = vmatprep.subr.mxu0 0.0
        %2019 = vmatpush1.msra.mxu0 0.0
        %2020 = vmatprep.subr.mxu0 0.0
        %2021 = vmatpush1.msra.mxu0 0.0
        %2022 = vmatprep.subr.mxu0 0.0
        %2023 = vmatpush1.msra.mxu0 0.0
        %2024 = vmatprep.subr.mxu0 0.0
        %2025 = vmatpush1.msra.mxu0 0.0
        %2026 = vmatprep.subr.mxu0 0.0
        %2027 = vmatpush1.msra.mxu0 0.0
        %2028 = vmatprep.subr.mxu0 0.0
        %2029 = vmatpush1.msra.mxu0 0.0
        %2030 = vmatprep.subr.mxu0 0.0
        %2031 = vmatpush1.msra.mxu0 0.0
        %2032 = vmatprep.subr.mxu0 0.0
        %2033 = vmatpush1.msra.mxu0 0.0
        %2034 = vmatprep.subr.mxu0 0.0
        %2035 = vmatpush1.msra.mxu0 0.0
        %2036 = vmatprep.subr.mxu0 0.0
        %2037 = vmatpush1.msra.mxu0 0.0
        %2038 = vmatprep.subr.mxu0 0.0
        %2039 = vmatpush1.msra.mxu0 0.0
        %2040 = vmatprep.subr.mxu0 0.0
        %2041 = vmatpush1.msra.mxu0 0.0
        %2042 = vmatprep.subr.mxu0 0.0
        %2043 = vmatpush1.msra.mxu0 0.0
        %2044 = vmatprep.subr.mxu0 0.0
        %2045 = vmatpush1.msra.mxu0 0.0
        %2046 = vmatprep.subr.mxu0 0.0
        %2047 = vmatpush1.msra.mxu0 0.0
        %2048 = vmatprep.subr.mxu0 0.0
        %2049 = vmatpush1.msra.mxu0 0.0
        %2050 = vmatprep.subr.mxu0 0.0
        %2051 = vmatpush1.msra.mxu0 0.0
        %2052 = vmatprep.subr.mxu0 0.0
        %2053 = vmatpush1.msra.mxu0 0.0
        %2054 = vmatprep.subr.mxu0 0.0
        %2055 = vmatpush1.msra.mxu0 0.0
        %2056 = vmatprep.subr.mxu0 0.0
        %2057 = vmatpush1.msra.mxu0 0.0
        %2058 = vmatprep.subr.mxu0 0.0
        %2059 = vmatpush1.msra.mxu0 0.0
        %2060 = vmatprep.subr.mxu0 0.0
        %2061 = vmatpush1.msra.mxu0 0.0
        %2062 = vmatprep.mubr.f32.mxu0 0.0
        %2063 = vmatmul.mubr.f32.gmra.mrb[0].mxu0 %v1996
        %v2064 = vpop.f32.mrb[0].mxu0
        %v2065 = vadd.f32 0.0, %v2064
        %v2066 = vpop.f32.mrb[0].mxu0
        %2067 = vdwg.mxu0
        %v2068 = vadd.f32 %v1827, %v2065
        %2069 = vrot.lane.b32.xlu0 %v1354, 104
        %v2070 = vpop.permute.xlu0 %2069
        %2071 = vrot.lane.b32.xlu0 %v1265, 72
        %v2072 = vpop.permute.xlu0 %2071
        %v2073 = vsel %vm1358, %v2070, 0
        %v2075 = vsel %vm1358, %v2072, 0
        %2077 = vmatprep.subr.mxu0 0.0
        %2078 = vmatpush1.xpose.msra.mxu0 %v2075
        %2079 = vmatprep.subr.mxu0 0.0
        %2080 = vmatpush1.xpose.msra.mxu0 0.0
        %2081 = vmatprep.subr.mxu0 0.0
        %2082 = vmatpush1.xpose.msra.mxu0 0.0
        %2083 = vmatprep.subr.mxu0 0.0
        %2084 = vmatpush1.xpose.msra.mxu0 0.0
        %2085 = vmatprep.subr.mxu0 0.0
        %2086 = vmatpush1.xpose.msra.mxu0 0.0
        %2087 = vmatprep.subr.mxu0 0.0
        %2088 = vmatpush1.xpose.msra.mxu0 0.0
        %2089 = vmatprep.subr.mxu0 0.0
        %2090 = vmatpush1.xpose.msra.mxu0 0.0
        %2091 = vmatprep.subr.mxu0 0.0
        %2092 = vmatpush1.xpose.msra.mxu0 0.0
        %2093 = vmatprep.subr.mxu0 0.0
        %2094 = vmatpush1.xpose.msra.mxu0 0.0
        %2095 = vmatprep.subr.mxu0 0.0
        %2096 = vmatpush1.xpose.msra.mxu0 0.0
        %2097 = vmatprep.subr.mxu0 0.0
        %2098 = vmatpush1.xpose.msra.mxu0 0.0
        %2099 = vmatprep.subr.mxu0 0.0
        %2100 = vmatpush1.xpose.msra.mxu0 0.0
        %2101 = vmatprep.subr.mxu0 0.0
        %2102 = vmatpush1.xpose.msra.mxu0 0.0
        %2103 = vmatprep.subr.mxu0 0.0
        %2104 = vmatpush1.xpose.msra.mxu0 0.0
        %2105 = vmatprep.subr.mxu0 0.0
        %2106 = vmatpush1.xpose.msra.mxu0 0.0
        %2107 = vmatprep.subr.mxu0 0.0
        %2108 = vmatpush1.xpose.msra.mxu0 0.0
        %2109 = vmatprep.subr.mxu0 0.0
        %2110 = vmatpush1.xpose.msra.mxu0 0.0
        %2111 = vmatprep.subr.mxu0 0.0
        %2112 = vmatpush1.xpose.msra.mxu0 0.0
        %2113 = vmatprep.subr.mxu0 0.0
        %2114 = vmatpush1.xpose.msra.mxu0 0.0
        %2115 = vmatprep.subr.mxu0 0.0
        %2116 = vmatpush1.xpose.msra.mxu0 0.0
        %2117 = vmatprep.subr.mxu0 0.0
        %2118 = vmatpush1.xpose.msra.mxu0 0.0
        %2119 = vmatprep.subr.mxu0 0.0
        %2120 = vmatpush1.xpose.msra.mxu0 0.0
        %2121 = vmatprep.subr.mxu0 0.0
        %2122 = vmatpush1.xpose.msra.mxu0 0.0
        %2123 = vmatprep.subr.mxu0 0.0
        %2124 = vmatpush1.xpose.msra.mxu0 0.0
        %2125 = vmatprep.subr.mxu0 0.0
        %2126 = vmatpush1.xpose.msra.mxu0 0.0
        %2127 = vmatprep.subr.mxu0 0.0
        %2128 = vmatpush1.xpose.msra.mxu0 0.0
        %2129 = vmatprep.subr.mxu0 0.0
        %2130 = vmatpush1.xpose.msra.mxu0 0.0
        %2131 = vmatprep.subr.mxu0 0.0
        %2132 = vmatpush1.xpose.msra.mxu0 0.0
        %2133 = vmatprep.subr.mxu0 0.0
        %2134 = vmatpush1.xpose.msra.mxu0 0.0
        %2135 = vmatprep.subr.mxu0 0.0
        %2136 = vmatpush1.xpose.msra.mxu0 0.0
        %2137 = vmatprep.subr.mxu0 0.0
        %2138 = vmatpush1.xpose.msra.mxu0 0.0
        %2139 = vmatprep.subr.mxu0 0.0
        %2140 = vmatpush1.xpose.msra.mxu0 0.0
        %2141 = vmatprep.mubr.f32.mxu0 0.0
        %2142 = vmatmul.mubr.f32.gmra.mrb[0].mxu0 %v2073
        %v2143 = vpop.f32.mrb[0].mxu0
        %v2144 = vadd.f32 0.0, %v2143
        %v2145 = vpop.f32.mrb[0].mxu0
        %2146 = vdwg.mxu0
        %v2147 = vsel %vm1358, %v2144, -inf
        %2148 = vmax.xlane.f32.xlu0 %v2147
        %v2149 = vpop.xlane.xlu0 %2148
        %v2150 = vsub.f32 %v2144, %v2149
        %v2151 = vmul.f32 %v2150, 1.442695
        %v2152 = vpow.pop %v2151
        %v2153 = vsel %vm1358, %v2152, 0.0
        %2154 = vadd.xlane.f32.xlu0 %v2153
        %v2155 = vpop.xlane.xlu0 %2154
        %v2156 = vrcp.pop %v2155
        %v2157 = vmul.f32 %v2152, %v2156
        %2158 = vrot.lane.b32.xlu0 %v1346, 104
        %v2159 = vpop.permute.xlu0 %2158
        %v2162 = vsel %vm1358, %v2157, 0
        %2164 = vmatprep.subr.mxu0 0.0
        %2165 = vmatpush1.msra.mxu0 %v2159
        %2166 = vmatprep.subr.mxu0 0.0
        %2167 = vmatpush1.msra.mxu0 0.0
        %2168 = vmatprep.subr.mxu0 0.0
        %2169 = vmatpush1.msra.mxu0 0.0
        %2170 = vmatprep.subr.mxu0 0.0
        %2171 = vmatpush1.msra.mxu0 0.0
        %2172 = vmatprep.subr.mxu0 0.0
        %2173 = vmatpush1.msra.mxu0 0.0
        %2174 = vmatprep.subr.mxu0 0.0
        %2175 = vmatpush1.msra.mxu0 0.0
        %2176 = vmatprep.subr.mxu0 0.0
        %2177 = vmatpush1.msra.mxu0 0.0
        %2178 = vmatprep.subr.mxu0 0.0
        %2179 = vmatpush1.msra.mxu0 0.0
        %2180 = vmatprep.subr.mxu0 0.0
        %2181 = vmatpush1.msra.mxu0 0.0
        %2182 = vmatprep.subr.mxu0 0.0
        %2183 = vmatpush1.msra.mxu0 0.0
        %2184 = vmatprep.subr.mxu0 0.0
        %2185 = vmatpush1.msra.mxu0 0.0
        %2186 = vmatprep.subr.mxu0 0.0
        %2187 = vmatpush1.msra.mxu0 0.0
        %2188 = vmatprep.subr.mxu0 0.0
        %2189 = vmatpush1.msra.mxu0 0.0
        %2190 = vmatprep.subr.mxu0 0.0
        %2191 = vmatpush1.msra.mxu0 0.0
        %2192 = vmatprep.subr.mxu0 0.0
        %2193 = vmatpush1.msra.mxu0 0.0
        %2194 = vmatprep.subr.mxu0 0.0
        %2195 = vmatpush1.msra.mxu0 0.0
        %2196 = vmatprep.subr.mxu0 0.0
        %2197 = vmatpush1.msra.mxu0 0.0
        %2198 = vmatprep.subr.mxu0 0.0
        %2199 = vmatpush1.msra.mxu0 0.0
        %2200 = vmatprep.subr.mxu0 0.0
        %2201 = vmatpush1.msra.mxu0 0.0
        %2202 = vmatprep.subr.mxu0 0.0
        %2203 = vmatpush1.msra.mxu0 0.0
        %2204 = vmatprep.subr.mxu0 0.0
        %2205 = vmatpush1.msra.mxu0 0.0
        %2206 = vmatprep.subr.mxu0 0.0
        %2207 = vmatpush1.msra.mxu0 0.0
        %2208 = vmatprep.subr.mxu0 0.0
        %2209 = vmatpush1.msra.mxu0 0.0
        %2210 = vmatprep.subr.mxu0 0.0
        %2211 = vmatpush1.msra.mxu0 0.0
        %2212 = vmatprep.subr.mxu0 0.0
        %2213 = vmatpush1.msra.mxu0 0.0
        %2214 = vmatprep.subr.mxu0 0.0
        %2215 = vmatpush1.msra.mxu0 0.0
        %2216 = vmatprep.subr.mxu0 0.0
        %2217 = vmatpush1.msra.mxu0 0.0
        %2218 = vmatprep.subr.mxu0 0.0
        %2219 = vmatpush1.msra.mxu0 0.0
        %2220 = vmatprep.subr.mxu0 0.0
        %2221 = vmatpush1.msra.mxu0 0.0
        %2222 = vmatprep.subr.mxu0 0.0
        %2223 = vmatpush1.msra.mxu0 0.0
        %2224 = vmatprep.subr.mxu0 0.0
        %2225 = vmatpush1.msra.mxu0 0.0
        %2226 = vmatprep.subr.mxu0 0.0
        %2227 = vmatpush1.msra.mxu0 0.0
        %2228 = vmatprep.mubr.f32.mxu0 0.0
        %2229 = vmatmul.mubr.f32.gmra.mrb[0].mxu0 %v2162
        %v2230 = vpop.f32.mrb[0].mxu0
        %v2231 = vadd.f32 0.0, %v2230
        %v2232 = vpop.f32.mrb[0].mxu0
        %2233 = vdwg.mxu0
        %v2235 = vsel %vm1358, %v2231, 0
        %2237 = vmatprep.subr.mxu0 0.0
        %2238 = vmatpush1.msra.mxu0 %v1352
        %2239 = vmatprep.subr.mxu0 0.0
        %2240 = vmatpush1.msra.mxu0 0.0
        %2241 = vmatprep.subr.mxu0 0.0
        %2242 = vmatpush1.msra.mxu0 0.0
        %2243 = vmatprep.subr.mxu0 0.0
        %2244 = vmatpush1.msra.mxu0 0.0
        %2245 = vmatprep.subr.mxu0 0.0
        %2246 = vmatpush1.msra.mxu0 0.0
        %2247 = vmatprep.subr.mxu0 0.0
        %2248 = vmatpush1.msra.mxu0 0.0
        %2249 = vmatprep.subr.mxu0 0.0
        %2250 = vmatpush1.msra.mxu0 0.0
        %2251 = vmatprep.subr.mxu0 0.0
        %2252 = vmatpush1.msra.mxu0 0.0
        %2253 = vmatprep.subr.mxu0 0.0
        %2254 = vmatpush1.msra.mxu0 0.0
        %2255 = vmatprep.subr.mxu0 0.0
        %2256 = vmatpush1.msra.mxu0 0.0
        %2257 = vmatprep.subr.mxu0 0.0
        %2258 = vmatpush1.msra.mxu0 0.0
        %2259 = vmatprep.subr.mxu0 0.0
        %2260 = vmatpush1.msra.mxu0 0.0
        %2261 = vmatprep.subr.mxu0 0.0
        %2262 = vmatpush1.msra.mxu0 0.0
        %2263 = vmatprep.subr.mxu0 0.0
        %2264 = vmatpush1.msra.mxu0 0.0
        %2265 = vmatprep.subr.mxu0 0.0
        %2266 = vmatpush1.msra.mxu0 0.0
        %2267 = vmatprep.subr.mxu0 0.0
        %2268 = vmatpush1.msra.mxu0 0.0
        %2269 = vmatprep.subr.mxu0 0.0
        %2270 = vmatpush1.msra.mxu0 0.0
        %2271 = vmatprep.subr.mxu0 0.0
        %2272 = vmatpush1.msra.mxu0 0.0
        %2273 = vmatprep.subr.mxu0 0.0
        %2274 = vmatpush1.msra.mxu0 0.0
        %2275 = vmatprep.subr.mxu0 0.0
        %2276 = vmatpush1.msra.mxu0 0.0
        %2277 = vmatprep.subr.mxu0 0.0
        %2278 = vmatpush1.msra.mxu0 0.0
        %2279 = vmatprep.subr.mxu0 0.0
        %2280 = vmatpush1.msra.mxu0 0.0
        %2281 = vmatprep.subr.mxu0 0.0
        %2282 = vmatpush1.msra.mxu0 0.0
        %2283 = vmatprep.subr.mxu0 0.0
        %2284 = vmatpush1.msra.mxu0 0.0
        %2285 = vmatprep.subr.mxu0 0.0
        %2286 = vmatpush1.msra.mxu0 0.0
        %2287 = vmatprep.subr.mxu0 0.0
        %2288 = vmatpush1.msra.mxu0 0.0
        %2289 = vmatprep.subr.mxu0 0.0
        %2290 = vmatpush1.msra.mxu0 0.0
        %2291 = vmatprep.subr.mxu0 0.0
        %2292 = vmatpush1.msra.mxu0 0.0
        %2293 = vmatprep.subr.mxu0 0.0
        %2294 = vmatpush1.msra.mxu0 0.0
        %2295 = vmatprep.subr.mxu0 0.0
        %2296 = vmatpush1.msra.mxu0 0.0
        %2297 = vmatprep.subr.mxu0 0.0
        %2298 = vmatpush1.msra.mxu0 0.0
        %2299 = vmatprep.subr.mxu0 0.0
        %2300 = vmatpush1.msra.mxu0 0.0
        %2301 = vmatprep.mubr.f32.mxu0 0.0
        %2302 = vmatmul.mubr.f32.gmra.mrb[0].mxu0 %v2235
        %v2303 = vpop.f32.mrb[0].mxu0
        %v2304 = vadd.f32 0.0, %v2303
        %v2305 = vpop.f32.mrb[0].mxu0
        %2306 = vdwg.mxu0
        %v2307 = vadd.f32 %v2068, %v2304
        %v2309 = vlaneseq
        %v2310 = vshrl.u32 %v2309, 7
        %v2311 = vsub.s32 0, %v2310
        %v2312 = vrot.slane %v1353, %v2311
        %v2314 = vadd.f32 %v2307, %v2312
        %v2315 = vadd.f32 %v1008, %v2314
        %v2316 = vld [vmem:[%s29] sm:$0x1]
        %v2317 = vld [vmem:[%s31] sm:$0x1]
        %v2318 = vsel %vm1024, %v2315, 0.0
        %2319 = vadd.xlane.f32.xlu0 %v2318
        %v2320 = vpop.xlane.xlu0 %2319
        %v2321 = vrcp.pop 32.0
        %v2322 = vmul.f32 %v2320, %v2321
        %v2323 = vsub.f32 %v2315, %v2322
        %v2324 = vmul.f32 %v2323, %v2323
        %v2325 = vsel %vm1024, %v2324, 0.0
        %2326 = vadd.xlane.f32.xlu0 %v2325
        %v2327 = vpop.xlane.xlu0 %2326
        %v2328 = vmul.f32 %v2327, %v2321
        %v2329 = vadd.f32 %v2328, 1e-05
        %v2330 = vrsqrt.pop %v2329
        %v2331 = vmul.f32 %v2323, %v2330
        %v2333 = vlaneseq
        %v2334 = vshrl.u32 %v2333, 7
        %v2335 = vsub.s32 0, %v2334
        %v2336 = vrot.slane %v2316, %v2335
        %v2338 = vmul.f32 %v2331, %v2336
        %v2340 = vlaneseq
        %v2341 = vshrl.u32 %v2340, 7
        %v2342 = vsub.s32 0, %v2341
        %v2343 = vrot.slane %v2317, %v2342
        %v2345 = vadd.f32 %v2338, %v2343
        %v2346 = vld [vmem:[%s33] sm:$0x1]
        %v2348 = vlaneseq
        %v2349 = vshrl.u32 %v2348, 7
        %v2350 = vsub.s32 0, %v2349
        %v2351 = vrot.slane %v2346, %v2350
        %v2353 = vmul.f32 %v2351, %v1012
        %v2354 = vmul.f32 %v1180, %v2353
        %v2355 = vadd.f32 %v2345, %v2354
        %v2356 = vld [vmem:[%s35] sm:$0xff]
        %v2357 = vld [vmem:[%s35 + $0x8] sm:$0xff]
        %v2358 = vld [vmem:[%s35 + $0x10] sm:$0xff]
        %v2359 = vld [vmem:[%s35 + $0x18] sm:$0xff]
        %v2360 = vld [vmem:[%s37] sm:$0x1]
        %v2362 = vlaneseq
        %v2363 = vshrl.u32 %v2362, 7
        %v2364 = vsub.s32 0, %v2363
        %v2365 = vrot.slane %v2360, %v2364
        %v2368 = vsel %vm1024, %v2355, 0
        %2370 = vmatprep.subr.mxu0 0.0
        %2371 = vmatpush1.msra.mxu0 %v2356
        %2372 = vmatprep.subr.mxu0 0.0
        %2373 = vmatpush1.msra.mxu0 %v2357
        %2374 = vmatprep.subr.mxu0 0.0
        %2375 = vmatpush1.msra.mxu0 %v2358
        %2376 = vmatprep.subr.mxu0 0.0
        %2377 = vmatpush1.msra.mxu0 %v2359
        %2378 = vmatprep.subr.mxu0 0.0
        %2379 = vmatpush1.msra.mxu0 0.0
        %2380 = vmatprep.subr.mxu0 0.0
        %2381 = vmatpush1.msra.mxu0 0.0
        %2382 = vmatprep.subr.mxu0 0.0
        %2383 = vmatpush1.msra.mxu0 0.0
        %2384 = vmatprep.subr.mxu0 0.0
        %2385 = vmatpush1.msra.mxu0 0.0
        %2386 = vmatprep.subr.mxu0 0.0
        %2387 = vmatpush1.msra.mxu0 0.0
        %2388 = vmatprep.subr.mxu0 0.0
        %2389 = vmatpush1.msra.mxu0 0.0
        %2390 = vmatprep.subr.mxu0 0.0
        %2391 = vmatpush1.msra.mxu0 0.0
        %2392 = vmatprep.subr.mxu0 0.0
        %2393 = vmatpush1.msra.mxu0 0.0
        %2394 = vmatprep.subr.mxu0 0.0
        %2395 = vmatpush1.msra.mxu0 0.0
        %2396 = vmatprep.subr.mxu0 0.0
        %2397 = vmatpush1.msra.mxu0 0.0
        %2398 = vmatprep.subr.mxu0 0.0
        %2399 = vmatpush1.msra.mxu0 0.0
        %2400 = vmatprep.subr.mxu0 0.0
        %2401 = vmatpush1.msra.mxu0 0.0
        %2402 = vmatprep.subr.mxu0 0.0
        %2403 = vmatpush1.msra.mxu0 0.0
        %2404 = vmatprep.subr.mxu0 0.0
        %2405 = vmatpush1.msra.mxu0 0.0
        %2406 = vmatprep.subr.mxu0 0.0
        %2407 = vmatpush1.msra.mxu0 0.0
        %2408 = vmatprep.subr.mxu0 0.0
        %2409 = vmatpush1.msra.mxu0 0.0
        %2410 = vmatprep.subr.mxu0 0.0
        %2411 = vmatpush1.msra.mxu0 0.0
        %2412 = vmatprep.subr.mxu0 0.0
        %2413 = vmatpush1.msra.mxu0 0.0
        %2414 = vmatprep.subr.mxu0 0.0
        %2415 = vmatpush1.msra.mxu0 0.0
        %2416 = vmatprep.subr.mxu0 0.0
        %2417 = vmatpush1.msra.mxu0 0.0
        %2418 = vmatprep.subr.mxu0 0.0
        %2419 = vmatpush1.msra.mxu0 0.0
        %2420 = vmatprep.subr.mxu0 0.0
        %2421 = vmatpush1.msra.mxu0 0.0
        %2422 = vmatprep.subr.mxu0 0.0
        %2423 = vmatpush1.msra.mxu0 0.0
        %2424 = vmatprep.subr.mxu0 0.0
        %2425 = vmatpush1.msra.mxu0 0.0
        %2426 = vmatprep.subr.mxu0 0.0
        %2427 = vmatpush1.msra.mxu0 0.0
        %2428 = vmatprep.subr.mxu0 0.0
        %2429 = vmatpush1.msra.mxu0 0.0
        %2430 = vmatprep.subr.mxu0 0.0
        %2431 = vmatpush1.msra.mxu0 0.0
        %2432 = vmatprep.subr.mxu0 0.0
        %2433 = vmatpush1.msra.mxu0 0.0
        %2434 = vmatprep.mubr.f32.mxu0 0.0
        %2435 = vmatmul.mubr.f32.gmra.mrb[0].mxu0 %v2368
        %v2436 = vpop.f32.mrb[0].mxu0
        %v2437 = vadd.f32 %v2365, %v2436
        %v2438 = vpop.f32.mrb[0].mxu0
        %2439 = vdwg.mxu0
        %v2440 = vld [vmem:[%s39] sm:$0xff]
        %v2441 = vld [vmem:[%s39 + $0x8] sm:$0xff]
        %v2442 = vld [vmem:[%s39 + $0x10] sm:$0xff]
        %v2443 = vld [vmem:[%s39 + $0x18] sm:$0xff]
        %v2444 = vld [vmem:[%s41] sm:$0x1]
        %v2446 = vlaneseq
        %v2447 = vshrl.u32 %v2446, 7
        %v2448 = vsub.s32 0, %v2447
        %v2449 = vrot.slane %v2444, %v2448
        %v2452 = vsel %vm1024, %v1010, 0
        %v2455 = vsel %vm1024, %v1011, 0
        %2457 = vmatprep.subr.mxu0 0.0
        %2458 = vmatpush1.msra.mxu0 %v2440
        %2459 = vmatprep.subr.mxu0 0.0
        %2460 = vmatpush1.msra.mxu0 %v2441
        %2461 = vmatprep.subr.mxu0 0.0
        %2462 = vmatpush1.msra.mxu0 %v2442
        %2463 = vmatprep.subr.mxu0 0.0
        %2464 = vmatpush1.msra.mxu0 %v2443
        %2465 = vmatprep.subr.mxu0 0.0
        %2466 = vmatpush1.msra.mxu0 0.0
        %2467 = vmatprep.subr.mxu0 0.0
        %2468 = vmatpush1.msra.mxu0 0.0
        %2469 = vmatprep.subr.mxu0 0.0
        %2470 = vmatpush1.msra.mxu0 0.0
        %2471 = vmatprep.subr.mxu0 0.0
        %2472 = vmatpush1.msra.mxu0 0.0
        %2473 = vmatprep.subr.mxu0 0.0
        %2474 = vmatpush1.msra.mxu0 0.0
        %2475 = vmatprep.subr.mxu0 0.0
        %2476 = vmatpush1.msra.mxu0 0.0
        %2477 = vmatprep.subr.mxu0 0.0
        %2478 = vmatpush1.msra.mxu0 0.0
        %2479 = vmatprep.subr.mxu0 0.0
        %2480 = vmatpush1.msra.mxu0 0.0
        %2481 = vmatprep.subr.mxu0 0.0
        %2482 = vmatpush1.msra.mxu0 0.0
        %2483 = vmatprep.subr.mxu0 0.0
        %2484 = vmatpush1.msra.mxu0 0.0
        %2485 = vmatprep.subr.mxu0 0.0
        %2486 = vmatpush1.msra.mxu0 0.0
        %2487 = vmatprep.subr.mxu0 0.0
        %2488 = vmatpush1.msra.mxu0 0.0
        %2489 = vmatprep.subr.mxu0 0.0
        %2490 = vmatpush1.msra.mxu0 0.0
        %2491 = vmatprep.subr.mxu0 0.0
        %2492 = vmatpush1.msra.mxu0 0.0
        %2493 = vmatprep.subr.mxu0 0.0
        %2494 = vmatpush1.msra.mxu0 0.0
        %2495 = vmatprep.subr.mxu0 0.0
        %2496 = vmatpush1.msra.mxu0 0.0
        %2497 = vmatprep.subr.mxu0 0.0
        %2498 = vmatpush1.msra.mxu0 0.0
        %2499 = vmatprep.subr.mxu0 0.0
        %2500 = vmatpush1.msra.mxu0 0.0
        %2501 = vmatprep.subr.mxu0 0.0
        %2502 = vmatpush1.msra.mxu0 0.0
        %2503 = vmatprep.subr.mxu0 0.0
        %2504 = vmatpush1.msra.mxu0 0.0
        %2505 = vmatprep.subr.mxu0 0.0
        %2506 = vmatpush1.msra.mxu0 0.0
        %2507 = vmatprep.subr.mxu0 0.0
        %2508 = vmatpush1.msra.mxu0 0.0
        %2509 = vmatprep.subr.mxu0 0.0
        %2510 = vmatpush1.msra.mxu0 0.0
        %2511 = vmatprep.subr.mxu0 0.0
        %2512 = vmatpush1.msra.mxu0 0.0
        %2513 = vmatprep.subr.mxu0 0.0
        %2514 = vmatpush1.msra.mxu0 0.0
        %2515 = vmatprep.subr.mxu0 0.0
        %2516 = vmatpush1.msra.mxu0 0.0
        %2517 = vmatprep.subr.mxu0 0.0
        %2518 = vmatpush1.msra.mxu0 0.0
        %2519 = vmatprep.subr.mxu0 0.0
        %2520 = vmatpush1.msra.mxu0 0.0
        %2521 = vmatprep.mubr.f32.mxu0 0.0
        %2522 = vmatmul.mubr.f32.gmra.mrb[0].mxu0 %v2452
        %v2523 = vpop.f32.mrb[0].mxu0
        %v2524 = vadd.f32 %v2449, %v2523
        %v2525 = vpop.f32.mrb[0].mxu0
        %2526 = vmatprep.mubr.f32.mxu0 0.0
        %2527 = vmatmul.mubr.f32.gmra.mrb[0].mxu0 %v2455
        %v2528 = vpop.f32.mrb[0].mxu0
        %v2529 = vadd.f32 %v2449, %v2528
        %v2530 = vpop.f32.mrb[0].mxu0
        %2531 = vdwg.mxu0
        %v2532 = vld [vmem:[%s43] sm:$0xff]
        %v2533 = vld [vmem:[%s43 + $0x8] sm:$0xff]
        %v2534 = vld [vmem:[%s43 + $0x10] sm:$0xff]
        %v2535 = vld [vmem:[%s43 + $0x18] sm:$0xff]
        %v2536 = vld [vmem:[%s45] sm:$0x1]
        %v2537 = vmul.f32 %v2437, 0.35355338
        %v2539 = vsel %vm1358, %v2537, 0
        %v2542 = vsel %vm1358, %v2524, 0
        %v2545 = vsel %vm1358, %v2529, 0
        %2547 = vmatprep.subr.mxu0 0.0
        %2548 = vmatpush1.xpose.msra.mxu0 %v2542
        %2549 = vmatprep.subr.mxu0 0.0
        %2550 = vmatpush1.xpose.msra.mxu0 %v2545
        %2551 = vmatprep.subr.mxu0 0.0
        %2552 = vmatpush1.xpose.msra.mxu0 0.0
        %2553 = vmatprep.subr.mxu0 0.0
        %2554 = vmatpush1.xpose.msra.mxu0 0.0
        %2555 = vmatprep.subr.mxu0 0.0
        %2556 = vmatpush1.xpose.msra.mxu0 0.0
        %2557 = vmatprep.subr.mxu0 0.0
        %2558 = vmatpush1.xpose.msra.mxu0 0.0
        %2559 = vmatprep.subr.mxu0 0.0
        %2560 = vmatpush1.xpose.msra.mxu0 0.0
        %2561 = vmatprep.subr.mxu0 0.0
        %2562 = vmatpush1.xpose.msra.mxu0 0.0
        %2563 = vmatprep.subr.mxu0 0.0
        %2564 = vmatpush1.xpose.msra.mxu0 0.0
        %2565 = vmatprep.subr.mxu0 0.0
        %2566 = vmatpush1.xpose.msra.mxu0 0.0
        %2567 = vmatprep.subr.mxu0 0.0
        %2568 = vmatpush1.xpose.msra.mxu0 0.0
        %2569 = vmatprep.subr.mxu0 0.0
        %2570 = vmatpush1.xpose.msra.mxu0 0.0
        %2571 = vmatprep.subr.mxu0 0.0
        %2572 = vmatpush1.xpose.msra.mxu0 0.0
        %2573 = vmatprep.subr.mxu0 0.0
        %2574 = vmatpush1.xpose.msra.mxu0 0.0
        %2575 = vmatprep.subr.mxu0 0.0
        %2576 = vmatpush1.xpose.msra.mxu0 0.0
        %2577 = vmatprep.subr.mxu0 0.0
        %2578 = vmatpush1.xpose.msra.mxu0 0.0
        %2579 = vmatprep.subr.mxu0 0.0
        %2580 = vmatpush1.xpose.msra.mxu0 0.0
        %2581 = vmatprep.subr.mxu0 0.0
        %2582 = vmatpush1.xpose.msra.mxu0 0.0
        %2583 = vmatprep.subr.mxu0 0.0
        %2584 = vmatpush1.xpose.msra.mxu0 0.0
        %2585 = vmatprep.subr.mxu0 0.0
        %2586 = vmatpush1.xpose.msra.mxu0 0.0
        %2587 = vmatprep.subr.mxu0 0.0
        %2588 = vmatpush1.xpose.msra.mxu0 0.0
        %2589 = vmatprep.subr.mxu0 0.0
        %2590 = vmatpush1.xpose.msra.mxu0 0.0
        %2591 = vmatprep.subr.mxu0 0.0
        %2592 = vmatpush1.xpose.msra.mxu0 0.0
        %2593 = vmatprep.subr.mxu0 0.0
        %2594 = vmatpush1.xpose.msra.mxu0 0.0
        %2595 = vmatprep.subr.mxu0 0.0
        %2596 = vmatpush1.xpose.msra.mxu0 0.0
        %2597 = vmatprep.subr.mxu0 0.0
        %2598 = vmatpush1.xpose.msra.mxu0 0.0
        %2599 = vmatprep.subr.mxu0 0.0
        %2600 = vmatpush1.xpose.msra.mxu0 0.0
        %2601 = vmatprep.subr.mxu0 0.0
        %2602 = vmatpush1.xpose.msra.mxu0 0.0
        %2603 = vmatprep.subr.mxu0 0.0
        %2604 = vmatpush1.xpose.msra.mxu0 0.0
        %2605 = vmatprep.subr.mxu0 0.0
        %2606 = vmatpush1.xpose.msra.mxu0 0.0
        %2607 = vmatprep.subr.mxu0 0.0
        %2608 = vmatpush1.xpose.msra.mxu0 0.0
        %2609 = vmatprep.subr.mxu0 0.0
        %2610 = vmatpush1.xpose.msra.mxu0 0.0
        %2611 = vmatprep.mubr.f32.mxu0 0.0
        %2612 = vmatmul.mubr.f32.gmra.mrb[0].mxu0 %v2539
        %v2613 = vpop.f32.mrb[0].mxu0
        %v2614 = vadd.f32 0.0, %v2613
        %v2615 = vpop.f32.mrb[0].mxu0
        %2616 = vdwg.mxu0
        %vm2617 = vcmask 130048
        %v2618 = vsel %vm2617, %v2614, -inf
        %2619 = vmax.xlane.f32.xlu0 %v2618
        %v2620 = vpop.xlane.xlu0 %2619
        %v2621 = vsub.f32 %v2614, %v2620
        %v2622 = vmul.f32 %v2621, 1.442695
        %v2623 = vpow.pop %v2622
        %v2624 = vsel %vm2617, %v2623, 0.0
        %2625 = vadd.xlane.f32.xlu0 %v2624
        %v2626 = vpop.xlane.xlu0 %2625
        %v2627 = vrcp.pop %v2626
        %v2628 = vmul.f32 %v2623, %v2627
        %2629 = vrot.lane.b32.xlu0 %v2524, 96
        %v2630 = vpop.permute.xlu0 %2629
        %2631 = vrot.lane.b32.xlu0 %v2529, 96
        %v2632 = vpop.permute.xlu0 %2631
        %v2636 = vsel %vm2617, %v2628, 0
        %2638 = vmatprep.subr.mxu0 0.0
        %2639 = vmatpush1.msra.mxu0 %v2630
        %2640 = vmatprep.subr.mxu0 0.0
        %2641 = vmatpush1.msra.mxu0 %v2632
        %2642 = vmatprep.subr.mxu0 0.0
        %2643 = vmatpush1.msra.mxu0 0.0
        %2644 = vmatprep.subr.mxu0 0.0
        %2645 = vmatpush1.msra.mxu0 0.0
        %2646 = vmatprep.subr.mxu0 0.0
        %2647 = vmatpush1.msra.mxu0 0.0
        %2648 = vmatprep.subr.mxu0 0.0
        %2649 = vmatpush1.msra.mxu0 0.0
        %2650 = vmatprep.subr.mxu0 0.0
        %2651 = vmatpush1.msra.mxu0 0.0
        %2652 = vmatprep.subr.mxu0 0.0
        %2653 = vmatpush1.msra.mxu0 0.0
        %2654 = vmatprep.subr.mxu0 0.0
        %2655 = vmatpush1.msra.mxu0 0.0
        %2656 = vmatprep.subr.mxu0 0.0
        %2657 = vmatpush1.msra.mxu0 0.0
        %2658 = vmatprep.subr.mxu0 0.0
        %2659 = vmatpush1.msra.mxu0 0.0
        %2660 = vmatprep.subr.mxu0 0.0
        %2661 = vmatpush1.msra.mxu0 0.0
        %2662 = vmatprep.subr.mxu0 0.0
        %2663 = vmatpush1.msra.mxu0 0.0
        %2664 = vmatprep.subr.mxu0 0.0
        %2665 = vmatpush1.msra.mxu0 0.0
        %2666 = vmatprep.subr.mxu0 0.0
        %2667 = vmatpush1.msra.mxu0 0.0
        %2668 = vmatprep.subr.mxu0 0.0
        %2669 = vmatpush1.msra.mxu0 0.0
        %2670 = vmatprep.subr.mxu0 0.0
        %2671 = vmatpush1.msra.mxu0 0.0
        %2672 = vmatprep.subr.mxu0 0.0
        %2673 = vmatpush1.msra.mxu0 0.0
        %2674 = vmatprep.subr.mxu0 0.0
        %2675 = vmatpush1.msra.mxu0 0.0
        %2676 = vmatprep.subr.mxu0 0.0
        %2677 = vmatpush1.msra.mxu0 0.0
        %2678 = vmatprep.subr.mxu0 0.0
        %2679 = vmatpush1.msra.mxu0 0.0
        %2680 = vmatprep.subr.mxu0 0.0
        %2681 = vmatpush1.msra.mxu0 0.0
        %2682 = vmatprep.subr.mxu0 0.0
        %2683 = vmatpush1.msra.mxu0 0.0
        %2684 = vmatprep.subr.mxu0 0.0
        %2685 = vmatpush1.msra.mxu0 0.0
        %2686 = vmatprep.subr.mxu0 0.0
        %2687 = vmatpush1.msra.mxu0 0.0
        %2688 = vmatprep.subr.mxu0 0.0
        %2689 = vmatpush1.msra.mxu0 0.0
        %2690 = vmatprep.subr.mxu0 0.0
        %2691 = vmatpush1.msra.mxu0 0.0
        %2692 = vmatprep.subr.mxu0 0.0
        %2693 = vmatpush1.msra.mxu0 0.0
        %2694 = vmatprep.subr.mxu0 0.0
        %2695 = vmatpush1.msra.mxu0 0.0
        %2696 = vmatprep.subr.mxu0 0.0
        %2697 = vmatpush1.msra.mxu0 0.0
        %2698 = vmatprep.subr.mxu0 0.0
        %2699 = vmatpush1.msra.mxu0 0.0
        %2700 = vmatprep.subr.mxu0 0.0
        %2701 = vmatpush1.msra.mxu0 0.0
        %2702 = vmatprep.mubr.f32.mxu0 0.0
        %2703 = vmatmul.mubr.f32.gmra.mrb[0].mxu0 %v2636
        %v2704 = vpop.f32.mrb[0].mxu0
        %v2705 = vadd.f32 0.0, %v2704
        %v2706 = vpop.f32.mrb[0].mxu0
        %2707 = vdwg.mxu0
        %2708 = vrot.lane.b32.xlu0 %v2537, 120
        %v2709 = vpop.permute.xlu0 %2708
        %2710 = vrot.lane.b32.xlu0 %v2524, 120
        %v2711 = vpop.permute.xlu0 %2710
        %2712 = vrot.lane.b32.xlu0 %v2529, 120
        %v2713 = vpop.permute.xlu0 %2712
        %v2714 = vsel %vm1358, %v2709, 0
        %v2716 = vsel %vm1358, %v2711, 0
        %v2718 = vsel %vm1358, %v2713, 0
        %2720 = vmatprep.subr.mxu0 0.0
        %2721 = vmatpush1.xpose.msra.mxu0 %v2716
        %2722 = vmatprep.subr.mxu0 0.0
        %2723 = vmatpush1.xpose.msra.mxu0 %v2718
        %2724 = vmatprep.subr.mxu0 0.0
        %2725 = vmatpush1.xpose.msra.mxu0 0.0
        %2726 = vmatprep.subr.mxu0 0.0
        %2727 = vmatpush1.xpose.msra.mxu0 0.0
        %2728 = vmatprep.subr.mxu0 0.0
        %2729 = vmatpush1.xpose.msra.mxu0 0.0
        %2730 = vmatprep.subr.mxu0 0.0
        %2731 = vmatpush1.xpose.msra.mxu0 0.0
        %2732 = vmatprep.subr.mxu0 0.0
        %2733 = vmatpush1.xpose.msra.mxu0 0.0
        %2734 = vmatprep.subr.mxu0 0.0
        %2735 = vmatpush1.xpose.msra.mxu0 0.0
        %2736 = vmatprep.subr.mxu0 0.0
        %2737 = vmatpush1.xpose.msra.mxu0 0.0
        %2738 = vmatprep.subr.mxu0 0.0
        %2739 = vmatpush1.xpose.msra.mxu0 0.0
        %2740 = vmatprep.subr.mxu0 0.0
        %2741 = vmatpush1.xpose.msra.mxu0 0.0
        %2742 = vmatprep.subr.mxu0 0.0
        %2743 = vmatpush1.xpose.msra.mxu0 0.0
        %2744 = vmatprep.subr.mxu0 0.0
        %2745 = vmatpush1.xpose.msra.mxu0 0.0
        %2746 = vmatprep.subr.mxu0 0.0
        %2747 = vmatpush1.xpose.msra.mxu0 0.0
        %2748 = vmatprep.subr.mxu0 0.0
        %2749 = vmatpush1.xpose.msra.mxu0 0.0
        %2750 = vmatprep.subr.mxu0 0.0
        %2751 = vmatpush1.xpose.msra.mxu0 0.0
        %2752 = vmatprep.subr.mxu0 0.0
        %2753 = vmatpush1.xpose.msra.mxu0 0.0
        %2754 = vmatprep.subr.mxu0 0.0
        %2755 = vmatpush1.xpose.msra.mxu0 0.0
        %2756 = vmatprep.subr.mxu0 0.0
        %2757 = vmatpush1.xpose.msra.mxu0 0.0
        %2758 = vmatprep.subr.mxu0 0.0
        %2759 = vmatpush1.xpose.msra.mxu0 0.0
        %2760 = vmatprep.subr.mxu0 0.0
        %2761 = vmatpush1.xpose.msra.mxu0 0.0
        %2762 = vmatprep.subr.mxu0 0.0
        %2763 = vmatpush1.xpose.msra.mxu0 0.0
        %2764 = vmatprep.subr.mxu0 0.0
        %2765 = vmatpush1.xpose.msra.mxu0 0.0
        %2766 = vmatprep.subr.mxu0 0.0
        %2767 = vmatpush1.xpose.msra.mxu0 0.0
        %2768 = vmatprep.subr.mxu0 0.0
        %2769 = vmatpush1.xpose.msra.mxu0 0.0
        %2770 = vmatprep.subr.mxu0 0.0
        %2771 = vmatpush1.xpose.msra.mxu0 0.0
        %2772 = vmatprep.subr.mxu0 0.0
        %2773 = vmatpush1.xpose.msra.mxu0 0.0
        %2774 = vmatprep.subr.mxu0 0.0
        %2775 = vmatpush1.xpose.msra.mxu0 0.0
        %2776 = vmatprep.subr.mxu0 0.0
        %2777 = vmatpush1.xpose.msra.mxu0 0.0
        %2778 = vmatprep.subr.mxu0 0.0
        %2779 = vmatpush1.xpose.msra.mxu0 0.0
        %2780 = vmatprep.subr.mxu0 0.0
        %2781 = vmatpush1.xpose.msra.mxu0 0.0
        %2782 = vmatprep.subr.mxu0 0.0
        %2783 = vmatpush1.xpose.msra.mxu0 0.0
        %2784 = vmatprep.mubr.f32.mxu0 0.0
        %2785 = vmatmul.mubr.f32.gmra.mrb[0].mxu0 %v2714
        %v2786 = vpop.f32.mrb[0].mxu0
        %v2787 = vadd.f32 0.0, %v2786
        %v2788 = vpop.f32.mrb[0].mxu0
        %2789 = vdwg.mxu0
        %v2790 = vsel %vm2617, %v2787, -inf
        %2791 = vmax.xlane.f32.xlu0 %v2790
        %v2792 = vpop.xlane.xlu0 %2791
        %v2793 = vsub.f32 %v2787, %v2792
        %v2794 = vmul.f32 %v2793, 1.442695
        %v2795 = vpow.pop %v2794
        %v2796 = vsel %vm2617, %v2795, 0.0
        %2797 = vadd.xlane.f32.xlu0 %v2796
        %v2798 = vpop.xlane.xlu0 %2797
        %v2799 = vrcp.pop %v2798
        %v2800 = vmul.f32 %v2795, %v2799
        %2801 = vrot.lane.b32.xlu0 %v2524, 88
        %v2802 = vpop.permute.xlu0 %2801
        %2803 = vrot.lane.b32.xlu0 %v2529, 88
        %v2804 = vpop.permute.xlu0 %2803
        %v2808 = vsel %vm2617, %v2800, 0
        %2810 = vmatprep.subr.mxu0 0.0
        %2811 = vmatpush1.msra.mxu0 %v2802
        %2812 = vmatprep.subr.mxu0 0.0
        %2813 = vmatpush1.msra.mxu0 %v2804
        %2814 = vmatprep.subr.mxu0 0.0
        %2815 = vmatpush1.msra.mxu0 0.0
        %2816 = vmatprep.subr.mxu0 0.0
        %2817 = vmatpush1.msra.mxu0 0.0
        %2818 = vmatprep.subr.mxu0 0.0
        %2819 = vmatpush1.msra.mxu0 0.0
        %2820 = vmatprep.subr.mxu0 0.0
        %2821 = vmatpush1.msra.mxu0 0.0
        %2822 = vmatprep.subr.mxu0 0.0
        %2823 = vmatpush1.msra.mxu0 0.0
        %2824 = vmatprep.subr.mxu0 0.0
        %2825 = vmatpush1.msra.mxu0 0.0
        %2826 = vmatprep.subr.mxu0 0.0
        %2827 = vmatpush1.msra.mxu0 0.0
        %2828 = vmatprep.subr.mxu0 0.0
        %2829 = vmatpush1.msra.mxu0 0.0
        %2830 = vmatprep.subr.mxu0 0.0
        %2831 = vmatpush1.msra.mxu0 0.0
        %2832 = vmatprep.subr.mxu0 0.0
        %2833 = vmatpush1.msra.mxu0 0.0
        %2834 = vmatprep.subr.mxu0 0.0
        %2835 = vmatpush1.msra.mxu0 0.0
        %2836 = vmatprep.subr.mxu0 0.0
        %2837 = vmatpush1.msra.mxu0 0.0
        %2838 = vmatprep.subr.mxu0 0.0
        %2839 = vmatpush1.msra.mxu0 0.0
        %2840 = vmatprep.subr.mxu0 0.0
        %2841 = vmatpush1.msra.mxu0 0.0
        %2842 = vmatprep.subr.mxu0 0.0
        %2843 = vmatpush1.msra.mxu0 0.0
        %2844 = vmatprep.subr.mxu0 0.0
        %2845 = vmatpush1.msra.mxu0 0.0
        %2846 = vmatprep.subr.mxu0 0.0
        %2847 = vmatpush1.msra.mxu0 0.0
        %2848 = vmatprep.subr.mxu0 0.0
        %2849 = vmatpush1.msra.mxu0 0.0
        %2850 = vmatprep.subr.mxu0 0.0
        %2851 = vmatpush1.msra.mxu0 0.0
        %2852 = vmatprep.subr.mxu0 0.0
        %2853 = vmatpush1.msra.mxu0 0.0
        %2854 = vmatprep.subr.mxu0 0.0
        %2855 = vmatpush1.msra.mxu0 0.0
        %2856 = vmatprep.subr.mxu0 0.0
        %2857 = vmatpush1.msra.mxu0 0.0
        %2858 = vmatprep.subr.mxu0 0.0
        %2859 = vmatpush1.msra.mxu0 0.0
        %2860 = vmatprep.subr.mxu0 0.0
        %2861 = vmatpush1.msra.mxu0 0.0
        %2862 = vmatprep.subr.mxu0 0.0
        %2863 = vmatpush1.msra.mxu0 0.0
        %2864 = vmatprep.subr.mxu0 0.0
        %2865 = vmatpush1.msra.mxu0 0.0
        %2866 = vmatprep.subr.mxu0 0.0
        %2867 = vmatpush1.msra.mxu0 0.0
        %2868 = vmatprep.subr.mxu0 0.0
        %2869 = vmatpush1.msra.mxu0 0.0
        %2870 = vmatprep.subr.mxu0 0.0
        %2871 = vmatpush1.msra.mxu0 0.0
        %2872 = vmatprep.subr.mxu0 0.0
        %2873 = vmatpush1.msra.mxu0 0.0
        %2874 = vmatprep.mubr.f32.mxu0 0.0
        %2875 = vmatmul.mubr.f32.gmra.mrb[0].mxu0 %v2808
        %v2876 = vpop.f32.mrb[0].mxu0
        %v2877 = vadd.f32 0.0, %v2876
        %v2878 = vpop.f32.mrb[0].mxu0
        %2879 = vdwg.mxu0
        %v2881 = vsel %vm1358, %v2877, 0
        %2883 = vmatprep.subr.mxu0 0.0
        %2884 = vmatpush1.msra.mxu0 %v2533
        %2885 = vmatprep.subr.mxu0 0.0
        %2886 = vmatpush1.msra.mxu0 0.0
        %2887 = vmatprep.subr.mxu0 0.0
        %2888 = vmatpush1.msra.mxu0 0.0
        %2889 = vmatprep.subr.mxu0 0.0
        %2890 = vmatpush1.msra.mxu0 0.0
        %2891 = vmatprep.subr.mxu0 0.0
        %2892 = vmatpush1.msra.mxu0 0.0
        %2893 = vmatprep.subr.mxu0 0.0
        %2894 = vmatpush1.msra.mxu0 0.0
        %2895 = vmatprep.subr.mxu0 0.0
        %2896 = vmatpush1.msra.mxu0 0.0
        %2897 = vmatprep.subr.mxu0 0.0
        %2898 = vmatpush1.msra.mxu0 0.0
        %2899 = vmatprep.subr.mxu0 0.0
        %2900 = vmatpush1.msra.mxu0 0.0
        %2901 = vmatprep.subr.mxu0 0.0
        %2902 = vmatpush1.msra.mxu0 0.0
        %2903 = vmatprep.subr.mxu0 0.0
        %2904 = vmatpush1.msra.mxu0 0.0
        %2905 = vmatprep.subr.mxu0 0.0
        %2906 = vmatpush1.msra.mxu0 0.0
        %2907 = vmatprep.subr.mxu0 0.0
        %2908 = vmatpush1.msra.mxu0 0.0
        %2909 = vmatprep.subr.mxu0 0.0
        %2910 = vmatpush1.msra.mxu0 0.0
        %2911 = vmatprep.subr.mxu0 0.0
        %2912 = vmatpush1.msra.mxu0 0.0
        %2913 = vmatprep.subr.mxu0 0.0
        %2914 = vmatpush1.msra.mxu0 0.0
        %2915 = vmatprep.subr.mxu0 0.0
        %2916 = vmatpush1.msra.mxu0 0.0
        %2917 = vmatprep.subr.mxu0 0.0
        %2918 = vmatpush1.msra.mxu0 0.0
        %2919 = vmatprep.subr.mxu0 0.0
        %2920 = vmatpush1.msra.mxu0 0.0
        %2921 = vmatprep.subr.mxu0 0.0
        %2922 = vmatpush1.msra.mxu0 0.0
        %2923 = vmatprep.subr.mxu0 0.0
        %2924 = vmatpush1.msra.mxu0 0.0
        %2925 = vmatprep.subr.mxu0 0.0
        %2926 = vmatpush1.msra.mxu0 0.0
        %2927 = vmatprep.subr.mxu0 0.0
        %2928 = vmatpush1.msra.mxu0 0.0
        %2929 = vmatprep.subr.mxu0 0.0
        %2930 = vmatpush1.msra.mxu0 0.0
        %2931 = vmatprep.subr.mxu0 0.0
        %2932 = vmatpush1.msra.mxu0 0.0
        %2933 = vmatprep.subr.mxu0 0.0
        %2934 = vmatpush1.msra.mxu0 0.0
        %2935 = vmatprep.subr.mxu0 0.0
        %2936 = vmatpush1.msra.mxu0 0.0
        %2937 = vmatprep.subr.mxu0 0.0
        %2938 = vmatpush1.msra.mxu0 0.0
        %2939 = vmatprep.subr.mxu0 0.0
        %2940 = vmatpush1.msra.mxu0 0.0
        %2941 = vmatprep.subr.mxu0 0.0
        %2942 = vmatpush1.msra.mxu0 0.0
        %2943 = vmatprep.subr.mxu0 0.0
        %2944 = vmatpush1.msra.mxu0 0.0
        %2945 = vmatprep.subr.mxu0 0.0
        %2946 = vmatpush1.msra.mxu0 0.0
        %2947 = vmatprep.mubr.f32.mxu0 0.0
        %2948 = vmatmul.mubr.f32.gmra.mrb[0].mxu0 %v2881
        %v2949 = vpop.f32.mrb[0].mxu0
        %v2950 = vadd.f32 0.0, %v2949
        %v2951 = vpop.f32.mrb[0].mxu0
        %2952 = vdwg.mxu0
        %v2954 = vsel %vm1358, %v2705, 0
        %2956 = vmatprep.subr.mxu0 0.0
        %2957 = vmatpush1.msra.mxu0 %v2532
        %2958 = vmatprep.subr.mxu0 0.0
        %2959 = vmatpush1.msra.mxu0 0.0
        %2960 = vmatprep.subr.mxu0 0.0
        %2961 = vmatpush1.msra.mxu0 0.0
        %2962 = vmatprep.subr.mxu0 0.0
        %2963 = vmatpush1.msra.mxu0 0.0
        %2964 = vmatprep.subr.mxu0 0.0
        %2965 = vmatpush1.msra.mxu0 0.0
        %2966 = vmatprep.subr.mxu0 0.0
        %2967 = vmatpush1.msra.mxu0 0.0
        %2968 = vmatprep.subr.mxu0 0.0
        %2969 = vmatpush1.msra.mxu0 0.0
        %2970 = vmatprep.subr.mxu0 0.0
        %2971 = vmatpush1.msra.mxu0 0.0
        %2972 = vmatprep.subr.mxu0 0.0
        %2973 = vmatpush1.msra.mxu0 0.0
        %2974 = vmatprep.subr.mxu0 0.0
        %2975 = vmatpush1.msra.mxu0 0.0
        %2976 = vmatprep.subr.mxu0 0.0
        %2977 = vmatpush1.msra.mxu0 0.0
        %2978 = vmatprep.subr.mxu0 0.0
        %2979 = vmatpush1.msra.mxu0 0.0
        %2980 = vmatprep.subr.mxu0 0.0
        %2981 = vmatpush1.msra.mxu0 0.0
        %2982 = vmatprep.subr.mxu0 0.0
        %2983 = vmatpush1.msra.mxu0 0.0
        %2984 = vmatprep.subr.mxu0 0.0
        %2985 = vmatpush1.msra.mxu0 0.0
        %2986 = vmatprep.subr.mxu0 0.0
        %2987 = vmatpush1.msra.mxu0 0.0
        %2988 = vmatprep.subr.mxu0 0.0
        %2989 = vmatpush1.msra.mxu0 0.0
        %2990 = vmatprep.subr.mxu0 0.0
        %2991 = vmatpush1.msra.mxu0 0.0
        %2992 = vmatprep.subr.mxu0 0.0
        %2993 = vmatpush1.msra.mxu0 0.0
        %2994 = vmatprep.subr.mxu0 0.0
        %2995 = vmatpush1.msra.mxu0 0.0
        %2996 = vmatprep.subr.mxu0 0.0
        %2997 = vmatpush1.msra.mxu0 0.0
        %2998 = vmatprep.subr.mxu0 0.0
        %2999 = vmatpush1.msra.mxu0 0.0
        %3000 = vmatprep.subr.mxu0 0.0
        %3001 = vmatpush1.msra.mxu0 0.0
        %3002 = vmatprep.subr.mxu0 0.0
        %3003 = vmatpush1.msra.mxu0 0.0
        %3004 = vmatprep.subr.mxu0 0.0
        %3005 = vmatpush1.msra.mxu0 0.0
        %3006 = vmatprep.subr.mxu0 0.0
        %3007 = vmatpush1.msra.mxu0 0.0
        %3008 = vmatprep.subr.mxu0 0.0
        %3009 = vmatpush1.msra.mxu0 0.0
        %3010 = vmatprep.subr.mxu0 0.0
        %3011 = vmatpush1.msra.mxu0 0.0
        %3012 = vmatprep.subr.mxu0 0.0
        %3013 = vmatpush1.msra.mxu0 0.0
        %3014 = vmatprep.subr.mxu0 0.0
        %3015 = vmatpush1.msra.mxu0 0.0
        %3016 = vmatprep.subr.mxu0 0.0
        %3017 = vmatpush1.msra.mxu0 0.0
        %3018 = vmatprep.subr.mxu0 0.0
        %3019 = vmatpush1.msra.mxu0 0.0
        %3020 = vmatprep.mubr.f32.mxu0 0.0
        %3021 = vmatmul.mubr.f32.gmra.mrb[0].mxu0 %v2954
        %v3022 = vpop.f32.mrb[0].mxu0
        %v3023 = vadd.f32 %v2950, %v3022
        %v3024 = vpop.f32.mrb[0].mxu0
        %3025 = vdwg.mxu0
        %3026 = vrot.lane.b32.xlu0 %v2537, 112
        %v3027 = vpop.permute.xlu0 %3026
        %3028 = vrot.lane.b32.xlu0 %v2524, 112
        %v3029 = vpop.permute.xlu0 %3028
        %3030 = vrot.lane.b32.xlu0 %v2529, 112
        %v3031 = vpop.permute.xlu0 %3030
        %v3032 = vsel %vm1358, %v3027, 0
        %v3034 = vsel %vm1358, %v3029, 0
        %v3036 = vsel %vm1358, %v3031, 0
        %3038 = vmatprep.subr.mxu0 0.0
        %3039 = vmatpush1.xpose.msra.mxu0 %v3034
        %3040 = vmatprep.subr.mxu0 0.0
        %3041 = vmatpush1.xpose.msra.mxu0 %v3036
        %3042 = vmatprep.subr.mxu0 0.0
        %3043 = vmatpush1.xpose.msra.mxu0 0.0
        %3044 = vmatprep.subr.mxu0 0.0
        %3045 = vmatpush1.xpose.msra.mxu0 0.0
        %3046 = vmatprep.subr.mxu0 0.0
        %3047 = vmatpush1.xpose.msra.mxu0 0.0
        %3048 = vmatprep.subr.mxu0 0.0
        %3049 = vmatpush1.xpose.msra.mxu0 0.0
        %3050 = vmatprep.subr.mxu0 0.0
        %3051 = vmatpush1.xpose.msra.mxu0 0.0
        %3052 = vmatprep.subr.mxu0 0.0
        %3053 = vmatpush1.xpose.msra.mxu0 0.0
        %3054 = vmatprep.subr.mxu0 0.0
        %3055 = vmatpush1.xpose.msra.mxu0 0.0
        %3056 = vmatprep.subr.mxu0 0.0
        %3057 = vmatpush1.xpose.msra.mxu0 0.0
        %3058 = vmatprep.subr.mxu0 0.0
        %3059 = vmatpush1.xpose.msra.mxu0 0.0
        %3060 = vmatprep.subr.mxu0 0.0
        %3061 = vmatpush1.xpose.msra.mxu0 0.0
        %3062 = vmatprep.subr.mxu0 0.0
        %3063 = vmatpush1.xpose.msra.mxu0 0.0
        %3064 = vmatprep.subr.mxu0 0.0
        %3065 = vmatpush1.xpose.msra.mxu0 0.0
        %3066 = vmatprep.subr.mxu0 0.0
        %3067 = vmatpush1.xpose.msra.mxu0 0.0
        %3068 = vmatprep.subr.mxu0 0.0
        %3069 = vmatpush1.xpose.msra.mxu0 0.0
        %3070 = vmatprep.subr.mxu0 0.0
        %3071 = vmatpush1.xpose.msra.mxu0 0.0
        %3072 = vmatprep.subr.mxu0 0.0
        %3073 = vmatpush1.xpose.msra.mxu0 0.0
        %3074 = vmatprep.subr.mxu0 0.0
        %3075 = vmatpush1.xpose.msra.mxu0 0.0
        %3076 = vmatprep.subr.mxu0 0.0
        %3077 = vmatpush1.xpose.msra.mxu0 0.0
        %3078 = vmatprep.subr.mxu0 0.0
        %3079 = vmatpush1.xpose.msra.mxu0 0.0
        %3080 = vmatprep.subr.mxu0 0.0
        %3081 = vmatpush1.xpose.msra.mxu0 0.0
        %3082 = vmatprep.subr.mxu0 0.0
        %3083 = vmatpush1.xpose.msra.mxu0 0.0
        %3084 = vmatprep.subr.mxu0 0.0
        %3085 = vmatpush1.xpose.msra.mxu0 0.0
        %3086 = vmatprep.subr.mxu0 0.0
        %3087 = vmatpush1.xpose.msra.mxu0 0.0
        %3088 = vmatprep.subr.mxu0 0.0
        %3089 = vmatpush1.xpose.msra.mxu0 0.0
        %3090 = vmatprep.subr.mxu0 0.0
        %3091 = vmatpush1.xpose.msra.mxu0 0.0
        %3092 = vmatprep.subr.mxu0 0.0
        %3093 = vmatpush1.xpose.msra.mxu0 0.0
        %3094 = vmatprep.subr.mxu0 0.0
        %3095 = vmatpush1.xpose.msra.mxu0 0.0
        %3096 = vmatprep.subr.mxu0 0.0
        %3097 = vmatpush1.xpose.msra.mxu0 0.0
        %3098 = vmatprep.subr.mxu0 0.0
        %3099 = vmatpush1.xpose.msra.mxu0 0.0
        %3100 = vmatprep.subr.mxu0 0.0
        %3101 = vmatpush1.xpose.msra.mxu0 0.0
        %3102 = vmatprep.mubr.f32.mxu0 0.0
        %3103 = vmatmul.mubr.f32.gmra.mrb[0].mxu0 %v3032
        %v3104 = vpop.f32.mrb[0].mxu0
        %v3105 = vadd.f32 0.0, %v3104
        %v3106 = vpop.f32.mrb[0].mxu0
        %3107 = vdwg.mxu0
        %v3108 = vsel %vm2617, %v3105, -inf
        %3109 = vmax.xlane.f32.xlu0 %v3108
        %v3110 = vpop.xlane.xlu0 %3109
        %v3111 = vsub.f32 %v3105, %v3110
        %v3112 = vmul.f32 %v3111, 1.442695
        %v3113 = vpow.pop %v3112
        %v3114 = vsel %vm2617, %v3113, 0.0
        %3115 = vadd.xlane.f32.xlu0 %v3114
        %v3116 = vpop.xlane.xlu0 %3115
        %v3117 = vrcp.pop %v3116
        %v3118 = vmul.f32 %v3113, %v3117
        %3119 = vrot.lane.b32.xlu0 %v2524, 80
        %v3120 = vpop.permute.xlu0 %3119
        %3121 = vrot.lane.b32.xlu0 %v2529, 80
        %v3122 = vpop.permute.xlu0 %3121
        %v3126 = vsel %vm2617, %v3118, 0
        %3128 = vmatprep.subr.mxu0 0.0
        %3129 = vmatpush1.msra.mxu0 %v3120
        %3130 = vmatprep.subr.mxu0 0.0
        %3131 = vmatpush1.msra.mxu0 %v3122
        %3132 = vmatprep.subr.mxu0 0.0
        %3133 = vmatpush1.msra.mxu0 0.0
        %3134 = vmatprep.subr.mxu0 0.0
        %3135 = vmatpush1.msra.mxu0 0.0
        %3136 = vmatprep.subr.mxu0 0.0
        %3137 = vmatpush1.msra.mxu0 0.0
        %3138 = vmatprep.subr.mxu0 0.0
        %3139 = vmatpush1.msra.mxu0 0.0
        %3140 = vmatprep.subr.mxu0 0.0
        %3141 = vmatpush1.msra.mxu0 0.0
        %3142 = vmatprep.subr.mxu0 0.0
        %3143 = vmatpush1.msra.mxu0 0.0
        %3144 = vmatprep.subr.mxu0 0.0
        %3145 = vmatpush1.msra.mxu0 0.0
        %3146 = vmatprep.subr.mxu0 0.0
        %3147 = vmatpush1.msra.mxu0 0.0
        %3148 = vmatprep.subr.mxu0 0.0
        %3149 = vmatpush1.msra.mxu0 0.0
        %3150 = vmatprep.subr.mxu0 0.0
        %3151 = vmatpush1.msra.mxu0 0.0
        %3152 = vmatprep.subr.mxu0 0.0
        %3153 = vmatpush1.msra.mxu0 0.0
        %3154 = vmatprep.subr.mxu0 0.0
        %3155 = vmatpush1.msra.mxu0 0.0
        %3156 = vmatprep.subr.mxu0 0.0
        %3157 = vmatpush1.msra.mxu0 0.0
        %3158 = vmatprep.subr.mxu0 0.0
        %3159 = vmatpush1.msra.mxu0 0.0
        %3160 = vmatprep.subr.mxu0 0.0
        %3161 = vmatpush1.msra.mxu0 0.0
        %3162 = vmatprep.subr.mxu0 0.0
        %3163 = vmatpush1.msra.mxu0 0.0
        %3164 = vmatprep.subr.mxu0 0.0
        %3165 = vmatpush1.msra.mxu0 0.0
        %3166 = vmatprep.subr.mxu0 0.0
        %3167 = vmatpush1.msra.mxu0 0.0
        %3168 = vmatprep.subr.mxu0 0.0
        %3169 = vmatpush1.msra.mxu0 0.0
        %3170 = vmatprep.subr.mxu0 0.0
        %3171 = vmatpush1.msra.mxu0 0.0
        %3172 = vmatprep.subr.mxu0 0.0
        %3173 = vmatpush1.msra.mxu0 0.0
        %3174 = vmatprep.subr.mxu0 0.0
        %3175 = vmatpush1.msra.mxu0 0.0
        %3176 = vmatprep.subr.mxu0 0.0
        %3177 = vmatpush1.msra.mxu0 0.0
        %3178 = vmatprep.subr.mxu0 0.0
        %3179 = vmatpush1.msra.mxu0 0.0
        %3180 = vmatprep.subr.mxu0 0.0
        %3181 = vmatpush1.msra.mxu0 0.0
        %3182 = vmatprep.subr.mxu0 0.0
        %3183 = vmatpush1.msra.mxu0 0.0
        %3184 = vmatprep.subr.mxu0 0.0
        %3185 = vmatpush1.msra.mxu0 0.0
        %3186 = vmatprep.subr.mxu0 0.0
        %3187 = vmatpush1.msra.mxu0 0.0
        %3188 = vmatprep.subr.mxu0 0.0
        %3189 = vmatpush1.msra.mxu0 0.0
        %3190 = vmatprep.subr.mxu0 0.0
        %3191 = vmatpush1.msra.mxu0 0.0
        %3192 = vmatprep.mubr.f32.mxu0 0.0
        %3193 = vmatmul.mubr.f32.gmra.mrb[0].mxu0 %v3126
        %v3194 = vpop.f32.mrb[0].mxu0
        %v3195 = vadd.f32 0.0, %v3194
        %v3196 = vpop.f32.mrb[0].mxu0
        %3197 = vdwg.mxu0
        %v3199 = vsel %vm1358, %v3195, 0
        %3201 = vmatprep.subr.mxu0 0.0
        %3202 = vmatpush1.msra.mxu0 %v2534
        %3203 = vmatprep.subr.mxu0 0.0
        %3204 = vmatpush1.msra.mxu0 0.0
        %3205 = vmatprep.subr.mxu0 0.0
        %3206 = vmatpush1.msra.mxu0 0.0
        %3207 = vmatprep.subr.mxu0 0.0
        %3208 = vmatpush1.msra.mxu0 0.0
        %3209 = vmatprep.subr.mxu0 0.0
        %3210 = vmatpush1.msra.mxu0 0.0
        %3211 = vmatprep.subr.mxu0 0.0
        %3212 = vmatpush1.msra.mxu0 0.0
        %3213 = vmatprep.subr.mxu0 0.0
        %3214 = vmatpush1.msra.mxu0 0.0
        %3215 = vmatprep.subr.mxu0 0.0
        %3216 = vmatpush1.msra.mxu0 0.0
        %3217 = vmatprep.subr.mxu0 0.0
        %3218 = vmatpush1.msra.mxu0 0.0
        %3219 = vmatprep.subr.mxu0 0.0
        %3220 = vmatpush1.msra.mxu0 0.0
        %3221 = vmatprep.subr.mxu0 0.0
        %3222 = vmatpush1.msra.mxu0 0.0
        %3223 = vmatprep.subr.mxu0 0.0
        %3224 = vmatpush1.msra.mxu0 0.0
        %3225 = vmatprep.subr.mxu0 0.0
        %3226 = vmatpush1.msra.mxu0 0.0
        %3227 = vmatprep.subr.mxu0 0.0
        %3228 = vmatpush1.msra.mxu0 0.0
        %3229 = vmatprep.subr.mxu0 0.0
        %3230 = vmatpush1.msra.mxu0 0.0
        %3231 = vmatprep.subr.mxu0 0.0
        %3232 = vmatpush1.msra.mxu0 0.0
        %3233 = vmatprep.subr.mxu0 0.0
        %3234 = vmatpush1.msra.mxu0 0.0
        %3235 = vmatprep.subr.mxu0 0.0
        %3236 = vmatpush1.msra.mxu0 0.0
        %3237 = vmatprep.subr.mxu0 0.0
        %3238 = vmatpush1.msra.mxu0 0.0
        %3239 = vmatprep.subr.mxu0 0.0
        %3240 = vmatpush1.msra.mxu0 0.0
        %3241 = vmatprep.subr.mxu0 0.0
        %3242 = vmatpush1.msra.mxu0 0.0
        %3243 = vmatprep.subr.mxu0 0.0
        %3244 = vmatpush1.msra.mxu0 0.0
        %3245 = vmatprep.subr.mxu0 0.0
        %3246 = vmatpush1.msra.mxu0 0.0
        %3247 = vmatprep.subr.mxu0 0.0
        %3248 = vmatpush1.msra.mxu0 0.0
        %3249 = vmatprep.subr.mxu0 0.0
        %3250 = vmatpush1.msra.mxu0 0.0
        %3251 = vmatprep.subr.mxu0 0.0
        %3252 = vmatpush1.msra.mxu0 0.0
        %3253 = vmatprep.subr.mxu0 0.0
        %3254 = vmatpush1.msra.mxu0 0.0
        %3255 = vmatprep.subr.mxu0 0.0
        %3256 = vmatpush1.msra.mxu0 0.0
        %3257 = vmatprep.subr.mxu0 0.0
        %3258 = vmatpush1.msra.mxu0 0.0
        %3259 = vmatprep.subr.mxu0 0.0
        %3260 = vmatpush1.msra.mxu0 0.0
        %3261 = vmatprep.subr.mxu0 0.0
        %3262 = vmatpush1.msra.mxu0 0.0
        %3263 = vmatprep.subr.mxu0 0.0
        %3264 = vmatpush1.msra.mxu0 0.0
        %3265 = vmatprep.mubr.f32.mxu0 0.0
        %3266 = vmatmul.mubr.f32.gmra.mrb[0].mxu0 %v3199
        %v3267 = vpop.f32.mrb[0].mxu0
        %v3268 = vadd.f32 0.0, %v3267
        %v3269 = vpop.f32.mrb[0].mxu0
        %3270 = vdwg.mxu0
        %v3271 = vadd.f32 %v3023, %v3268
        %3272 = vrot.lane.b32.xlu0 %v2537, 104
        %v3273 = vpop.permute.xlu0 %3272
        %3274 = vrot.lane.b32.xlu0 %v2524, 104
        %v3275 = vpop.permute.xlu0 %3274
        %3276 = vrot.lane.b32.xlu0 %v2529, 104
        %v3277 = vpop.permute.xlu0 %3276
        %v3278 = vsel %vm1358, %v3273, 0
        %v3280 = vsel %vm1358, %v3275, 0
        %v3282 = vsel %vm1358, %v3277, 0
        %3284 = vmatprep.subr.mxu0 0.0
        %3285 = vmatpush1.xpose.msra.mxu0 %v3280
        %3286 = vmatprep.subr.mxu0 0.0
        %3287 = vmatpush1.xpose.msra.mxu0 %v3282
        %3288 = vmatprep.subr.mxu0 0.0
        %3289 = vmatpush1.xpose.msra.mxu0 0.0
        %3290 = vmatprep.subr.mxu0 0.0
        %3291 = vmatpush1.xpose.msra.mxu0 0.0
        %3292 = vmatprep.subr.mxu0 0.0
        %3293 = vmatpush1.xpose.msra.mxu0 0.0
        %3294 = vmatprep.subr.mxu0 0.0
        %3295 = vmatpush1.xpose.msra.mxu0 0.0
        %3296 = vmatprep.subr.mxu0 0.0
        %3297 = vmatpush1.xpose.msra.mxu0 0.0
        %3298 = vmatprep.subr.mxu0 0.0
        %3299 = vmatpush1.xpose.msra.mxu0 0.0
        %3300 = vmatprep.subr.mxu0 0.0
        %3301 = vmatpush1.xpose.msra.mxu0 0.0
        %3302 = vmatprep.subr.mxu0 0.0
        %3303 = vmatpush1.xpose.msra.mxu0 0.0
        %3304 = vmatprep.subr.mxu0 0.0
        %3305 = vmatpush1.xpose.msra.mxu0 0.0
        %3306 = vmatprep.subr.mxu0 0.0
        %3307 = vmatpush1.xpose.msra.mxu0 0.0
        %3308 = vmatprep.subr.mxu0 0.0
        %3309 = vmatpush1.xpose.msra.mxu0 0.0
        %3310 = vmatprep.subr.mxu0 0.0
        %3311 = vmatpush1.xpose.msra.mxu0 0.0
        %3312 = vmatprep.subr.mxu0 0.0
        %3313 = vmatpush1.xpose.msra.mxu0 0.0
        %3314 = vmatprep.subr.mxu0 0.0
        %3315 = vmatpush1.xpose.msra.mxu0 0.0
        %3316 = vmatprep.subr.mxu0 0.0
        %3317 = vmatpush1.xpose.msra.mxu0 0.0
        %3318 = vmatprep.subr.mxu0 0.0
        %3319 = vmatpush1.xpose.msra.mxu0 0.0
        %3320 = vmatprep.subr.mxu0 0.0
        %3321 = vmatpush1.xpose.msra.mxu0 0.0
        %3322 = vmatprep.subr.mxu0 0.0
        %3323 = vmatpush1.xpose.msra.mxu0 0.0
        %3324 = vmatprep.subr.mxu0 0.0
        %3325 = vmatpush1.xpose.msra.mxu0 0.0
        %3326 = vmatprep.subr.mxu0 0.0
        %3327 = vmatpush1.xpose.msra.mxu0 0.0
        %3328 = vmatprep.subr.mxu0 0.0
        %3329 = vmatpush1.xpose.msra.mxu0 0.0
        %3330 = vmatprep.subr.mxu0 0.0
        %3331 = vmatpush1.xpose.msra.mxu0 0.0
        %3332 = vmatprep.subr.mxu0 0.0
        %3333 = vmatpush1.xpose.msra.mxu0 0.0
        %3334 = vmatprep.subr.mxu0 0.0
        %3335 = vmatpush1.xpose.msra.mxu0 0.0
        %3336 = vmatprep.subr.mxu0 0.0
        %3337 = vmatpush1.xpose.msra.mxu0 0.0
        %3338 = vmatprep.subr.mxu0 0.0
        %3339 = vmatpush1.xpose.msra.mxu0 0.0
        %3340 = vmatprep.subr.mxu0 0.0
        %3341 = vmatpush1.xpose.msra.mxu0 0.0
        %3342 = vmatprep.subr.mxu0 0.0
        %3343 = vmatpush1.xpose.msra.mxu0 0.0
        %3344 = vmatprep.subr.mxu0 0.0
        %3345 = vmatpush1.xpose.msra.mxu0 0.0
        %3346 = vmatprep.subr.mxu0 0.0
        %3347 = vmatpush1.xpose.msra.mxu0 0.0
        %3348 = vmatprep.mubr.f32.mxu0 0.0
        %3349 = vmatmul.mubr.f32.gmra.mrb[0].mxu0 %v3278
        %v3350 = vpop.f32.mrb[0].mxu0
        %v3351 = vadd.f32 0.0, %v3350
        %v3352 = vpop.f32.mrb[0].mxu0
        %3353 = vdwg.mxu0
        %v3354 = vsel %vm2617, %v3351, -inf
        %3355 = vmax.xlane.f32.xlu0 %v3354
        %v3356 = vpop.xlane.xlu0 %3355
        %v3357 = vsub.f32 %v3351, %v3356
        %v3358 = vmul.f32 %v3357, 1.442695
        %v3359 = vpow.pop %v3358
        %v3360 = vsel %vm2617, %v3359, 0.0
        %3361 = vadd.xlane.f32.xlu0 %v3360
        %v3362 = vpop.xlane.xlu0 %3361
        %v3363 = vrcp.pop %v3362
        %v3364 = vmul.f32 %v3359, %v3363
        %3365 = vrot.lane.b32.xlu0 %v2524, 72
        %v3366 = vpop.permute.xlu0 %3365
        %3367 = vrot.lane.b32.xlu0 %v2529, 72
        %v3368 = vpop.permute.xlu0 %3367
        %v3372 = vsel %vm2617, %v3364, 0
        %3374 = vmatprep.subr.mxu0 0.0
        %3375 = vmatpush1.msra.mxu0 %v3366
        %3376 = vmatprep.subr.mxu0 0.0
        %3377 = vmatpush1.msra.mxu0 %v3368
        %3378 = vmatprep.subr.mxu0 0.0
        %3379 = vmatpush1.msra.mxu0 0.0
        %3380 = vmatprep.subr.mxu0 0.0
        %3381 = vmatpush1.msra.mxu0 0.0
        %3382 = vmatprep.subr.mxu0 0.0
        %3383 = vmatpush1.msra.mxu0 0.0
        %3384 = vmatprep.subr.mxu0 0.0
        %3385 = vmatpush1.msra.mxu0 0.0
        %3386 = vmatprep.subr.mxu0 0.0
        %3387 = vmatpush1.msra.mxu0 0.0
        %3388 = vmatprep.subr.mxu0 0.0
        %3389 = vmatpush1.msra.mxu0 0.0
        %3390 = vmatprep.subr.mxu0 0.0
        %3391 = vmatpush1.msra.mxu0 0.0
        %3392 = vmatprep.subr.mxu0 0.0
        %3393 = vmatpush1.msra.mxu0 0.0
        %3394 = vmatprep.subr.mxu0 0.0
        %3395 = vmatpush1.msra.mxu0 0.0
        %3396 = vmatprep.subr.mxu0 0.0
        %3397 = vmatpush1.msra.mxu0 0.0
        %3398 = vmatprep.subr.mxu0 0.0
        %3399 = vmatpush1.msra.mxu0 0.0
        %3400 = vmatprep.subr.mxu0 0.0
        %3401 = vmatpush1.msra.mxu0 0.0
        %3402 = vmatprep.subr.mxu0 0.0
        %3403 = vmatpush1.msra.mxu0 0.0
        %3404 = vmatprep.subr.mxu0 0.0
        %3405 = vmatpush1.msra.mxu0 0.0
        %3406 = vmatprep.subr.mxu0 0.0
        %3407 = vmatpush1.msra.mxu0 0.0
        %3408 = vmatprep.subr.mxu0 0.0
        %3409 = vmatpush1.msra.mxu0 0.0
        %3410 = vmatprep.subr.mxu0 0.0
        %3411 = vmatpush1.msra.mxu0 0.0
        %3412 = vmatprep.subr.mxu0 0.0
        %3413 = vmatpush1.msra.mxu0 0.0
        %3414 = vmatprep.subr.mxu0 0.0
        %3415 = vmatpush1.msra.mxu0 0.0
        %3416 = vmatprep.subr.mxu0 0.0
        %3417 = vmatpush1.msra.mxu0 0.0
        %3418 = vmatprep.subr.mxu0 0.0
        %3419 = vmatpush1.msra.mxu0 0.0
        %3420 = vmatprep.subr.mxu0 0.0
        %3421 = vmatpush1.msra.mxu0 0.0
        %3422 = vmatprep.subr.mxu0 0.0
        %3423 = vmatpush1.msra.mxu0 0.0
        %3424 = vmatprep.subr.mxu0 0.0
        %3425 = vmatpush1.msra.mxu0 0.0
        %3426 = vmatprep.subr.mxu0 0.0
        %3427 = vmatpush1.msra.mxu0 0.0
        %3428 = vmatprep.subr.mxu0 0.0
        %3429 = vmatpush1.msra.mxu0 0.0
        %3430 = vmatprep.subr.mxu0 0.0
        %3431 = vmatpush1.msra.mxu0 0.0
        %3432 = vmatprep.subr.mxu0 0.0
        %3433 = vmatpush1.msra.mxu0 0.0
        %3434 = vmatprep.subr.mxu0 0.0
        %3435 = vmatpush1.msra.mxu0 0.0
        %3436 = vmatprep.subr.mxu0 0.0
        %3437 = vmatpush1.msra.mxu0 0.0
        %3438 = vmatprep.mubr.f32.mxu0 0.0
        %3439 = vmatmul.mubr.f32.gmra.mrb[0].mxu0 %v3372
        %v3440 = vpop.f32.mrb[0].mxu0
        %v3441 = vadd.f32 0.0, %v3440
        %v3442 = vpop.f32.mrb[0].mxu0
        %3443 = vdwg.mxu0
        %v3445 = vsel %vm1358, %v3441, 0
        %3447 = vmatprep.subr.mxu0 0.0
        %3448 = vmatpush1.msra.mxu0 %v2535
        %3449 = vmatprep.subr.mxu0 0.0
        %3450 = vmatpush1.msra.mxu0 0.0
        %3451 = vmatprep.subr.mxu0 0.0
        %3452 = vmatpush1.msra.mxu0 0.0
        %3453 = vmatprep.subr.mxu0 0.0
        %3454 = vmatpush1.msra.mxu0 0.0
        %3455 = vmatprep.subr.mxu0 0.0
        %3456 = vmatpush1.msra.mxu0 0.0
        %3457 = vmatprep.subr.mxu0 0.0
        %3458 = vmatpush1.msra.mxu0 0.0
        %3459 = vmatprep.subr.mxu0 0.0
        %3460 = vmatpush1.msra.mxu0 0.0
        %3461 = vmatprep.subr.mxu0 0.0
        %3462 = vmatpush1.msra.mxu0 0.0
        %3463 = vmatprep.subr.mxu0 0.0
        %3464 = vmatpush1.msra.mxu0 0.0
        %3465 = vmatprep.subr.mxu0 0.0
        %3466 = vmatpush1.msra.mxu0 0.0
        %3467 = vmatprep.subr.mxu0 0.0
        %3468 = vmatpush1.msra.mxu0 0.0
        %3469 = vmatprep.subr.mxu0 0.0
        %3470 = vmatpush1.msra.mxu0 0.0
        %3471 = vmatprep.subr.mxu0 0.0
        %3472 = vmatpush1.msra.mxu0 0.0
        %3473 = vmatprep.subr.mxu0 0.0
        %3474 = vmatpush1.msra.mxu0 0.0
        %3475 = vmatprep.subr.mxu0 0.0
        %3476 = vmatpush1.msra.mxu0 0.0
        %3477 = vmatprep.subr.mxu0 0.0
        %3478 = vmatpush1.msra.mxu0 0.0
        %3479 = vmatprep.subr.mxu0 0.0
        %3480 = vmatpush1.msra.mxu0 0.0
        %3481 = vmatprep.subr.mxu0 0.0
        %3482 = vmatpush1.msra.mxu0 0.0
        %3483 = vmatprep.subr.mxu0 0.0
        %3484 = vmatpush1.msra.mxu0 0.0
        %3485 = vmatprep.subr.mxu0 0.0
        %3486 = vmatpush1.msra.mxu0 0.0
        %3487 = vmatprep.subr.mxu0 0.0
        %3488 = vmatpush1.msra.mxu0 0.0
        %3489 = vmatprep.subr.mxu0 0.0
        %3490 = vmatpush1.msra.mxu0 0.0
        %3491 = vmatprep.subr.mxu0 0.0
        %3492 = vmatpush1.msra.mxu0 0.0
        %3493 = vmatprep.subr.mxu0 0.0
        %3494 = vmatpush1.msra.mxu0 0.0
        %3495 = vmatprep.subr.mxu0 0.0
        %3496 = vmatpush1.msra.mxu0 0.0
        %3497 = vmatprep.subr.mxu0 0.0
        %3498 = vmatpush1.msra.mxu0 0.0
        %3499 = vmatprep.subr.mxu0 0.0
        %3500 = vmatpush1.msra.mxu0 0.0
        %3501 = vmatprep.subr.mxu0 0.0
        %3502 = vmatpush1.msra.mxu0 0.0
        %3503 = vmatprep.subr.mxu0 0.0
        %3504 = vmatpush1.msra.mxu0 0.0
        %3505 = vmatprep.subr.mxu0 0.0
        %3506 = vmatpush1.msra.mxu0 0.0
        %3507 = vmatprep.subr.mxu0 0.0
        %3508 = vmatpush1.msra.mxu0 0.0
        %3509 = vmatprep.subr.mxu0 0.0
        %3510 = vmatpush1.msra.mxu0 0.0
        %3511 = vmatprep.mubr.f32.mxu0 0.0
        %3512 = vmatmul.mubr.f32.gmra.mrb[0].mxu0 %v3445
        %v3513 = vpop.f32.mrb[0].mxu0
        %v3514 = vadd.f32 0.0, %v3513
        %v3515 = vpop.f32.mrb[0].mxu0
        %3516 = vdwg.mxu0
        %v3517 = vadd.f32 %v3271, %v3514
        %v3519 = vlaneseq
        %v3520 = vshrl.u32 %v3519, 7
        %v3521 = vsub.s32 0, %v3520
        %v3522 = vrot.slane %v2536, %v3521
        %v3524 = vadd.f32 %v3517, %v3522
        %v3525 = vadd.f32 %v2345, %v3524
        %v3526 = vld [vmem:[%s47] sm:$0x1]
        %v3527 = vld [vmem:[%s49] sm:$0x1]
        %v3528 = vsel %vm1024, %v3525, 0.0
        %3529 = vadd.xlane.f32.xlu0 %v3528
        %v3530 = vpop.xlane.xlu0 %3529
        %v3531 = vmul.f32 %v3530, %v2321
        %v3532 = vsub.f32 %v3525, %v3531
        %v3533 = vmul.f32 %v3532, %v3532
        %v3534 = vsel %vm1024, %v3533, 0.0
        %3535 = vadd.xlane.f32.xlu0 %v3534
        %v3536 = vpop.xlane.xlu0 %3535
        %v3537 = vmul.f32 %v3536, %v2321
        %v3538 = vadd.f32 %v3537, 1e-05
        %v3539 = vrsqrt.pop %v3538
        %v3540 = vmul.f32 %v3532, %v3539
        %v3542 = vlaneseq
        %v3543 = vshrl.u32 %v3542, 7
        %v3544 = vsub.s32 0, %v3543
        %v3545 = vrot.slane %v3526, %v3544
        %v3547 = vmul.f32 %v3540, %v3545
        %v3549 = vlaneseq
        %v3550 = vshrl.u32 %v3549, 7
        %v3551 = vsub.s32 0, %v3550
        %v3552 = vrot.slane %v3527, %v3551
        %v3554 = vadd.f32 %v3547, %v3552
        %v3555 = vld [vmem:[%s51] sm:$0xff]
        %v3556 = vld [vmem:[%s51 + $0x8] sm:$0xff]
        %v3557 = vld [vmem:[%s51 + $0x10] sm:$0xff]
        %v3558 = vld [vmem:[%s51 + $0x18] sm:$0xff]
        %v3559 = vld [vmem:[%s53] sm:$0x1]
        %v3561 = vlaneseq
        %v3562 = vshrl.u32 %v3561, 7
        %v3563 = vsub.s32 0, %v3562
        %v3564 = vrot.slane %v3559, %v3563
        %v3567 = vsel %vm1024, %v3554, 0
        %3569 = vmatprep.subr.mxu0 0.0
        %3570 = vmatpush1.msra.mxu0 %v3555
        %3571 = vmatprep.subr.mxu0 0.0
        %3572 = vmatpush1.msra.mxu0 %v3556
        %3573 = vmatprep.subr.mxu0 0.0
        %3574 = vmatpush1.msra.mxu0 %v3557
        %3575 = vmatprep.subr.mxu0 0.0
        %3576 = vmatpush1.msra.mxu0 %v3558
        %3577 = vmatprep.subr.mxu0 0.0
        %3578 = vmatpush1.msra.mxu0 0.0
        %3579 = vmatprep.subr.mxu0 0.0
        %3580 = vmatpush1.msra.mxu0 0.0
        %3581 = vmatprep.subr.mxu0 0.0
        %3582 = vmatpush1.msra.mxu0 0.0
        %3583 = vmatprep.subr.mxu0 0.0
        %3584 = vmatpush1.msra.mxu0 0.0
        %3585 = vmatprep.subr.mxu0 0.0
        %3586 = vmatpush1.msra.mxu0 0.0
        %3587 = vmatprep.subr.mxu0 0.0
        %3588 = vmatpush1.msra.mxu0 0.0
        %3589 = vmatprep.subr.mxu0 0.0
        %3590 = vmatpush1.msra.mxu0 0.0
        %3591 = vmatprep.subr.mxu0 0.0
        %3592 = vmatpush1.msra.mxu0 0.0
        %3593 = vmatprep.subr.mxu0 0.0
        %3594 = vmatpush1.msra.mxu0 0.0
        %3595 = vmatprep.subr.mxu0 0.0
        %3596 = vmatpush1.msra.mxu0 0.0
        %3597 = vmatprep.subr.mxu0 0.0
        %3598 = vmatpush1.msra.mxu0 0.0
        %3599 = vmatprep.subr.mxu0 0.0
        %3600 = vmatpush1.msra.mxu0 0.0
        %3601 = vmatprep.subr.mxu0 0.0
        %3602 = vmatpush1.msra.mxu0 0.0
        %3603 = vmatprep.subr.mxu0 0.0
        %3604 = vmatpush1.msra.mxu0 0.0
        %3605 = vmatprep.subr.mxu0 0.0
        %3606 = vmatpush1.msra.mxu0 0.0
        %3607 = vmatprep.subr.mxu0 0.0
        %3608 = vmatpush1.msra.mxu0 0.0
        %3609 = vmatprep.subr.mxu0 0.0
        %3610 = vmatpush1.msra.mxu0 0.0
        %3611 = vmatprep.subr.mxu0 0.0
        %3612 = vmatpush1.msra.mxu0 0.0
        %3613 = vmatprep.subr.mxu0 0.0
        %3614 = vmatpush1.msra.mxu0 0.0
        %3615 = vmatprep.subr.mxu0 0.0
        %3616 = vmatpush1.msra.mxu0 0.0
        %3617 = vmatprep.subr.mxu0 0.0
        %3618 = vmatpush1.msra.mxu0 0.0
        %3619 = vmatprep.subr.mxu0 0.0
        %3620 = vmatpush1.msra.mxu0 0.0
        %3621 = vmatprep.subr.mxu0 0.0
        %3622 = vmatpush1.msra.mxu0 0.0
        %3623 = vmatprep.subr.mxu0 0.0
        %3624 = vmatpush1.msra.mxu0 0.0
        %3625 = vmatprep.subr.mxu0 0.0
        %3626 = vmatpush1.msra.mxu0 0.0
        %3627 = vmatprep.subr.mxu0 0.0
        %3628 = vmatpush1.msra.mxu0 0.0
        %3629 = vmatprep.subr.mxu0 0.0
        %3630 = vmatpush1.msra.mxu0 0.0
        %3631 = vmatprep.subr.mxu0 0.0
        %3632 = vmatpush1.msra.mxu0 0.0
        %3633 = vmatprep.mubr.f32.mxu0 0.0
        %3634 = vmatmul.mubr.f32.gmra.mrb[0].mxu0 %v3567
        %v3635 = vpop.f32.mrb[0].mxu0
        %v3636 = vadd.f32 %v3564, %v3635
        %v3637 = vpop.f32.mrb[0].mxu0
        %3638 = vdwg.mxu0
        %v3639 = vmax.f32 %v3636, 0.0
        %v3640 = vld [vmem:[%s55] sm:$0xff]
        %v3641 = vld [vmem:[%s55 + $0x8] sm:$0xff]
        %v3642 = vld [vmem:[%s55 + $0x10] sm:$0xff]
        %v3643 = vld [vmem:[%s55 + $0x18] sm:$0xff]
        %v3644 = vld [vmem:[%s55 + $0x20] sm:$0xff]
        %v3645 = vld [vmem:[%s55 + $0x28] sm:$0xff]
        %v3646 = vld [vmem:[%s55 + $0x30] sm:$0xff]
        %v3647 = vld [vmem:[%s55 + $0x38] sm:$0xff]
        %v3648 = vld [vmem:[%s55 + $0x40] sm:$0xff]
        %v3649 = vld [vmem:[%s55 + $0x48] sm:$0xff]
        %v3650 = vld [vmem:[%s55 + $0x50] sm:$0xff]
        %v3651 = vld [vmem:[%s55 + $0x58] sm:$0xff]
        %v3652 = vld [vmem:[%s55 + $0x60] sm:$0xff]
        %v3653 = vld [vmem:[%s55 + $0x68] sm:$0xff]
        %v3654 = vld [vmem:[%s55 + $0x70] sm:$0xff]
        %v3655 = vld [vmem:[%s55 + $0x78] sm:$0xff]
        %v3656 = vld [vmem:[%s57] sm:$0x1]
        %v3658 = vlaneseq
        %v3659 = vshrl.u32 %v3658, 7
        %v3660 = vsub.s32 0, %v3659
        %v3661 = vrot.slane %v3656, %v3660
        %3663 = vmatprep.subr.mxu0 0.0
        %3664 = vmatpush1.msra.mxu0 %v3640
        %3665 = vmatprep.subr.mxu0 0.0
        %3666 = vmatpush1.msra.mxu0 %v3641
        %3667 = vmatprep.subr.mxu0 0.0
        %3668 = vmatpush1.msra.mxu0 %v3642
        %3669 = vmatprep.subr.mxu0 0.0
        %3670 = vmatpush1.msra.mxu0 %v3643
        %3671 = vmatprep.subr.mxu0 0.0
        %3672 = vmatpush1.msra.mxu0 %v3644
        %3673 = vmatprep.subr.mxu0 0.0
        %3674 = vmatpush1.msra.mxu0 %v3645
        %3675 = vmatprep.subr.mxu0 0.0
        %3676 = vmatpush1.msra.mxu0 %v3646
        %3677 = vmatprep.subr.mxu0 0.0
        %3678 = vmatpush1.msra.mxu0 %v3647
        %3679 = vmatprep.subr.mxu0 0.0
        %3680 = vmatpush1.msra.mxu0 %v3648
        %3681 = vmatprep.subr.mxu0 0.0
        %3682 = vmatpush1.msra.mxu0 %v3649
        %3683 = vmatprep.subr.mxu0 0.0
        %3684 = vmatpush1.msra.mxu0 %v3650
        %3685 = vmatprep.subr.mxu0 0.0
        %3686 = vmatpush1.msra.mxu0 %v3651
        %3687 = vmatprep.subr.mxu0 0.0
        %3688 = vmatpush1.msra.mxu0 %v3652
        %3689 = vmatprep.subr.mxu0 0.0
        %3690 = vmatpush1.msra.mxu0 %v3653
        %3691 = vmatprep.subr.mxu0 0.0
        %3692 = vmatpush1.msra.mxu0 %v3654
        %3693 = vmatprep.subr.mxu0 0.0
        %3694 = vmatpush1.msra.mxu0 %v3655
        %3695 = vmatprep.subr.mxu0 0.0
        %3696 = vmatpush1.msra.mxu0 0.0
        %3697 = vmatprep.subr.mxu0 0.0
        %3698 = vmatpush1.msra.mxu0 0.0
        %3699 = vmatprep.subr.mxu0 0.0
        %3700 = vmatpush1.msra.mxu0 0.0
        %3701 = vmatprep.subr.mxu0 0.0
        %3702 = vmatpush1.msra.mxu0 0.0
        %3703 = vmatprep.subr.mxu0 0.0
        %3704 = vmatpush1.msra.mxu0 0.0
        %3705 = vmatprep.subr.mxu0 0.0
        %3706 = vmatpush1.msra.mxu0 0.0
        %3707 = vmatprep.subr.mxu0 0.0
        %3708 = vmatpush1.msra.mxu0 0.0
        %3709 = vmatprep.subr.mxu0 0.0
        %3710 = vmatpush1.msra.mxu0 0.0
        %3711 = vmatprep.subr.mxu0 0.0
        %3712 = vmatpush1.msra.mxu0 0.0
        %3713 = vmatprep.subr.mxu0 0.0
        %3714 = vmatpush1.msra.mxu0 0.0
        %3715 = vmatprep.subr.mxu0 0.0
        %3716 = vmatpush1.msra.mxu0 0.0
        %3717 = vmatprep.subr.mxu0 0.0
        %3718 = vmatpush1.msra.mxu0 0.0
        %3719 = vmatprep.subr.mxu0 0.0
        %3720 = vmatpush1.msra.mxu0 0.0
        %3721 = vmatprep.subr.mxu0 0.0
        %3722 = vmatpush1.msra.mxu0 0.0
        %3723 = vmatprep.subr.mxu0 0.0
        %3724 = vmatpush1.msra.mxu0 0.0
        %3725 = vmatprep.subr.mxu0 0.0
        %3726 = vmatpush1.msra.mxu0 0.0
        %3727 = vmatprep.mubr.f32.mxu0 0.0
        %3728 = vmatmul.mubr.f32.gmra.mrb[0].mxu0 %v3639
        %v3729 = vpop.f32.mrb[0].mxu0
        %v3730 = vadd.f32 %v3661, %v3729
        %v3731 = vpop.f32.mrb[0].mxu0
        %3732 = vdwg.mxu0
        %v3733 = vadd.f32 %v3554, %v3730
        %v3734 = vld [vmem:[%s59] sm:$0x1]
        %v3735 = vld [vmem:[%s61] sm:$0x1]
        %v3736 = vsel %vm1024, %v3733, 0.0
        %3737 = vadd.xlane.f32.xlu0 %v3736
        %v3738 = vpop.xlane.xlu0 %3737
        %v3739 = vmul.f32 %v3738, %v2321
        %v3740 = vsub.f32 %v3733, %v3739
        %v3741 = vmul.f32 %v3740, %v3740
        %v3742 = vsel %vm1024, %v3741, 0.0
        %3743 = vadd.xlane.f32.xlu0 %v3742
        %v3744 = vpop.xlane.xlu0 %3743
        %v3745 = vmul.f32 %v3744, %v2321
        %v3746 = vadd.f32 %v3745, 1e-05
        %v3747 = vrsqrt.pop %v3746
        %v3748 = vmul.f32 %v3740, %v3747
        %v3750 = vlaneseq
        %v3751 = vshrl.u32 %v3750, 7
        %v3752 = vsub.s32 0, %v3751
        %v3753 = vrot.slane %v3734, %v3752
        %v3755 = vmul.f32 %v3748, %v3753
        %v3757 = vlaneseq
        %v3758 = vshrl.u32 %v3757, 7
        %v3759 = vsub.s32 0, %v3758
        %v3760 = vrot.slane %v3735, %v3759
        %v3762 = vadd.f32 %v3755, %v3760
        %3763 = vst.msk [vmem:[%s990] sm:$0xff] %vm1024, %v3762
        %s3764 = sand.u32 %s756, 1
        %s3765 = scalar_lea.sflag [#allocation3], %s3764
        %s3766 = sand.u32 %s756, 1
        %s3767 = smul.addr %s3766, 8
        %s3768 = scalar_lea.vmem [#allocation2], %s3767
        // Predicated region
        $region145: #{conditional_decoder_layer.1} parent=143 // pred_check
          %p3769 = pneg %p766
        $region146: #{conditional_decoder_layer.1} parent=143 // pred_check_branch
          %3771 = sbr.rel (%p3769) target = $region148
        $region147: #{conditional_decoder_layer.1} parent=143 // pred_region
          %s3773 = ssub.s32 128, 128
          %3774 = vsyncadd %s3765, %s3773
          %s3775 = smul.addr %s77, 128
          %s3776 = scalar_lea.hbm %s63, %s3775
          %s3778 = sshll.u32 %s3768, 4
          %s3779 = int_to_ptr.vmem [resolvable:$true] %s3778
          %3781 = dma.vmem_to_hbm [thread:$0]  %s3779, 128, %s3776, %s3765
        $region148: #{conditional_decoder_layer.1} parent=143 // pred_fallthru
          _
      $region144: #{conditional_decoder_layer.1} parent=5 // pred_fallthru
        _
      %p3782 = scmp.le.s32.totalorder 2, %s72
      // Predicated region
      $region149: #{conditional_decoder_layer.1} parent=5 // pred_check
        %p3783 = pneg %p3782
      $region150: #{conditional_decoder_layer.1} parent=5 // pred_check_branch
        %3785 = sbr.rel (%p3783) target = $region152
      $region151: #{conditional_decoder_layer.1} parent=5 // pred_region
        %s3786 = ssub.s32 %s72, 2
        // Predicated region
        $region153: #{conditional_decoder_layer.1} parent=151 // pred_check
          %p3787 = pneg %p772
        $region154: #{conditional_decoder_layer.1} parent=151 // pred_check_branch
          %3789 = sbr.rel (%p3787) target = $region156
        $region155: #{conditional_decoder_layer.1} parent=151 // pred_region
          %s3790 = sand.u32 %s757, 1
          %s3791 = scalar_lea.sflag [#allocation3], %s3790
          %s3792 = sand.u32 %s757, 1
          %s3793 = smul.addr %s3792, 8
          %s3794 = scalar_lea.vmem [#allocation2], %s3793
          %3795 = dma.done %s3791, 128
        $region156: #{conditional_decoder_layer.1} parent=151 // pred_fallthru
          _
      $region152: #{conditional_decoder_layer.1} parent=5 // pred_fallthru
        _
    $region6: #{conditional_decoder_layer.1} parent=1 // loop_footer
      %s76 = sadd.s32 1, %s72
    $region7: #{conditional_decoder_layer.1} parent=1 // loop_footer_branch
      %71 = sbr.rel target = $region3
    $region8: #{conditional_decoder_layer.1} parent=1 // loop_exit
      _
    %3796 = vsyncpa [#allocation3], 1
    %s3797 = scalar_lea.sflag [#allocation3], 1
    %3798 = vsyncpa %s3797, 1

</llo_original>
